<compile_context>
chip_gen: v5e
topology: v5e:2x2
jax: 0.10.0
libtpu: 0.0.40
codegen_flags: <defaults>
</compile_context>

<pallas_src>
import numpy as np
import jax
import jax.numpy as jnp
from jax.experimental import pallas as pl
from jax.experimental.pallas import tpu as pltpu


# ---------------------------------------------------------------------------
# Fused forward kernel (runs once per batch element; grid = (N,))
# ---------------------------------------------------------------------------
def _make_fused_kernel(Hf, Wf, hidden, cpad):
    M = Hf * Wf
    OFF = ((Wf + 1 + 7) // 8) * 8          # 8-aligned halo (>= Wf + 1 rows)
    H2 = 2 * hidden

    def kern(masks_ref, t_ref, sp_ref, wk_ref, ws_ref, sc1_ref, sh1_ref,
             wact_ref, sc2_ref, sh2_ref, wh1_ref, sch_ref, shh_ref,
             wh2_ref, b2_ref, out_ref, pad_h_ref, pad_2h_ref):
        f32 = jnp.float32

        # Zero the haloed row buffers (borders must be 0 on every grid step;
        # the interiors are fully overwritten below).
        pad_h_ref[...] = jnp.zeros_like(pad_h_ref)
        pad_2h_ref[...] = jnp.zeros_like(pad_2h_ref)

        # ---- xorr_kernel: 5x5 template conv == (8, K1) @ (K1, hidden) ------
        # (template row zero-padded to 8 rows wrapper-side; bias folded in sh1)
        kp = jnp.dot(t_ref[...], wk_ref[...],
                     preferred_element_type=f32)[0:1, :]            # (1, hidden)

        # ---- xorr_search: 5x5 valid conv as one im2col matmul --------------
        spart = jnp.dot(sp_ref[...], ws_ref[...],
                        preferred_element_type=f32)                 # (M, hidden)

        # ---- BN1(search_part + kernel_part) + ReLU --------------------------
        x1 = jnp.maximum((spart + kp) * sc1_ref[...] + sh1_ref[...], 0.0)

        def conv3x3(act, pad_ref, w_ref, cin, cout):
            """3x3 'same' conv of an (M, cin) activation.

            Writes `act` into the interior of a zero-haloed row buffer, then
            accumulates 9 tap matmuls; each tap is a statically shifted row
            slice multiplied by its (M,1) validity mask.
            """
            pad_ref[OFF:OFF + M, :] = act
            acc = jnp.zeros((M, cout), f32)
            for dh in range(3):
                for dw in range(3):
                    di, dj = dh - 1, dw - 1
                    t = dh * 3 + dw
                    r0 = OFF + di * Wf + dj
                    tap = pad_ref[r0:r0 + M, :]                     # (M, cin)
                    if not (di == 0 and dj == 0):
                        tap = tap * masks_ref[t]                    # (M, 1) mask
                    acc = acc + jnp.dot(tap, w_ref[t * cin:(t + 1) * cin, :],
                                        preferred_element_type=f32)
            return acc

        # ---- xorr_activate: conv3x3 -> BN -> ReLU ---------------------------
        feat = jnp.maximum(conv3x3(x1, pad_h_ref, wact_ref, hidden, hidden)
                           * sc2_ref[...] + sh2_ref[...], 0.0)      # (M, hidden)

        # ---- heads stage 1 (cls || loc merged): conv3x3 -> BN -> ReLU -------
        y = jnp.maximum(conv3x3(feat, pad_h_ref, wh1_ref, hidden, H2)
                        * sch_ref[...] + shh_ref[...], 0.0)         # (M, 2*hidden)

        # ---- heads stage 2 (block-diagonal merged conv, lane-padded) --------
        out = conv3x3(y, pad_2h_ref, wh2_ref, H2, cpad) + b2_ref[...]  # (M, 128)
        out_ref[...] = out.astype(out_ref.dtype)

    return kern, OFF


# ---------------------------------------------------------------------------
# Wrapper: parameter packing + single pallas_call
# ---------------------------------------------------------------------------
def depthwise_xcorr_forward(params, kernel_nchw, search_nchw):
    p = params
    f32 = jnp.float32
    N, Cin, Hk, Wk = kernel_nchw.shape
    _, _, Hs, Ws = search_nchw.shape
    KA, _, _, hidden = p['w_xk'].shape
    assert (Hk, Wk) == (KA, KA), "template spatial size must equal kernacm"
    Hf, Wf = Hs - KA + 1, Ws - KA + 1
    M = Hf * Wf
    K1 = KA * KA * Cin
    H2 = 2 * hidden
    CPAD = 128  # lane-dense final store; cols 0:2 = cls, 2:6 = loc

    # ---- input layout plumbing (pure data movement, done once in XLA) ------
    t_row = jnp.transpose(kernel_nchw, (0, 2, 3, 1)).reshape(N, 1, K1).astype(f32)
    t_pad = jnp.concatenate([t_row, jnp.zeros((N, 7, K1), f32)], axis=1)  # (N,8,K1)
    s_nhwc = jnp.transpose(search_nchw, (0, 2, 3, 1)).astype(f32)
    cols = []
    for kh in range(KA):
        for kw in range(KA):
            cols.append(s_nhwc[:, kh:kh + Hf, kw:kw + Wf, :].reshape(N, M, Cin))
    s_patch = jnp.concatenate(cols, axis=2)                          # (N, M, K1)

    # Per-tap validity masks for the 3x3 'same' convs (host-side constants).
    mi = np.arange(M) // Wf
    mj = np.arange(M) % Wf
    masks_np = np.zeros((9, M, 1), np.float32)
    for dh in range(3):
        for dw in range(3):
            ok = ((mi + dh - 1 >= 0) & (mi + dh - 1 < Hf) &
                  (mj + dw - 1 >= 0) & (mj + dw - 1 < Wf))
            masks_np[dh * 3 + dw, :, 0] = ok.astype(np.float32)
    masks = jnp.asarray(masks_np)

    # ---- fold inference-mode BN (+ preceding conv bias) into scale/shift ----
    def fold_bn(bn):
        gamma, beta, mean, var = bn
        s = gamma / jnp.sqrt(var + 1e-5)
        return s, beta - mean * s

    sc1, sh1 = fold_bn(p['bn_a1']); sh1 = p['b_xk'] * sc1 + sh1
    sc2, sh2 = fold_bn(p['bn_a2']); sh2 = p['b_act'] * sc2 + sh2
    scc, shc = fold_bn(p['bn_c'])
    scl, shl = fold_bn(p['bn_l'])
    sch = jnp.concatenate([scc, scl])
    shh = jnp.concatenate([p['b_c1'] * scc + shc, p['b_l1'] * scl + shl])

    # ---- weights reshaped for matmuls (rows ordered (kh, kw, ci)) -----------
    wk2d = p['w_xk'].reshape(K1, hidden).astype(f32)
    ws2d = p['w_xs'].reshape(K1, hidden).astype(f32)
    wact2d = p['w_act'].reshape(9 * hidden, hidden).astype(f32)
    wh1 = jnp.concatenate([p['w_c1'], p['w_l1']],
                          axis=3).reshape(9 * hidden, H2).astype(f32)
    wh2_4d = jnp.zeros((3, 3, H2, CPAD), f32)
    wh2_4d = wh2_4d.at[:, :, :hidden, 0:2].set(p['w_c2'])
    wh2_4d = wh2_4d.at[:, :, hidden:, 2:6].set(p['w_l2'])
    wh2 = wh2_4d.reshape(9 * H2, CPAD)
    b2 = (jnp.zeros((1, CPAD), f32)
          .at[0, 0:2].set(p['b_c2']).at[0, 2:6].set(p['b_l2']))

    row = lambda v: v.reshape(1, -1).astype(f32)
    inputs = [masks, t_pad, s_patch,
              wk2d, ws2d, row(sc1), row(sh1),
              wact2d, row(sc2), row(sh2),
              wh1, row(sch), row(shh), wh2, b2]

    def shared(shape):
        nd = len(shape)
        return pl.BlockSpec(tuple(shape), lambda n: (0,) * nd)

    in_specs = ([shared(masks.shape),
                 pl.BlockSpec((None, 8, K1), lambda n: (n, 0, 0)),
                 pl.BlockSpec((None, M, K1), lambda n: (n, 0, 0))]
                + [shared(x.shape) for x in inputs[3:]])

    kern, OFF = _make_fused_kernel(Hf, Wf, hidden, CPAD)
    PADM = M + 2 * OFF

    out = pl.pallas_call(
        kern,
        out_shape=jax.ShapeDtypeStruct((N, M, CPAD), f32),
        grid=(N,),
        in_specs=in_specs,
        out_specs=pl.BlockSpec((None, M, CPAD), lambda n: (n, 0, 0)),
        scratch_shapes=[
            pltpu.VMEM((PADM, hidden), f32),   # haloed 32-channel row buffer
            pltpu.VMEM((PADM, H2), f32),       # haloed 64-channel row buffer
        ],
        compiler_params=pltpu.CompilerParams(
            dimension_semantics=("parallel",)),
    )(*inputs)

    # cols 0:2 -> cls, 2:6 -> loc; back to NCHW like the PyTorch module.
    o = out.reshape(N, Hf, Wf, CPAD)
    cls = jnp.transpose(o[..., 0:2], (0, 3, 1, 2))
    loc = jnp.transpose(o[..., 2:6], (0, 3, 1, 2))
    return cls, loc


# ---------------------------------------------------------------------------
# Parameter init (deterministic, synthetic)
# ---------------------------------------------------------------------------
def init_params(key, in_channels=4, hidden=32, kernacm=5):
    ks = jax.random.split(key, 32)

    def rnd(i, shape, s=0.1):
        return jax.random.normal(ks[i], shape, jnp.float32) * s

    def bn(i, c):
        gamma = 1.0 + 0.1 * jax.random.normal(ks[i], (c,), jnp.float32)
        beta = 0.1 * jax.random.normal(ks[i + 1], (c,), jnp.float32)
        mean = 0.1 * jax.random.normal(ks[i + 2], (c,), jnp.float32)
        var = 0.5 + 0.5 * jnp.abs(jax.random.normal(ks[i + 3], (c,), jnp.float32))
        return (gamma, beta, mean, var)

    p = {}
    p['w_xk'] = rnd(0, (kernacm, kernacm, in_channels, hidden))   # xorr_kernel
    p['b_xk'] = rnd(1, (hidden,))
    p['w_xs'] = rnd(2, (kernacm, kernacm, in_channels, hidden))   # xorr_search
    p['bn_a1'] = bn(3, hidden)                                    # activate BN #0
    p['w_act'] = rnd(7, (3, 3, hidden, hidden))                   # activate conv3x3
    p['b_act'] = rnd(8, (hidden,))
    p['bn_a2'] = bn(9, hidden)                                    # activate BN #3
    p['w_c1'] = rnd(13, (3, 3, hidden, hidden))                   # headcls conv1
    p['b_c1'] = rnd(14, (hidden,))
    p['bn_c'] = bn(15, hidden)
    p['w_c2'] = rnd(19, (3, 3, hidden, 2))                        # headcls conv2
    p['b_c2'] = rnd(20, (2,))
    p['w_l1'] = rnd(21, (3, 3, hidden, hidden))                   # headloc conv1
    p['b_l1'] = rnd(22, (hidden,))
    p['bn_l'] = bn(23, hidden)
    p['w_l2'] = rnd(27, (3, 3, hidden, 4))                        # headloc conv2
    p['b_l2'] = rnd(28, (4,))
    return p


# ---------------------------------------------------------------------------
# Pure-JAX reference (for self-check)
# ---------------------------------------------------------------------------
def _conv_ref(x, w, b=None, padding=0):
    out = jax.lax.conv_general_dilated(
        x, w, (1, 1), [(padding, padding), (padding, padding)],
        dimension_numbers=('NHWC', 'HWIO', 'NHWC'))
    if b is not None:
        out = out + b.reshape(1, 1, 1, -1)
    return out


def _bn_ref(x, bn):
    gamma, beta, mean, var = bn
    return (x - mean) / jnp.sqrt(var + 1e-5) * gamma + beta


def forward_ref(params, kernel_nchw, search_nchw):
    p = params
    k = jnp.transpose(kernel_nchw, (0, 2, 3, 1)).astype(jnp.float32)
    s = jnp.transpose(search_nchw, (0, 2, 3, 1)).astype(jnp.float32)
    kp = _conv_ref(k, p['w_xk'], p['b_xk'])
    sp = _conv_ref(s, p['w_xs'])
    x = jax.nn.relu(_bn_ref(sp + kp, p['bn_a1']))
    feat = jax.nn.relu(_bn_ref(_conv_ref(x, p['w_act'], p['b_act'], 1), p['bn_a2']))
    c = jax.nn.relu(_bn_ref(_conv_ref(feat, p['w_c1'], p['b_c1'], 1), p['bn_c']))
    cls = _conv_ref(c, p['w_c2'], p['b_c2'], 1)
    l = jax.nn.relu(_bn_ref(_conv_ref(feat, p['w_l1'], p['b_l1'], 1), p['bn_l']))
    loc = _conv_ref(l, p['w_l2'], p['b_l2'], 1)
    return (jnp.transpose(cls, (0, 3, 1, 2)),
            jnp.transpose(loc, (0, 3, 1, 2)))


if __name__ == "__main__":
    key = jax.random.PRNGKey(0)
    k_params, k_kernel, k_search = jax.random.split(key, 3)

    in_channels, hidden, kernacm = 4, 32, 5
    params = init_params(k_params, in_channels, hidden, kernacm)

    # NCHW inputs like the PyTorch module: template 5x5, search 12x12
    # -> kernel_part (2,32,1,1), feature 8x8, cls (2,2,8,8), loc (2,4,8,8)
    kernel_in = jax.random.normal(k_kernel, (2, in_channels, 5, 5), jnp.float32)
    search_in = jax.random.normal(k_search, (2, in_channels, 12, 12), jnp.float32)

    cls, loc = jax.jit(depthwise_xcorr_forward)(params, kernel_in, search_in)
    jax.block_until_ready((cls, loc))

    cls_ref, loc_ref = forward_ref(params, kernel_in, search_in)
    assert cls.shape == (2, 2, 8, 8) and loc.shape == (2, 4, 8, 8)
    assert jnp.allclose(cls, cls_ref, atol=2e-3, rtol=2e-3), \
        float(jnp.max(jnp.abs(cls - cls_ref)))
    assert jnp.allclose(loc, loc_ref, atol=2e-3, rtol=2e-3), \
        float(jnp.max(jnp.abs(loc - loc_ref)))

    print("KERNEL_OK")
</pallas_src>

<mosaic_0001>
module attributes {stable_mosaic.version = 11 : i64} {
  func.func @kern(%arg0: i32, %arg1: memref<9x64x1xf32, #tpu.memory_space<vmem>>, %arg2: memref<1x8x100xf32, #tpu.memory_space<vmem>>, %arg3: memref<1x64x100xf32, #tpu.memory_space<vmem>>, %arg4: memref<100x32xf32, #tpu.memory_space<vmem>>, %arg5: memref<100x32xf32, #tpu.memory_space<vmem>>, %arg6: memref<1x32xf32, #tpu.memory_space<vmem>>, %arg7: memref<1x32xf32, #tpu.memory_space<vmem>>, %arg8: memref<288x32xf32, #tpu.memory_space<vmem>>, %arg9: memref<1x32xf32, #tpu.memory_space<vmem>>, %arg10: memref<1x32xf32, #tpu.memory_space<vmem>>, %arg11: memref<288x64xf32, #tpu.memory_space<vmem>>, %arg12: memref<1x64xf32, #tpu.memory_space<vmem>>, %arg13: memref<1x64xf32, #tpu.memory_space<vmem>>, %arg14: memref<576x128xf32, #tpu.memory_space<vmem>>, %arg15: memref<1x128xf32, #tpu.memory_space<vmem>>, %arg16: memref<1x64x128xf32, #tpu.memory_space<vmem>>, %arg17: memref<96x32xf32, #tpu.memory_space<vmem>>, %arg18: memref<96x64xf32, #tpu.memory_space<vmem>>) attributes {dimension_semantics = [#tpu.dimension_semantics<parallel>], iteration_bounds = array<i64: 2>, scalar_prefetch = 0 : i64, scratch_operands = 2 : i64, tpu.core_type = #tpu.core_type<tc>, window_params = [{pipeline_mode = #tpu.pipeline_mode<synchronous>, transform_indices = @transform_0, window_bounds = array<i64: 9, 64, 1>}, {transform_indices = @transform_1, window_bounds = array<i64: 1, 8, 100>}, {transform_indices = @transform_2, window_bounds = array<i64: 1, 64, 100>}, {pipeline_mode = #tpu.pipeline_mode<synchronous>, transform_indices = @transform_3, window_bounds = array<i64: 100, 32>}, {pipeline_mode = #tpu.pipeline_mode<synchronous>, transform_indices = @transform_4, window_bounds = array<i64: 100, 32>}, {pipeline_mode = #tpu.pipeline_mode<synchronous>, transform_indices = @transform_5, window_bounds = array<i64: 1, 32>}, {pipeline_mode = #tpu.pipeline_mode<synchronous>, transform_indices = @transform_6, window_bounds = array<i64: 1, 32>}, {pipeline_mode = #tpu.pipeline_mode<synchronous>, transform_indices = @transform_7, window_bounds = array<i64: 288, 32>}, {pipeline_mode = #tpu.pipeline_mode<synchronous>, transform_indices = @transform_8, window_bounds = array<i64: 1, 32>}, {pipeline_mode = #tpu.pipeline_mode<synchronous>, transform_indices = @transform_9, window_bounds = array<i64: 1, 32>}, {pipeline_mode = #tpu.pipeline_mode<synchronous>, transform_indices = @transform_10, window_bounds = array<i64: 288, 64>}, {pipeline_mode = #tpu.pipeline_mode<synchronous>, transform_indices = @transform_11, window_bounds = array<i64: 1, 64>}, {pipeline_mode = #tpu.pipeline_mode<synchronous>, transform_indices = @transform_12, window_bounds = array<i64: 1, 64>}, {pipeline_mode = #tpu.pipeline_mode<synchronous>, transform_indices = @transform_13, window_bounds = array<i64: 576, 128>}, {pipeline_mode = #tpu.pipeline_mode<synchronous>, transform_indices = @transform_14, window_bounds = array<i64: 1, 128>}, {transform_indices = @transform_15, window_bounds = array<i64: 1, 64, 128>}]} {
    %cst = arith.constant 0.000000e+00 : f32
    %0 = vector.broadcast %cst : f32 to vector<96x32xf32>
    %c0 = arith.constant 0 : index
    %c0_0 = arith.constant 0 : index
    %1 = vector.load %arg17[%c0, %c0_0] : memref<96x32xf32, #tpu.memory_space<vmem>>, vector<96x32xf32>
    tpu.vector_store %arg17[%c0, %c0_0], %0 {strides = array<i32>} : memref<96x32xf32, #tpu.memory_space<vmem>>, vector<96x32xf32>,
    %cst_1 = arith.constant 0.000000e+00 : f32
    %2 = vector.broadcast %cst_1 : f32 to vector<96x64xf32>
    %c0_2 = arith.constant 0 : index
    %c0_3 = arith.constant 0 : index
    %3 = vector.load %arg18[%c0_2, %c0_3] : memref<96x64xf32, #tpu.memory_space<vmem>>, vector<96x64xf32>
    tpu.vector_store %arg18[%c0_2, %c0_3], %2 {strides = array<i32>} : memref<96x64xf32, #tpu.memory_space<vmem>>, vector<96x64xf32>,
    %c0_4 = arith.constant 0 : index
    %c0_5 = arith.constant 0 : index
    %c0_6 = arith.constant 0 : index
    %4 = vector.load %arg2[%c0_4, %c0_5, %c0_6] : memref<1x8x100xf32, #tpu.memory_space<vmem>>, vector<1x8x100xf32>
    %5 = vector.shape_cast %4 : vector<1x8x100xf32> to vector<8x100xf32>
    %c0_7 = arith.constant 0 : index
    %c0_8 = arith.constant 0 : index
    %6 = vector.load %arg4[%c0_7, %c0_8] : memref<100x32xf32, #tpu.memory_space<vmem>>, vector<100x32xf32>
    %cst_9 = arith.constant dense<0.000000e+00> : vector<8x32xf32>
    %7 = tpu.matmul %5, %6, %cst_9 {dimension_numbers = #tpu.dot_dimension_numbers<[1], [0], [0], [1], [0, 0, 1, 1], [], []>} : vector<8x100xf32>, vector<100x32xf32>, vector<8x32xf32> -> vector<8x32xf32>
    %8 = vector.extract_strided_slice %7 {offsets = [0, 0], sizes = [1, 32], strides = [1, 1]} : vector<8x32xf32> to vector<1x32xf32>
    %c0_10 = arith.constant 0 : index
    %c0_11 = arith.constant 0 : index
    %c0_12 = arith.constant 0 : index
    %9 = vector.load %arg3[%c0_10, %c0_11, %c0_12] : memref<1x64x100xf32, #tpu.memory_space<vmem>>, vector<1x64x100xf32>
    %10 = vector.shape_cast %9 : vector<1x64x100xf32> to vector<64x100xf32>
    %c0_13 = arith.constant 0 : index
    %c0_14 = arith.constant 0 : index
    %11 = vector.load %arg5[%c0_13, %c0_14] : memref<100x32xf32, #tpu.memory_space<vmem>>, vector<100x32xf32>
    %cst_15 = arith.constant dense<0.000000e+00> : vector<64x32xf32>
    %12 = tpu.matmul %10, %11, %cst_15 {dimension_numbers = #tpu.dot_dimension_numbers<[1], [0], [0], [1], [0, 0, 1, 1], [], []>} : vector<64x100xf32>, vector<100x32xf32>, vector<64x32xf32> -> vector<64x32xf32>
    %13 = vector.broadcast %8 : vector<1x32xf32> to vector<64x32xf32>
    %14 = arith.addf %12, %13 : vector<64x32xf32>
    %c0_16 = arith.constant 0 : index
    %c0_17 = arith.constant 0 : index
    %15 = vector.load %arg6[%c0_16, %c0_17] : memref<1x32xf32, #tpu.memory_space<vmem>>, vector<1x32xf32>
    %16 = vector.broadcast %15 : vector<1x32xf32> to vector<64x32xf32>
    %17 = arith.mulf %14, %16 : vector<64x32xf32>
    %c0_18 = arith.constant 0 : index
    %c0_19 = arith.constant 0 : index
    %18 = vector.load %arg7[%c0_18, %c0_19] : memref<1x32xf32, #tpu.memory_space<vmem>>, vector<1x32xf32>
    %19 = vector.broadcast %18 : vector<1x32xf32> to vector<64x32xf32>
    %20 = arith.addf %17, %19 : vector<64x32xf32>
    %cst_20 = arith.constant 0.000000e+00 : f32
    %21 = vector.broadcast %cst_20 : f32 to vector<64x32xf32>
    %22 = arith.maximumf %20, %21 : vector<64x32xf32>
    %c16 = arith.constant 16 : index
    %c0_21 = arith.constant 0 : index
    %23 = vector.load %arg17[%c16, %c0_21] : memref<96x32xf32, #tpu.memory_space<vmem>>, vector<64x32xf32>
    tpu.vector_store %arg17[%c16, %c0_21], %22 {strides = array<i32>} : memref<96x32xf32, #tpu.memory_space<vmem>>, vector<64x32xf32>,
    %cst_22 = arith.constant 0.000000e+00 : f32
    %24 = vector.broadcast %cst_22 : f32 to vector<64x32xf32>
    %c7 = arith.constant 7 : index
    %c0_23 = arith.constant 0 : index
    %25 = vector.load %arg17[%c7, %c0_23] : memref<96x32xf32, #tpu.memory_space<vmem>>, vector<64x32xf32>
    %c0_24 = arith.constant 0 : index
    %c0_25 = arith.constant 0 : index
    %c0_26 = arith.constant 0 : index
    %26 = vector.load %arg1[%c0_24, %c0_25, %c0_26] : memref<9x64x1xf32, #tpu.memory_space<vmem>>, vector<1x64x1xf32>
    %27 = vector.shape_cast %26 : vector<1x64x1xf32> to vector<64x1xf32>
    %28 = vector.broadcast %27 : vector<64x1xf32> to vector<64x32xf32>
    %29 = arith.mulf %25, %28 : vector<64x32xf32>
    %c0_27 = arith.constant 0 : index
    %c0_28 = arith.constant 0 : index
    %30 = vector.load %arg8[%c0_27, %c0_28] : memref<288x32xf32, #tpu.memory_space<vmem>>, vector<32x32xf32>
    %cst_29 = arith.constant dense<0.000000e+00> : vector<64x32xf32>
    %31 = tpu.matmul %29, %30, %cst_29 {dimension_numbers = #tpu.dot_dimension_numbers<[1], [0], [0], [1], [0, 0, 1, 1], [], []>} : vector<64x32xf32>, vector<32x32xf32>, vector<64x32xf32> -> vector<64x32xf32>
    %32 = arith.addf %24, %31 : vector<64x32xf32>
    %c8 = arith.constant 8 : index
    %c0_30 = arith.constant 0 : index
    %33 = vector.load %arg17[%c8, %c0_30] : memref<96x32xf32, #tpu.memory_space<vmem>>, vector<64x32xf32>
    %c1 = arith.constant 1 : index
    %c0_31 = arith.constant 0 : index
    %c0_32 = arith.constant 0 : index
    %34 = vector.load %arg1[%c1, %c0_31, %c0_32] : memref<9x64x1xf32, #tpu.memory_space<vmem>>, vector<1x64x1xf32>
    %35 = vector.shape_cast %34 : vector<1x64x1xf32> to vector<64x1xf32>
    %36 = vector.broadcast %35 : vector<64x1xf32> to vector<64x32xf32>
    %37 = arith.mulf %33, %36 : vector<64x32xf32>
    %c32 = arith.constant 32 : index
    %c0_33 = arith.constant 0 : index
    %38 = vector.load %arg8[%c32, %c0_33] : memref<288x32xf32, #tpu.memory_space<vmem>>, vector<32x32xf32>
    %cst_34 = arith.constant dense<0.000000e+00> : vector<64x32xf32>
    %39 = tpu.matmul %37, %38, %cst_34 {dimension_numbers = #tpu.dot_dimension_numbers<[1], [0], [0], [1], [0, 0, 1, 1], [], []>} : vector<64x32xf32>, vector<32x32xf32>, vector<64x32xf32> -> vector<64x32xf32>
    %40 = arith.addf %32, %39 : vector<64x32xf32>
    %c9 = arith.constant 9 : index
    %c0_35 = arith.constant 0 : index
    %41 = vector.load %arg17[%c9, %c0_35] : memref<96x32xf32, #tpu.memory_space<vmem>>, vector<64x32xf32>
    %c2 = arith.constant 2 : index
    %c0_36 = arith.constant 0 : index
    %c0_37 = arith.constant 0 : index
    %42 = vector.load %arg1[%c2, %c0_36, %c0_37] : memref<9x64x1xf32, #tpu.memory_space<vmem>>, vector<1x64x1xf32>
    %43 = vector.shape_cast %42 : vector<1x64x1xf32> to vector<64x1xf32>
    %44 = vector.broadcast %43 : vector<64x1xf32> to vector<64x32xf32>
    %45 = arith.mulf %41, %44 : vector<64x32xf32>
    %c64 = arith.constant 64 : index
    %c0_38 = arith.constant 0 : index
    %46 = vector.load %arg8[%c64, %c0_38] : memref<288x32xf32, #tpu.memory_space<vmem>>, vector<32x32xf32>
    %cst_39 = arith.constant dense<0.000000e+00> : vector<64x32xf32>
    %47 = tpu.matmul %45, %46, %cst_39 {dimension_numbers = #tpu.dot_dimension_numbers<[1], [0], [0], [1], [0, 0, 1, 1], [], []>} : vector<64x32xf32>, vector<32x32xf32>, vector<64x32xf32> -> vector<64x32xf32>
    %48 = arith.addf %40, %47 : vector<64x32xf32>
    %c15 = arith.constant 15 : index
    %c0_40 = arith.constant 0 : index
    %49 = vector.load %arg17[%c15, %c0_40] : memref<96x32xf32, #tpu.memory_space<vmem>>, vector<64x32xf32>
    %c3 = arith.constant 3 : index
    %c0_41 = arith.constant 0 : index
    %c0_42 = arith.constant 0 : index
    %50 = vector.load %arg1[%c3, %c0_41, %c0_42] : memref<9x64x1xf32, #tpu.memory_space<vmem>>, vector<1x64x1xf32>
    %51 = vector.shape_cast %50 : vector<1x64x1xf32> to vector<64x1xf32>
    %52 = vector.broadcast %51 : vector<64x1xf32> to vector<64x32xf32>
    %53 = arith.mulf %49, %52 : vector<64x32xf32>
    %c96 = arith.constant 96 : index
    %c0_43 = arith.constant 0 : index
    %54 = vector.load %arg8[%c96, %c0_43] : memref<288x32xf32, #tpu.memory_space<vmem>>, vector<32x32xf32>
    %cst_44 = arith.constant dense<0.000000e+00> : vector<64x32xf32>
    %55 = tpu.matmul %53, %54, %cst_44 {dimension_numbers = #tpu.dot_dimension_numbers<[1], [0], [0], [1], [0, 0, 1, 1], [], []>} : vector<64x32xf32>, vector<32x32xf32>, vector<64x32xf32> -> vector<64x32xf32>
    %56 = arith.addf %48, %55 : vector<64x32xf32>
    %c16_45 = arith.constant 16 : index
    %c0_46 = arith.constant 0 : index
    %57 = vector.load %arg17[%c16_45, %c0_46] : memref<96x32xf32, #tpu.memory_space<vmem>>, vector<64x32xf32>
    %c128 = arith.constant 128 : index
    %c0_47 = arith.constant 0 : index
    %58 = vector.load %arg8[%c128, %c0_47] : memref<288x32xf32, #tpu.memory_space<vmem>>, vector<32x32xf32>
    %cst_48 = arith.constant dense<0.000000e+00> : vector<64x32xf32>
    %59 = tpu.matmul %57, %58, %cst_48 {dimension_numbers = #tpu.dot_dimension_numbers<[1], [0], [0], [1], [0, 0, 1, 1], [], []>} : vector<64x32xf32>, vector<32x32xf32>, vector<64x32xf32> -> vector<64x32xf32>
    %60 = arith.addf %56, %59 : vector<64x32xf32>
    %c17 = arith.constant 17 : index
    %c0_49 = arith.constant 0 : index
    %61 = vector.load %arg17[%c17, %c0_49] : memref<96x32xf32, #tpu.memory_space<vmem>>, vector<64x32xf32>
    %c5 = arith.constant 5 : index
    %c0_50 = arith.constant 0 : index
    %c0_51 = arith.constant 0 : index
    %62 = vector.load %arg1[%c5, %c0_50, %c0_51] : memref<9x64x1xf32, #tpu.memory_space<vmem>>, vector<1x64x1xf32>
    %63 = vector.shape_cast %62 : vector<1x64x1xf32> to vector<64x1xf32>
    %64 = vector.broadcast %63 : vector<64x1xf32> to vector<64x32xf32>
    %65 = arith.mulf %61, %64 : vector<64x32xf32>
    %c160 = arith.constant 160 : index
    %c0_52 = arith.constant 0 : index
    %66 = vector.load %arg8[%c160, %c0_52] : memref<288x32xf32, #tpu.memory_space<vmem>>, vector<32x32xf32>
    %cst_53 = arith.constant dense<0.000000e+00> : vector<64x32xf32>
    %67 = tpu.matmul %65, %66, %cst_53 {dimension_numbers = #tpu.dot_dimension_numbers<[1], [0], [0], [1], [0, 0, 1, 1], [], []>} : vector<64x32xf32>, vector<32x32xf32>, vector<64x32xf32> -> vector<64x32xf32>
    %68 = arith.addf %60, %67 : vector<64x32xf32>
    %c23 = arith.constant 23 : index
    %c0_54 = arith.constant 0 : index
    %69 = vector.load %arg17[%c23, %c0_54] : memref<96x32xf32, #tpu.memory_space<vmem>>, vector<64x32xf32>
    %c6 = arith.constant 6 : index
    %c0_55 = arith.constant 0 : index
    %c0_56 = arith.constant 0 : index
    %70 = vector.load %arg1[%c6, %c0_55, %c0_56] : memref<9x64x1xf32, #tpu.memory_space<vmem>>, vector<1x64x1xf32>
    %71 = vector.shape_cast %70 : vector<1x64x1xf32> to vector<64x1xf32>
    %72 = vector.broadcast %71 : vector<64x1xf32> to vector<64x32xf32>
    %73 = arith.mulf %69, %72 : vector<64x32xf32>
    %c192 = arith.constant 192 : index
    %c0_57 = arith.constant 0 : index
    %74 = vector.load %arg8[%c192, %c0_57] : memref<288x32xf32, #tpu.memory_space<vmem>>, vector<32x32xf32>
    %cst_58 = arith.constant dense<0.000000e+00> : vector<64x32xf32>
    %75 = tpu.matmul %73, %74, %cst_58 {dimension_numbers = #tpu.dot_dimension_numbers<[1], [0], [0], [1], [0, 0, 1, 1], [], []>} : vector<64x32xf32>, vector<32x32xf32>, vector<64x32xf32> -> vector<64x32xf32>
    %76 = arith.addf %68, %75 : vector<64x32xf32>
    %c24 = arith.constant 24 : index
    %c0_59 = arith.constant 0 : index
    %77 = vector.load %arg17[%c24, %c0_59] : memref<96x32xf32, #tpu.memory_space<vmem>>, vector<64x32xf32>
    %c7_60 = arith.constant 7 : index
    %c0_61 = arith.constant 0 : index
    %c0_62 = arith.constant 0 : index
    %78 = vector.load %arg1[%c7_60, %c0_61, %c0_62] : memref<9x64x1xf32, #tpu.memory_space<vmem>>, vector<1x64x1xf32>
    %79 = vector.shape_cast %78 : vector<1x64x1xf32> to vector<64x1xf32>
    %80 = vector.broadcast %79 : vector<64x1xf32> to vector<64x32xf32>
    %81 = arith.mulf %77, %80 : vector<64x32xf32>
    %c224 = arith.constant 224 : index
    %c0_63 = arith.constant 0 : index
    %82 = vector.load %arg8[%c224, %c0_63] : memref<288x32xf32, #tpu.memory_space<vmem>>, vector<32x32xf32>
    %cst_64 = arith.constant dense<0.000000e+00> : vector<64x32xf32>
    %83 = tpu.matmul %81, %82, %cst_64 {dimension_numbers = #tpu.dot_dimension_numbers<[1], [0], [0], [1], [0, 0, 1, 1], [], []>} : vector<64x32xf32>, vector<32x32xf32>, vector<64x32xf32> -> vector<64x32xf32>
    %84 = arith.addf %76, %83 : vector<64x32xf32>
    %c25 = arith.constant 25 : index
    %c0_65 = arith.constant 0 : index
    %85 = vector.load %arg17[%c25, %c0_65] : memref<96x32xf32, #tpu.memory_space<vmem>>, vector<64x32xf32>
    %c8_66 = arith.constant 8 : index
    %c0_67 = arith.constant 0 : index
    %c0_68 = arith.constant 0 : index
    %86 = vector.load %arg1[%c8_66, %c0_67, %c0_68] : memref<9x64x1xf32, #tpu.memory_space<vmem>>, vector<1x64x1xf32>
    %87 = vector.shape_cast %86 : vector<1x64x1xf32> to vector<64x1xf32>
    %88 = vector.broadcast %87 : vector<64x1xf32> to vector<64x32xf32>
    %89 = arith.mulf %85, %88 : vector<64x32xf32>
    %c256 = arith.constant 256 : index
    %c0_69 = arith.constant 0 : index
    %90 = vector.load %arg8[%c256, %c0_69] : memref<288x32xf32, #tpu.memory_space<vmem>>, vector<32x32xf32>
    %cst_70 = arith.constant dense<0.000000e+00> : vector<64x32xf32>
    %91 = tpu.matmul %89, %90, %cst_70 {dimension_numbers = #tpu.dot_dimension_numbers<[1], [0], [0], [1], [0, 0, 1, 1], [], []>} : vector<64x32xf32>, vector<32x32xf32>, vector<64x32xf32> -> vector<64x32xf32>
    %92 = arith.addf %84, %91 : vector<64x32xf32>
    %c0_71 = arith.constant 0 : index
    %c0_72 = arith.constant 0 : index
    %93 = vector.load %arg9[%c0_71, %c0_72] : memref<1x32xf32, #tpu.memory_space<vmem>>, vector<1x32xf32>
    %94 = vector.broadcast %93 : vector<1x32xf32> to vector<64x32xf32>
    %95 = arith.mulf %92, %94 : vector<64x32xf32>
    %c0_73 = arith.constant 0 : index
    %c0_74 = arith.constant 0 : index
    %96 = vector.load %arg10[%c0_73, %c0_74] : memref<1x32xf32, #tpu.memory_space<vmem>>, vector<1x32xf32>
    %97 = vector.broadcast %96 : vector<1x32xf32> to vector<64x32xf32>
    %98 = arith.addf %95, %97 : vector<64x32xf32>
    %cst_75 = arith.constant 0.000000e+00 : f32
    %99 = vector.broadcast %cst_75 : f32 to vector<64x32xf32>
    %100 = arith.maximumf %98, %99 : vector<64x32xf32>
    %c16_76 = arith.constant 16 : index
    %c0_77 = arith.constant 0 : index
    %101 = vector.load %arg17[%c16_76, %c0_77] : memref<96x32xf32, #tpu.memory_space<vmem>>, vector<64x32xf32>
    tpu.vector_store %arg17[%c16_76, %c0_77], %100 {strides = array<i32>} : memref<96x32xf32, #tpu.memory_space<vmem>>, vector<64x32xf32>,
    %cst_78 = arith.constant 0.000000e+00 : f32
    %102 = vector.broadcast %cst_78 : f32 to vector<64x64xf32>
    %c7_79 = arith.constant 7 : index
    %c0_80 = arith.constant 0 : index
    %103 = vector.load %arg17[%c7_79, %c0_80] : memref<96x32xf32, #tpu.memory_space<vmem>>, vector<64x32xf32>
    %c0_81 = arith.constant 0 : index
    %c0_82 = arith.constant 0 : index
    %c0_83 = arith.constant 0 : index
    %104 = vector.load %arg1[%c0_81, %c0_82, %c0_83] : memref<9x64x1xf32, #tpu.memory_space<vmem>>, vector<1x64x1xf32>
    %105 = vector.shape_cast %104 : vector<1x64x1xf32> to vector<64x1xf32>
    %106 = vector.broadcast %105 : vector<64x1xf32> to vector<64x32xf32>
    %107 = arith.mulf %103, %106 : vector<64x32xf32>
    %c0_84 = arith.constant 0 : index
    %c0_85 = arith.constant 0 : index
    %108 = vector.load %arg11[%c0_84, %c0_85] : memref<288x64xf32, #tpu.memory_space<vmem>>, vector<32x64xf32>
    %cst_86 = arith.constant dense<0.000000e+00> : vector<64x64xf32>
    %109 = tpu.matmul %107, %108, %cst_86 {dimension_numbers = #tpu.dot_dimension_numbers<[1], [0], [0], [1], [0, 0, 1, 1], [], []>} : vector<64x32xf32>, vector<32x64xf32>, vector<64x64xf32> -> vector<64x64xf32>
    %110 = arith.addf %102, %109 : vector<64x64xf32>
    %c8_87 = arith.constant 8 : index
    %c0_88 = arith.constant 0 : index
    %111 = vector.load %arg17[%c8_87, %c0_88] : memref<96x32xf32, #tpu.memory_space<vmem>>, vector<64x32xf32>
    %c1_89 = arith.constant 1 : index
    %c0_90 = arith.constant 0 : index
    %c0_91 = arith.constant 0 : index
    %112 = vector.load %arg1[%c1_89, %c0_90, %c0_91] : memref<9x64x1xf32, #tpu.memory_space<vmem>>, vector<1x64x1xf32>
    %113 = vector.shape_cast %112 : vector<1x64x1xf32> to vector<64x1xf32>
    %114 = vector.broadcast %113 : vector<64x1xf32> to vector<64x32xf32>
    %115 = arith.mulf %111, %114 : vector<64x32xf32>
    %c32_92 = arith.constant 32 : index
    %c0_93 = arith.constant 0 : index
    %116 = vector.load %arg11[%c32_92, %c0_93] : memref<288x64xf32, #tpu.memory_space<vmem>>, vector<32x64xf32>
    %cst_94 = arith.constant dense<0.000000e+00> : vector<64x64xf32>
    %117 = tpu.matmul %115, %116, %cst_94 {dimension_numbers = #tpu.dot_dimension_numbers<[1], [0], [0], [1], [0, 0, 1, 1], [], []>} : vector<64x32xf32>, vector<32x64xf32>, vector<64x64xf32> -> vector<64x64xf32>
    %118 = arith.addf %110, %117 : vector<64x64xf32>
    %c9_95 = arith.constant 9 : index
    %c0_96 = arith.constant 0 : index
    %119 = vector.load %arg17[%c9_95, %c0_96] : memref<96x32xf32, #tpu.memory_space<vmem>>, vector<64x32xf32>
    %c2_97 = arith.constant 2 : index
    %c0_98 = arith.constant 0 : index
    %c0_99 = arith.constant 0 : index
    %120 = vector.load %arg1[%c2_97, %c0_98, %c0_99] : memref<9x64x1xf32, #tpu.memory_space<vmem>>, vector<1x64x1xf32>
    %121 = vector.shape_cast %120 : vector<1x64x1xf32> to vector<64x1xf32>
    %122 = vector.broadcast %121 : vector<64x1xf32> to vector<64x32xf32>
    %123 = arith.mulf %119, %122 : vector<64x32xf32>
    %c64_100 = arith.constant 64 : index
    %c0_101 = arith.constant 0 : index
    %124 = vector.load %arg11[%c64_100, %c0_101] : memref<288x64xf32, #tpu.memory_space<vmem>>, vector<32x64xf32>
    %cst_102 = arith.constant dense<0.000000e+00> : vector<64x64xf32>
    %125 = tpu.matmul %123, %124, %cst_102 {dimension_numbers = #tpu.dot_dimension_numbers<[1], [0], [0], [1], [0, 0, 1, 1], [], []>} : vector<64x32xf32>, vector<32x64xf32>, vector<64x64xf32> -> vector<64x64xf32>
    %126 = arith.addf %118, %125 : vector<64x64xf32>
    %c15_103 = arith.constant 15 : index
    %c0_104 = arith.constant 0 : index
    %127 = vector.load %arg17[%c15_103, %c0_104] : memref<96x32xf32, #tpu.memory_space<vmem>>, vector<64x32xf32>
    %c3_105 = arith.constant 3 : index
    %c0_106 = arith.constant 0 : index
    %c0_107 = arith.constant 0 : index
    %128 = vector.load %arg1[%c3_105, %c0_106, %c0_107] : memref<9x64x1xf32, #tpu.memory_space<vmem>>, vector<1x64x1xf32>
    %129 = vector.shape_cast %128 : vector<1x64x1xf32> to vector<64x1xf32>
    %130 = vector.broadcast %129 : vector<64x1xf32> to vector<64x32xf32>
    %131 = arith.mulf %127, %130 : vector<64x32xf32>
    %c96_108 = arith.constant 96 : index
    %c0_109 = arith.constant 0 : index
    %132 = vector.load %arg11[%c96_108, %c0_109] : memref<288x64xf32, #tpu.memory_space<vmem>>, vector<32x64xf32>
    %cst_110 = arith.constant dense<0.000000e+00> : vector<64x64xf32>
    %133 = tpu.matmul %131, %132, %cst_110 {dimension_numbers = #tpu.dot_dimension_numbers<[1], [0], [0], [1], [0, 0, 1, 1], [], []>} : vector<64x32xf32>, vector<32x64xf32>, vector<64x64xf32> -> vector<64x64xf32>
    %134 = arith.addf %126, %133 : vector<64x64xf32>
    %c16_111 = arith.constant 16 : index
    %c0_112 = arith.constant 0 : index
    %135 = vector.load %arg17[%c16_111, %c0_112] : memref<96x32xf32, #tpu.memory_space<vmem>>, vector<64x32xf32>
    %c128_113 = arith.constant 128 : index
    %c0_114 = arith.constant 0 : index
    %136 = vector.load %arg11[%c128_113, %c0_114] : memref<288x64xf32, #tpu.memory_space<vmem>>, vector<32x64xf32>
    %cst_115 = arith.constant dense<0.000000e+00> : vector<64x64xf32>
    %137 = tpu.matmul %135, %136, %cst_115 {dimension_numbers = #tpu.dot_dimension_numbers<[1], [0], [0], [1], [0, 0, 1, 1], [], []>} : vector<64x32xf32>, vector<32x64xf32>, vector<64x64xf32> -> vector<64x64xf32>
    %138 = arith.addf %134, %137 : vector<64x64xf32>
    %c17_116 = arith.constant 17 : index
    %c0_117 = arith.constant 0 : index
    %139 = vector.load %arg17[%c17_116, %c0_117] : memref<96x32xf32, #tpu.memory_space<vmem>>, vector<64x32xf32>
    %c5_118 = arith.constant 5 : index
    %c0_119 = arith.constant 0 : index
    %c0_120 = arith.constant 0 : index
    %140 = vector.load %arg1[%c5_118, %c0_119, %c0_120] : memref<9x64x1xf32, #tpu.memory_space<vmem>>, vector<1x64x1xf32>
    %141 = vector.shape_cast %140 : vector<1x64x1xf32> to vector<64x1xf32>
    %142 = vector.broadcast %141 : vector<64x1xf32> to vector<64x32xf32>
    %143 = arith.mulf %139, %142 : vector<64x32xf32>
    %c160_121 = arith.constant 160 : index
    %c0_122 = arith.constant 0 : index
    %144 = vector.load %arg11[%c160_121, %c0_122] : memref<288x64xf32, #tpu.memory_space<vmem>>, vector<32x64xf32>
    %cst_123 = arith.constant dense<0.000000e+00> : vector<64x64xf32>
    %145 = tpu.matmul %143, %144, %cst_123 {dimension_numbers = #tpu.dot_dimension_numbers<[1], [0], [0], [1], [0, 0, 1, 1], [], []>} : vector<64x32xf32>, vector<32x64xf32>, vector<64x64xf32> -> vector<64x64xf32>
    %146 = arith.addf %138, %145 : vector<64x64xf32>
    %c23_124 = arith.constant 23 : index
    %c0_125 = arith.constant 0 : index
    %147 = vector.load %arg17[%c23_124, %c0_125] : memref<96x32xf32, #tpu.memory_space<vmem>>, vector<64x32xf32>
    %c6_126 = arith.constant 6 : index
    %c0_127 = arith.constant 0 : index
    %c0_128 = arith.constant 0 : index
    %148 = vector.load %arg1[%c6_126, %c0_127, %c0_128] : memref<9x64x1xf32, #tpu.memory_space<vmem>>, vector<1x64x1xf32>
    %149 = vector.shape_cast %148 : vector<1x64x1xf32> to vector<64x1xf32>
    %150 = vector.broadcast %149 : vector<64x1xf32> to vector<64x32xf32>
    %151 = arith.mulf %147, %150 : vector<64x32xf32>
    %c192_129 = arith.constant 192 : index
    %c0_130 = arith.constant 0 : index
    %152 = vector.load %arg11[%c192_129, %c0_130] : memref<288x64xf32, #tpu.memory_space<vmem>>, vector<32x64xf32>
    %cst_131 = arith.constant dense<0.000000e+00> : vector<64x64xf32>
    %153 = tpu.matmul %151, %152, %cst_131 {dimension_numbers = #tpu.dot_dimension_numbers<[1], [0], [0], [1], [0, 0, 1, 1], [], []>} : vector<64x32xf32>, vector<32x64xf32>, vector<64x64xf32> -> vector<64x64xf32>
    %154 = arith.addf %146, %153 : vector<64x64xf32>
    %c24_132 = arith.constant 24 : index
    %c0_133 = arith.constant 0 : index
    %155 = vector.load %arg17[%c24_132, %c0_133] : memref<96x32xf32, #tpu.memory_space<vmem>>, vector<64x32xf32>
    %c7_134 = arith.constant 7 : index
    %c0_135 = arith.constant 0 : index
    %c0_136 = arith.constant 0 : index
    %156 = vector.load %arg1[%c7_134, %c0_135, %c0_136] : memref<9x64x1xf32, #tpu.memory_space<vmem>>, vector<1x64x1xf32>
    %157 = vector.shape_cast %156 : vector<1x64x1xf32> to vector<64x1xf32>
    %158 = vector.broadcast %157 : vector<64x1xf32> to vector<64x32xf32>
    %159 = arith.mulf %155, %158 : vector<64x32xf32>
    %c224_137 = arith.constant 224 : index
    %c0_138 = arith.constant 0 : index
    %160 = vector.load %arg11[%c224_137, %c0_138] : memref<288x64xf32, #tpu.memory_space<vmem>>, vector<32x64xf32>
    %cst_139 = arith.constant dense<0.000000e+00> : vector<64x64xf32>
    %161 = tpu.matmul %159, %160, %cst_139 {dimension_numbers = #tpu.dot_dimension_numbers<[1], [0], [0], [1], [0, 0, 1, 1], [], []>} : vector<64x32xf32>, vector<32x64xf32>, vector<64x64xf32> -> vector<64x64xf32>
    %162 = arith.addf %154, %161 : vector<64x64xf32>
    %c25_140 = arith.constant 25 : index
    %c0_141 = arith.constant 0 : index
    %163 = vector.load %arg17[%c25_140, %c0_141] : memref<96x32xf32, #tpu.memory_space<vmem>>, vector<64x32xf32>
    %c8_142 = arith.constant 8 : index
    %c0_143 = arith.constant 0 : index
    %c0_144 = arith.constant 0 : index
    %164 = vector.load %arg1[%c8_142, %c0_143, %c0_144] : memref<9x64x1xf32, #tpu.memory_space<vmem>>, vector<1x64x1xf32>
    %165 = vector.shape_cast %164 : vector<1x64x1xf32> to vector<64x1xf32>
    %166 = vector.broadcast %165 : vector<64x1xf32> to vector<64x32xf32>
    %167 = arith.mulf %163, %166 : vector<64x32xf32>
    %c256_145 = arith.constant 256 : index
    %c0_146 = arith.constant 0 : index
    %168 = vector.load %arg11[%c256_145, %c0_146] : memref<288x64xf32, #tpu.memory_space<vmem>>, vector<32x64xf32>
    %cst_147 = arith.constant dense<0.000000e+00> : vector<64x64xf32>
    %169 = tpu.matmul %167, %168, %cst_147 {dimension_numbers = #tpu.dot_dimension_numbers<[1], [0], [0], [1], [0, 0, 1, 1], [], []>} : vector<64x32xf32>, vector<32x64xf32>, vector<64x64xf32> -> vector<64x64xf32>
    %170 = arith.addf %162, %169 : vector<64x64xf32>
    %c0_148 = arith.constant 0 : index
    %c0_149 = arith.constant 0 : index
    %171 = vector.load %arg12[%c0_148, %c0_149] : memref<1x64xf32, #tpu.memory_space<vmem>>, vector<1x64xf32>
    %172 = vector.broadcast %171 : vector<1x64xf32> to vector<64x64xf32>
    %173 = arith.mulf %170, %172 : vector<64x64xf32>
    %c0_150 = arith.constant 0 : index
    %c0_151 = arith.constant 0 : index
    %174 = vector.load %arg13[%c0_150, %c0_151] : memref<1x64xf32, #tpu.memory_space<vmem>>, vector<1x64xf32>
    %175 = vector.broadcast %174 : vector<1x64xf32> to vector<64x64xf32>
    %176 = arith.addf %173, %175 : vector<64x64xf32>
    %cst_152 = arith.constant 0.000000e+00 : f32
    %177 = vector.broadcast %cst_152 : f32 to vector<64x64xf32>
    %178 = arith.maximumf %176, %177 : vector<64x64xf32>
    %c16_153 = arith.constant 16 : index
    %c0_154 = arith.constant 0 : index
    %179 = vector.load %arg18[%c16_153, %c0_154] : memref<96x64xf32, #tpu.memory_space<vmem>>, vector<64x64xf32>
    tpu.vector_store %arg18[%c16_153, %c0_154], %178 {strides = array<i32>} : memref<96x64xf32, #tpu.memory_space<vmem>>, vector<64x64xf32>,
    %cst_155 = arith.constant 0.000000e+00 : f32
    %180 = vector.broadcast %cst_155 : f32 to vector<64x128xf32>
    %c7_156 = arith.constant 7 : index
    %c0_157 = arith.constant 0 : index
    %181 = vector.load %arg18[%c7_156, %c0_157] : memref<96x64xf32, #tpu.memory_space<vmem>>, vector<64x64xf32>
    %c0_158 = arith.constant 0 : index
    %c0_159 = arith.constant 0 : index
    %c0_160 = arith.constant 0 : index
    %182 = vector.load %arg1[%c0_158, %c0_159, %c0_160] : memref<9x64x1xf32, #tpu.memory_space<vmem>>, vector<1x64x1xf32>
    %183 = vector.shape_cast %182 : vector<1x64x1xf32> to vector<64x1xf32>
    %184 = vector.broadcast %183 : vector<64x1xf32> to vector<64x64xf32>
    %185 = arith.mulf %181, %184 : vector<64x64xf32>
    %c0_161 = arith.constant 0 : index
    %c0_162 = arith.constant 0 : index
    %186 = vector.load %arg14[%c0_161, %c0_162] : memref<576x128xf32, #tpu.memory_space<vmem>>, vector<64x128xf32>
    %cst_163 = arith.constant dense<0.000000e+00> : vector<64x128xf32>
    %187 = tpu.matmul %185, %186, %cst_163 {dimension_numbers = #tpu.dot_dimension_numbers<[1], [0], [0], [1], [0, 0, 1, 1], [], []>} : vector<64x64xf32>, vector<64x128xf32>, vector<64x128xf32> -> vector<64x128xf32>
    %188 = arith.addf %180, %187 : vector<64x128xf32>
    %c8_164 = arith.constant 8 : index
    %c0_165 = arith.constant 0 : index
    %189 = vector.load %arg18[%c8_164, %c0_165] : memref<96x64xf32, #tpu.memory_space<vmem>>, vector<64x64xf32>
    %c1_166 = arith.constant 1 : index
    %c0_167 = arith.constant 0 : index
    %c0_168 = arith.constant 0 : index
    %190 = vector.load %arg1[%c1_166, %c0_167, %c0_168] : memref<9x64x1xf32, #tpu.memory_space<vmem>>, vector<1x64x1xf32>
    %191 = vector.shape_cast %190 : vector<1x64x1xf32> to vector<64x1xf32>
    %192 = vector.broadcast %191 : vector<64x1xf32> to vector<64x64xf32>
    %193 = arith.mulf %189, %192 : vector<64x64xf32>
    %c64_169 = arith.constant 64 : index
    %c0_170 = arith.constant 0 : index
    %194 = vector.load %arg14[%c64_169, %c0_170] : memref<576x128xf32, #tpu.memory_space<vmem>>, vector<64x128xf32>
    %cst_171 = arith.constant dense<0.000000e+00> : vector<64x128xf32>
    %195 = tpu.matmul %193, %194, %cst_171 {dimension_numbers = #tpu.dot_dimension_numbers<[1], [0], [0], [1], [0, 0, 1, 1], [], []>} : vector<64x64xf32>, vector<64x128xf32>, vector<64x128xf32> -> vector<64x128xf32>
    %196 = arith.addf %188, %195 : vector<64x128xf32>
    %c9_172 = arith.constant 9 : index
    %c0_173 = arith.constant 0 : index
    %197 = vector.load %arg18[%c9_172, %c0_173] : memref<96x64xf32, #tpu.memory_space<vmem>>, vector<64x64xf32>
    %c2_174 = arith.constant 2 : index
    %c0_175 = arith.constant 0 : index
    %c0_176 = arith.constant 0 : index
    %198 = vector.load %arg1[%c2_174, %c0_175, %c0_176] : memref<9x64x1xf32, #tpu.memory_space<vmem>>, vector<1x64x1xf32>
    %199 = vector.shape_cast %198 : vector<1x64x1xf32> to vector<64x1xf32>
    %200 = vector.broadcast %199 : vector<64x1xf32> to vector<64x64xf32>
    %201 = arith.mulf %197, %200 : vector<64x64xf32>
    %c128_177 = arith.constant 128 : index
    %c0_178 = arith.constant 0 : index
    %202 = vector.load %arg14[%c128_177, %c0_178] : memref<576x128xf32, #tpu.memory_space<vmem>>, vector<64x128xf32>
    %cst_179 = arith.constant dense<0.000000e+00> : vector<64x128xf32>
    %203 = tpu.matmul %201, %202, %cst_179 {dimension_numbers = #tpu.dot_dimension_numbers<[1], [0], [0], [1], [0, 0, 1, 1], [], []>} : vector<64x64xf32>, vector<64x128xf32>, vector<64x128xf32> -> vector<64x128xf32>
    %204 = arith.addf %196, %203 : vector<64x128xf32>
    %c15_180 = arith.constant 15 : index
    %c0_181 = arith.constant 0 : index
    %205 = vector.load %arg18[%c15_180, %c0_181] : memref<96x64xf32, #tpu.memory_space<vmem>>, vector<64x64xf32>
    %c3_182 = arith.constant 3 : index
    %c0_183 = arith.constant 0 : index
    %c0_184 = arith.constant 0 : index
    %206 = vector.load %arg1[%c3_182, %c0_183, %c0_184] : memref<9x64x1xf32, #tpu.memory_space<vmem>>, vector<1x64x1xf32>
    %207 = vector.shape_cast %206 : vector<1x64x1xf32> to vector<64x1xf32>
    %208 = vector.broadcast %207 : vector<64x1xf32> to vector<64x64xf32>
    %209 = arith.mulf %205, %208 : vector<64x64xf32>
    %c192_185 = arith.constant 192 : index
    %c0_186 = arith.constant 0 : index
    %210 = vector.load %arg14[%c192_185, %c0_186] : memref<576x128xf32, #tpu.memory_space<vmem>>, vector<64x128xf32>
    %cst_187 = arith.constant dense<0.000000e+00> : vector<64x128xf32>
    %211 = tpu.matmul %209, %210, %cst_187 {dimension_numbers = #tpu.dot_dimension_numbers<[1], [0], [0], [1], [0, 0, 1, 1], [], []>} : vector<64x64xf32>, vector<64x128xf32>, vector<64x128xf32> -> vector<64x128xf32>
    %212 = arith.addf %204, %211 : vector<64x128xf32>
    %c16_188 = arith.constant 16 : index
    %c0_189 = arith.constant 0 : index
    %213 = vector.load %arg18[%c16_188, %c0_189] : memref<96x64xf32, #tpu.memory_space<vmem>>, vector<64x64xf32>
    %c256_190 = arith.constant 256 : index
    %c0_191 = arith.constant 0 : index
    %214 = vector.load %arg14[%c256_190, %c0_191] : memref<576x128xf32, #tpu.memory_space<vmem>>, vector<64x128xf32>
    %cst_192 = arith.constant dense<0.000000e+00> : vector<64x128xf32>
    %215 = tpu.matmul %213, %214, %cst_192 {dimension_numbers = #tpu.dot_dimension_numbers<[1], [0], [0], [1], [0, 0, 1, 1], [], []>} : vector<64x64xf32>, vector<64x128xf32>, vector<64x128xf32> -> vector<64x128xf32>
    %216 = arith.addf %212, %215 : vector<64x128xf32>
    %c17_193 = arith.constant 17 : index
    %c0_194 = arith.constant 0 : index
    %217 = vector.load %arg18[%c17_193, %c0_194] : memref<96x64xf32, #tpu.memory_space<vmem>>, vector<64x64xf32>
    %c5_195 = arith.constant 5 : index
    %c0_196 = arith.constant 0 : index
    %c0_197 = arith.constant 0 : index
    %218 = vector.load %arg1[%c5_195, %c0_196, %c0_197] : memref<9x64x1xf32, #tpu.memory_space<vmem>>, vector<1x64x1xf32>
    %219 = vector.shape_cast %218 : vector<1x64x1xf32> to vector<64x1xf32>
    %220 = vector.broadcast %219 : vector<64x1xf32> to vector<64x64xf32>
    %221 = arith.mulf %217, %220 : vector<64x64xf32>
    %c320 = arith.constant 320 : index
    %c0_198 = arith.constant 0 : index
    %222 = vector.load %arg14[%c320, %c0_198] : memref<576x128xf32, #tpu.memory_space<vmem>>, vector<64x128xf32>
    %cst_199 = arith.constant dense<0.000000e+00> : vector<64x128xf32>
    %223 = tpu.matmul %221, %222, %cst_199 {dimension_numbers = #tpu.dot_dimension_numbers<[1], [0], [0], [1], [0, 0, 1, 1], [], []>} : vector<64x64xf32>, vector<64x128xf32>, vector<64x128xf32> -> vector<64x128xf32>
    %224 = arith.addf %216, %223 : vector<64x128xf32>
    %c23_200 = arith.constant 23 : index
    %c0_201 = arith.constant 0 : index
    %225 = vector.load %arg18[%c23_200, %c0_201] : memref<96x64xf32, #tpu.memory_space<vmem>>, vector<64x64xf32>
    %c6_202 = arith.constant 6 : index
    %c0_203 = arith.constant 0 : index
    %c0_204 = arith.constant 0 : index
    %226 = vector.load %arg1[%c6_202, %c0_203, %c0_204] : memref<9x64x1xf32, #tpu.memory_space<vmem>>, vector<1x64x1xf32>
    %227 = vector.shape_cast %226 : vector<1x64x1xf32> to vector<64x1xf32>
    %228 = vector.broadcast %227 : vector<64x1xf32> to vector<64x64xf32>
    %229 = arith.mulf %225, %228 : vector<64x64xf32>
    %c384 = arith.constant 384 : index
    %c0_205 = arith.constant 0 : index
    %230 = vector.load %arg14[%c384, %c0_205] : memref<576x128xf32, #tpu.memory_space<vmem>>, vector<64x128xf32>
    %cst_206 = arith.constant dense<0.000000e+00> : vector<64x128xf32>
    %231 = tpu.matmul %229, %230, %cst_206 {dimension_numbers = #tpu.dot_dimension_numbers<[1], [0], [0], [1], [0, 0, 1, 1], [], []>} : vector<64x64xf32>, vector<64x128xf32>, vector<64x128xf32> -> vector<64x128xf32>
    %232 = arith.addf %224, %231 : vector<64x128xf32>
    %c24_207 = arith.constant 24 : index
    %c0_208 = arith.constant 0 : index
    %233 = vector.load %arg18[%c24_207, %c0_208] : memref<96x64xf32, #tpu.memory_space<vmem>>, vector<64x64xf32>
    %c7_209 = arith.constant 7 : index
    %c0_210 = arith.constant 0 : index
    %c0_211 = arith.constant 0 : index
    %234 = vector.load %arg1[%c7_209, %c0_210, %c0_211] : memref<9x64x1xf32, #tpu.memory_space<vmem>>, vector<1x64x1xf32>
    %235 = vector.shape_cast %234 : vector<1x64x1xf32> to vector<64x1xf32>
    %236 = vector.broadcast %235 : vector<64x1xf32> to vector<64x64xf32>
    %237 = arith.mulf %233, %236 : vector<64x64xf32>
    %c448 = arith.constant 448 : index
    %c0_212 = arith.constant 0 : index
    %238 = vector.load %arg14[%c448, %c0_212] : memref<576x128xf32, #tpu.memory_space<vmem>>, vector<64x128xf32>
    %cst_213 = arith.constant dense<0.000000e+00> : vector<64x128xf32>
    %239 = tpu.matmul %237, %238, %cst_213 {dimension_numbers = #tpu.dot_dimension_numbers<[1], [0], [0], [1], [0, 0, 1, 1], [], []>} : vector<64x64xf32>, vector<64x128xf32>, vector<64x128xf32> -> vector<64x128xf32>
    %240 = arith.addf %232, %239 : vector<64x128xf32>
    %c25_214 = arith.constant 25 : index
    %c0_215 = arith.constant 0 : index
    %241 = vector.load %arg18[%c25_214, %c0_215] : memref<96x64xf32, #tpu.memory_space<vmem>>, vector<64x64xf32>
    %c8_216 = arith.constant 8 : index
    %c0_217 = arith.constant 0 : index
    %c0_218 = arith.constant 0 : index
    %242 = vector.load %arg1[%c8_216, %c0_217, %c0_218] : memref<9x64x1xf32, #tpu.memory_space<vmem>>, vector<1x64x1xf32>
    %243 = vector.shape_cast %242 : vector<1x64x1xf32> to vector<64x1xf32>
    %244 = vector.broadcast %243 : vector<64x1xf32> to vector<64x64xf32>
    %245 = arith.mulf %241, %244 : vector<64x64xf32>
    %c512 = arith.constant 512 : index
    %c0_219 = arith.constant 0 : index
    %246 = vector.load %arg14[%c512, %c0_219] : memref<576x128xf32, #tpu.memory_space<vmem>>, vector<64x128xf32>
    %cst_220 = arith.constant dense<0.000000e+00> : vector<64x128xf32>
    %247 = tpu.matmul %245, %246, %cst_220 {dimension_numbers = #tpu.dot_dimension_numbers<[1], [0], [0], [1], [0, 0, 1, 1], [], []>} : vector<64x64xf32>, vector<64x128xf32>, vector<64x128xf32> -> vector<64x128xf32>
    %248 = arith.addf %240, %247 : vector<64x128xf32>
    %c0_221 = arith.constant 0 : index
    %c0_222 = arith.constant 0 : index
    %249 = vector.load %arg15[%c0_221, %c0_222] : memref<1x128xf32, #tpu.memory_space<vmem>>, vector<1x128xf32>
    %250 = vector.broadcast %249 : vector<1x128xf32> to vector<64x128xf32>
    %251 = arith.addf %248, %250 : vector<64x128xf32>
    %c0_223 = arith.constant 0 : index
    %c0_224 = arith.constant 0 : index
    %c0_225 = arith.constant 0 : index
    %252 = vector.load %arg16[%c0_223, %c0_224, %c0_225] : memref<1x64x128xf32, #tpu.memory_space<vmem>>, vector<1x64x128xf32>
    %253 = vector.shape_cast %252 : vector<1x64x128xf32> to vector<64x128xf32>
    %254 = vector.shape_cast %251 : vector<64x128xf32> to vector<1x64x128xf32>
    tpu.vector_store %arg16[%c0_223, %c0_224, %c0_225], %254 {strides = array<i32>} : memref<1x64x128xf32, #tpu.memory_space<vmem>>, vector<1x64x128xf32>,
    return
  }
  func.func @transform_0(%arg0: i32) -> (i32, i32, i32) {
    %c0_i32 = arith.constant 0 : i32
    %c0_i32_0 = arith.constant 0 : i32
    %c0_i32_1 = arith.constant 0 : i32
    %c0_i32_2 = arith.constant 0 : i32
    return %c0_i32, %c0_i32_0, %c0_i32_1 : i32, i32, i32
  }
  func.func @transform_1(%arg0: i32) -> (i32, i32, i32) {
    %c0_i32 = arith.constant 0 : i32
    %c0_i32_0 = arith.constant 0 : i32
    %c0_i32_1 = arith.constant 0 : i32
    return %arg0, %c0_i32, %c0_i32_0 : i32, i32, i32
  }
  func.func @transform_2(%arg0: i32) -> (i32, i32, i32) {
    %c0_i32 = arith.constant 0 : i32
    %c0_i32_0 = arith.constant 0 : i32
    %c0_i32_1 = arith.constant 0 : i32
    return %arg0, %c0_i32, %c0_i32_0 : i32, i32, i32
  }
  func.func @transform_3(%arg0: i32) -> (i32, i32) {
    %c0_i32 = arith.constant 0 : i32
    %c0_i32_0 = arith.constant 0 : i32
    %c0_i32_1 = arith.constant 0 : i32
    return %c0_i32, %c0_i32_0 : i32, i32
  }
  func.func @transform_4(%arg0: i32) -> (i32, i32) {
    %c0_i32 = arith.constant 0 : i32
    %c0_i32_0 = arith.constant 0 : i32
    %c0_i32_1 = arith.constant 0 : i32
    return %c0_i32, %c0_i32_0 : i32, i32
  }
  func.func @transform_5(%arg0: i32) -> (i32, i32) {
    %c0_i32 = arith.constant 0 : i32
    %c0_i32_0 = arith.constant 0 : i32
    %c0_i32_1 = arith.constant 0 : i32
    return %c0_i32, %c0_i32_0 : i32, i32
  }
  func.func @transform_6(%arg0: i32) -> (i32, i32) {
    %c0_i32 = arith.constant 0 : i32
    %c0_i32_0 = arith.constant 0 : i32
    %c0_i32_1 = arith.constant 0 : i32
    return %c0_i32, %c0_i32_0 : i32, i32
  }
  func.func @transform_7(%arg0: i32) -> (i32, i32) {
    %c0_i32 = arith.constant 0 : i32
    %c0_i32_0 = arith.constant 0 : i32
    %c0_i32_1 = arith.constant 0 : i32
    return %c0_i32, %c0_i32_0 : i32, i32
  }
  func.func @transform_8(%arg0: i32) -> (i32, i32) {
    %c0_i32 = arith.constant 0 : i32
    %c0_i32_0 = arith.constant 0 : i32
    %c0_i32_1 = arith.constant 0 : i32
    return %c0_i32, %c0_i32_0 : i32, i32
  }
  func.func @transform_9(%arg0: i32) -> (i32, i32) {
    %c0_i32 = arith.constant 0 : i32
    %c0_i32_0 = arith.constant 0 : i32
    %c0_i32_1 = arith.constant 0 : i32
    return %c0_i32, %c0_i32_0 : i32, i32
  }
  func.func @transform_10(%arg0: i32) -> (i32, i32) {
    %c0_i32 = arith.constant 0 : i32
    %c0_i32_0 = arith.constant 0 : i32
    %c0_i32_1 = arith.constant 0 : i32
    return %c0_i32, %c0_i32_0 : i32, i32
  }
  func.func @transform_11(%arg0: i32) -> (i32, i32) {
    %c0_i32 = arith.constant 0 : i32
    %c0_i32_0 = arith.constant 0 : i32
    %c0_i32_1 = arith.constant 0 : i32
    return %c0_i32, %c0_i32_0 : i32, i32
  }
  func.func @transform_12(%arg0: i32) -> (i32, i32) {
    %c0_i32 = arith.constant 0 : i32
    %c0_i32_0 = arith.constant 0 : i32
    %c0_i32_1 = arith.constant 0 : i32
    return %c0_i32, %c0_i32_0 : i32, i32
  }
  func.func @transform_13(%arg0: i32) -> (i32, i32) {
    %c0_i32 = arith.constant 0 : i32
    %c0_i32_0 = arith.constant 0 : i32
    %c0_i32_1 = arith.constant 0 : i32
    return %c0_i32, %c0_i32_0 : i32, i32
  }
  func.func @transform_14(%arg0: i32) -> (i32, i32) {
    %c0_i32 = arith.constant 0 : i32
    %c0_i32_0 = arith.constant 0 : i32
    %c0_i32_1 = arith.constant 0 : i32
    return %c0_i32, %c0_i32_0 : i32, i32
  }
  func.func @transform_15(%arg0: i32) -> (i32, i32, i32) {
    %c0_i32 = arith.constant 0 : i32
    %c0_i32_0 = arith.constant 0 : i32
    %c0_i32_1 = arith.constant 0 : i32
    return %arg0, %c0_i32, %c0_i32_0 : i32, i32, i32
  }
}

</mosaic_0001>

<llo_original>
// kernel: depthwise_xcorr_forward.1
$region0: #{depthwise_xcorr_forward.1}
  #allocation0 [shape = 'u32[]', space=smem, size = 0x4, offset = 0x4, fixed_abs, tag = 'smem constant byte address 0x4 - core index']
  #allocation1 [shape = 'u32[72,128]{1,0:T(1,128)}', space=vmem, size = 0x9000, scoped, tag = 'internal scratch']
  #allocation2 [shape = 'f32[96,32]{1,0:T(8,128)}', space=vmem, size = 0xc000, scoped, tag = 'scratch operand']
  #allocation3 [shape = 'f32[96,64]{1,0:T(8,128)}', space=vmem, size = 0xc000, scoped, tag = 'scratch operand']
  %s0 = inlined_call_operand.vmem [shape: f32[9,64,1], index: 0, kind: input, shape index: {}]
  %s1 = inlined_call_operand.vmem [shape: f32[2,8,100], index: 1, kind: input, shape index: {}]
  %s2 = inlined_call_operand.vmem [shape: f32[2,64,100], index: 2, kind: input, shape index: {}]
  %s3 = inlined_call_operand.vmem [shape: f32[100,32], index: 3, kind: input, shape index: {}]
  %s4 = inlined_call_operand.vmem [shape: f32[100,32], index: 4, kind: input, shape index: {}]
  %s5 = inlined_call_operand.vmem [shape: f32[1,32], index: 5, kind: input, shape index: {}]
  %s6 = inlined_call_operand.vmem [shape: f32[1,32], index: 6, kind: input, shape index: {}]
  %s7 = inlined_call_operand.vmem [shape: f32[288,32], index: 7, kind: input, shape index: {}]
  %s8 = inlined_call_operand.vmem [shape: f32[1,32], index: 8, kind: input, shape index: {}]
  %s9 = inlined_call_operand.vmem [shape: f32[1,32], index: 9, kind: input, shape index: {}]
  %s10 = inlined_call_operand.vmem [shape: f32[288,64], index: 10, kind: input, shape index: {}]
  %s11 = inlined_call_operand.vmem [shape: f32[1,64], index: 11, kind: input, shape index: {}]
  %s12 = inlined_call_operand.vmem [shape: f32[1,64], index: 12, kind: input, shape index: {}]
  %s13 = inlined_call_operand.vmem [shape: f32[576,128], index: 13, kind: input, shape index: {}]
  %s14 = inlined_call_operand.vmem [shape: f32[1,128], index: 14, kind: input, shape index: {}]
  %s15 = inlined_call_operand.vmem [shape: f32[2,64,128], index: 15, kind: output, shape index: {}]
  %s16 = sld [smem:[#allocation0]]
  $region93: #{depthwise_xcorr_forward.1} parent=0
    _
  %s18 = ssub.s32 1, %s16
  %s19 = scalar_select 0, %s18, %s16
  loop: start=0, step=1, limit=4
  $region2: #{depthwise_xcorr_forward.1} parent=0 // loop_pre_header
    _
  $region3: #{depthwise_xcorr_forward.1} parent=0 // loop_header
    %s21 = sphi 0, %s25
    %p22 = scmp.ge.s32.totalorder %s21, 4
    %s29 = sphi 0, %s29
    %s31 = sphi 0, %s29
    %s32 = sphi 0, %s31
    %s46 = sphi 0, %s32
    %s52 = sphi 0, %s54
    %s55 = sphi 0, %s52
    %s56 = sphi 0, %s55
    %s72 = sphi 0, %s56
    %s78 = sphi 0, %s80
    %s81 = sphi 0, %s78
    %s82 = sphi 0, %s81
    %s98 = sphi 0, %s82
    %s102 = sphi 0, %s102
    %s104 = sphi 0, %s102
    %s105 = sphi 0, %s104
    %s119 = sphi 0, %s105
    %s123 = sphi 0, %s123
    %s125 = sphi 0, %s123
    %s126 = sphi 0, %s125
    %s140 = sphi 0, %s126
    %s144 = sphi 0, %s144
    %s146 = sphi 0, %s144
    %s147 = sphi 0, %s146
    %s161 = sphi 0, %s147
    %s165 = sphi 0, %s165
    %s167 = sphi 0, %s165
    %s168 = sphi 0, %s167
    %s182 = sphi 0, %s168
    %s186 = sphi 0, %s186
    %s188 = sphi 0, %s186
    %s189 = sphi 0, %s188
    %s203 = sphi 0, %s189
    %s207 = sphi 0, %s207
    %s209 = sphi 0, %s207
    %s210 = sphi 0, %s209
    %s224 = sphi 0, %s210
    %s228 = sphi 0, %s228
    %s230 = sphi 0, %s228
    %s231 = sphi 0, %s230
    %s245 = sphi 0, %s231
    %s249 = sphi 0, %s249
    %s251 = sphi 0, %s249
    %s252 = sphi 0, %s251
    %s266 = sphi 0, %s252
    %s270 = sphi 0, %s270
    %s272 = sphi 0, %s270
    %s273 = sphi 0, %s272
    %s287 = sphi 0, %s273
    %s291 = sphi 0, %s291
    %s293 = sphi 0, %s291
    %s294 = sphi 0, %s293
    %s308 = sphi 0, %s294
    %s312 = sphi 0, %s312
    %s314 = sphi 0, %s312
    %s315 = sphi 0, %s314
    %s329 = sphi 0, %s315
    %s333 = sphi 0, %s333
    %s335 = sphi 0, %s333
    %s336 = sphi 0, %s335
    %s350 = sphi 0, %s336
    %s356 = sphi 0, %s358
    %s359 = sphi 0, %s356
    %s360 = sphi 0, %s359
    %s376 = sphi 0, %s360
  $region4: #{depthwise_xcorr_forward.1} parent=0 // loop_header_branch
    %24 = sbr.rel (%p22) target = $region8
  $region5: #{depthwise_xcorr_forward.1} parent=0 // loop_body
    %s26 = ssub.s32 %s21, 1
    %s27 = ssub.s32 %s21, 2
    %s28 = sadd.s32 %s21, 1
    %s30 = sadd.s32 %s29, 1
    %p33 = scmp.eq.s32.totalorder %s21, 1
    %p34 = scmp.ne.s32.totalorder %s29, %s31
    %p35 = scmp.eq.s32.totalorder %s21, 0
    %p36 = por %p34, %p35
    %p37 = scmp.ne.s32.totalorder %s29, %s31
    %p38 = scmp.eq.s32.totalorder %s26, 1
    %p39 = por %p37, %p38
    %p40 = scmp.ne.s32.totalorder %s31, %s32
    %p41 = scmp.eq.s32.totalorder %s26, 0
    %p42 = por %p40, %p41
    %p43 = scmp.ne.s32.totalorder %s31, %s32
    %p44 = scmp.eq.s32.totalorder %s27, 1
    %p45 = por %p43, %p44
    %p47 = scmp.ne.s32.totalorder %s32, %s46
    %p48 = scmp.eq.s32.totalorder %s27, 0
    %p49 = por %p47, %p48
    %s50 = ssub.s32 %s21, %s28
    %p51 = scmp.eq.s32.totalorder %s50, 0
    %s53 = sadd.s32 %s52, 1
    %s54 = scalar_select %p51, %s52, %s53
    %p57 = pneg %p51
    %p58 = scmp.eq.s32.totalorder %s21, 1
    %p59 = por %p57, %p58
    %p60 = scmp.ne.s32.totalorder %s52, %s55
    %p61 = scmp.eq.s32.totalorder %s21, 0
    %p62 = por %p60, %p61
    %p63 = scmp.ne.s32.totalorder %s52, %s55
    %p64 = scmp.eq.s32.totalorder %s26, 1
    %p65 = por %p63, %p64
    %p66 = scmp.ne.s32.totalorder %s55, %s56
    %p67 = scmp.eq.s32.totalorder %s26, 0
    %p68 = por %p66, %p67
    %p69 = scmp.ne.s32.totalorder %s55, %s56
    %p70 = scmp.eq.s32.totalorder %s27, 1
    %p71 = por %p69, %p70
    %p73 = scmp.ne.s32.totalorder %s56, %s72
    %p74 = scmp.eq.s32.totalorder %s27, 0
    %p75 = por %p73, %p74
    %s76 = ssub.s32 %s21, %s28
    %p77 = scmp.eq.s32.totalorder %s76, 0
    %s79 = sadd.s32 %s78, 1
    %s80 = scalar_select %p77, %s78, %s79
    %p83 = pneg %p77
    %p84 = scmp.eq.s32.totalorder %s21, 1
    %p85 = por %p83, %p84
    %p86 = scmp.ne.s32.totalorder %s78, %s81
    %p87 = scmp.eq.s32.totalorder %s21, 0
    %p88 = por %p86, %p87
    %p89 = scmp.ne.s32.totalorder %s78, %s81
    %p90 = scmp.eq.s32.totalorder %s26, 1
    %p91 = por %p89, %p90
    %p92 = scmp.ne.s32.totalorder %s81, %s82
    %p93 = scmp.eq.s32.totalorder %s26, 0
    %p94 = por %p92, %p93
    %p95 = scmp.ne.s32.totalorder %s81, %s82
    %p96 = scmp.eq.s32.totalorder %s27, 1
    %p97 = por %p95, %p96
    %p99 = scmp.ne.s32.totalorder %s82, %s98
    %p100 = scmp.eq.s32.totalorder %s27, 0
    %p101 = por %p99, %p100
    %s103 = sadd.s32 %s102, 1
    %p106 = scmp.eq.s32.totalorder %s21, 1
    %p107 = scmp.ne.s32.totalorder %s102, %s104
    %p108 = scmp.eq.s32.totalorder %s21, 0
    %p109 = por %p107, %p108
    %p110 = scmp.ne.s32.totalorder %s102, %s104
    %p111 = scmp.eq.s32.totalorder %s26, 1
    %p112 = por %p110, %p111
    %p113 = scmp.ne.s32.totalorder %s104, %s105
    %p114 = scmp.eq.s32.totalorder %s26, 0
    %p115 = por %p113, %p114
    %p116 = scmp.ne.s32.totalorder %s104, %s105
    %p117 = scmp.eq.s32.totalorder %s27, 1
    %p118 = por %p116, %p117
    %p120 = scmp.ne.s32.totalorder %s105, %s119
    %p121 = scmp.eq.s32.totalorder %s27, 0
    %p122 = por %p120, %p121
    %s124 = sadd.s32 %s123, 1
    %p127 = scmp.eq.s32.totalorder %s21, 1
    %p128 = scmp.ne.s32.totalorder %s123, %s125
    %p129 = scmp.eq.s32.totalorder %s21, 0
    %p130 = por %p128, %p129
    %p131 = scmp.ne.s32.totalorder %s123, %s125
    %p132 = scmp.eq.s32.totalorder %s26, 1
    %p133 = por %p131, %p132
    %p134 = scmp.ne.s32.totalorder %s125, %s126
    %p135 = scmp.eq.s32.totalorder %s26, 0
    %p136 = por %p134, %p135
    %p137 = scmp.ne.s32.totalorder %s125, %s126
    %p138 = scmp.eq.s32.totalorder %s27, 1
    %p139 = por %p137, %p138
    %p141 = scmp.ne.s32.totalorder %s126, %s140
    %p142 = scmp.eq.s32.totalorder %s27, 0
    %p143 = por %p141, %p142
    %s145 = sadd.s32 %s144, 1
    %p148 = scmp.eq.s32.totalorder %s21, 1
    %p149 = scmp.ne.s32.totalorder %s144, %s146
    %p150 = scmp.eq.s32.totalorder %s21, 0
    %p151 = por %p149, %p150
    %p152 = scmp.ne.s32.totalorder %s144, %s146
    %p153 = scmp.eq.s32.totalorder %s26, 1
    %p154 = por %p152, %p153
    %p155 = scmp.ne.s32.totalorder %s146, %s147
    %p156 = scmp.eq.s32.totalorder %s26, 0
    %p157 = por %p155, %p156
    %p158 = scmp.ne.s32.totalorder %s146, %s147
    %p159 = scmp.eq.s32.totalorder %s27, 1
    %p160 = por %p158, %p159
    %p162 = scmp.ne.s32.totalorder %s147, %s161
    %p163 = scmp.eq.s32.totalorder %s27, 0
    %p164 = por %p162, %p163
    %s166 = sadd.s32 %s165, 1
    %p169 = scmp.eq.s32.totalorder %s21, 1
    %p170 = scmp.ne.s32.totalorder %s165, %s167
    %p171 = scmp.eq.s32.totalorder %s21, 0
    %p172 = por %p170, %p171
    %p173 = scmp.ne.s32.totalorder %s165, %s167
    %p174 = scmp.eq.s32.totalorder %s26, 1
    %p175 = por %p173, %p174
    %p176 = scmp.ne.s32.totalorder %s167, %s168
    %p177 = scmp.eq.s32.totalorder %s26, 0
    %p178 = por %p176, %p177
    %p179 = scmp.ne.s32.totalorder %s167, %s168
    %p180 = scmp.eq.s32.totalorder %s27, 1
    %p181 = por %p179, %p180
    %p183 = scmp.ne.s32.totalorder %s168, %s182
    %p184 = scmp.eq.s32.totalorder %s27, 0
    %p185 = por %p183, %p184
    %s187 = sadd.s32 %s186, 1
    %p190 = scmp.eq.s32.totalorder %s21, 1
    %p191 = scmp.ne.s32.totalorder %s186, %s188
    %p192 = scmp.eq.s32.totalorder %s21, 0
    %p193 = por %p191, %p192
    %p194 = scmp.ne.s32.totalorder %s186, %s188
    %p195 = scmp.eq.s32.totalorder %s26, 1
    %p196 = por %p194, %p195
    %p197 = scmp.ne.s32.totalorder %s188, %s189
    %p198 = scmp.eq.s32.totalorder %s26, 0
    %p199 = por %p197, %p198
    %p200 = scmp.ne.s32.totalorder %s188, %s189
    %p201 = scmp.eq.s32.totalorder %s27, 1
    %p202 = por %p200, %p201
    %p204 = scmp.ne.s32.totalorder %s189, %s203
    %p205 = scmp.eq.s32.totalorder %s27, 0
    %p206 = por %p204, %p205
    %s208 = sadd.s32 %s207, 1
    %p211 = scmp.eq.s32.totalorder %s21, 1
    %p212 = scmp.ne.s32.totalorder %s207, %s209
    %p213 = scmp.eq.s32.totalorder %s21, 0
    %p214 = por %p212, %p213
    %p215 = scmp.ne.s32.totalorder %s207, %s209
    %p216 = scmp.eq.s32.totalorder %s26, 1
    %p217 = por %p215, %p216
    %p218 = scmp.ne.s32.totalorder %s209, %s210
    %p219 = scmp.eq.s32.totalorder %s26, 0
    %p220 = por %p218, %p219
    %p221 = scmp.ne.s32.totalorder %s209, %s210
    %p222 = scmp.eq.s32.totalorder %s27, 1
    %p223 = por %p221, %p222
    %p225 = scmp.ne.s32.totalorder %s210, %s224
    %p226 = scmp.eq.s32.totalorder %s27, 0
    %p227 = por %p225, %p226
    %s229 = sadd.s32 %s228, 1
    %p232 = scmp.eq.s32.totalorder %s21, 1
    %p233 = scmp.ne.s32.totalorder %s228, %s230
    %p234 = scmp.eq.s32.totalorder %s21, 0
    %p235 = por %p233, %p234
    %p236 = scmp.ne.s32.totalorder %s228, %s230
    %p237 = scmp.eq.s32.totalorder %s26, 1
    %p238 = por %p236, %p237
    %p239 = scmp.ne.s32.totalorder %s230, %s231
    %p240 = scmp.eq.s32.totalorder %s26, 0
    %p241 = por %p239, %p240
    %p242 = scmp.ne.s32.totalorder %s230, %s231
    %p243 = scmp.eq.s32.totalorder %s27, 1
    %p244 = por %p242, %p243
    %p246 = scmp.ne.s32.totalorder %s231, %s245
    %p247 = scmp.eq.s32.totalorder %s27, 0
    %p248 = por %p246, %p247
    %s250 = sadd.s32 %s249, 1
    %p253 = scmp.eq.s32.totalorder %s21, 1
    %p254 = scmp.ne.s32.totalorder %s249, %s251
    %p255 = scmp.eq.s32.totalorder %s21, 0
    %p256 = por %p254, %p255
    %p257 = scmp.ne.s32.totalorder %s249, %s251
    %p258 = scmp.eq.s32.totalorder %s26, 1
    %p259 = por %p257, %p258
    %p260 = scmp.ne.s32.totalorder %s251, %s252
    %p261 = scmp.eq.s32.totalorder %s26, 0
    %p262 = por %p260, %p261
    %p263 = scmp.ne.s32.totalorder %s251, %s252
    %p264 = scmp.eq.s32.totalorder %s27, 1
    %p265 = por %p263, %p264
    %p267 = scmp.ne.s32.totalorder %s252, %s266
    %p268 = scmp.eq.s32.totalorder %s27, 0
    %p269 = por %p267, %p268
    %s271 = sadd.s32 %s270, 1
    %p274 = scmp.eq.s32.totalorder %s21, 1
    %p275 = scmp.ne.s32.totalorder %s270, %s272
    %p276 = scmp.eq.s32.totalorder %s21, 0
    %p277 = por %p275, %p276
    %p278 = scmp.ne.s32.totalorder %s270, %s272
    %p279 = scmp.eq.s32.totalorder %s26, 1
    %p280 = por %p278, %p279
    %p281 = scmp.ne.s32.totalorder %s272, %s273
    %p282 = scmp.eq.s32.totalorder %s26, 0
    %p283 = por %p281, %p282
    %p284 = scmp.ne.s32.totalorder %s272, %s273
    %p285 = scmp.eq.s32.totalorder %s27, 1
    %p286 = por %p284, %p285
    %p288 = scmp.ne.s32.totalorder %s273, %s287
    %p289 = scmp.eq.s32.totalorder %s27, 0
    %p290 = por %p288, %p289
    %s292 = sadd.s32 %s291, 1
    %p295 = scmp.eq.s32.totalorder %s21, 1
    %p296 = scmp.ne.s32.totalorder %s291, %s293
    %p297 = scmp.eq.s32.totalorder %s21, 0
    %p298 = por %p296, %p297
    %p299 = scmp.ne.s32.totalorder %s291, %s293
    %p300 = scmp.eq.s32.totalorder %s26, 1
    %p301 = por %p299, %p300
    %p302 = scmp.ne.s32.totalorder %s293, %s294
    %p303 = scmp.eq.s32.totalorder %s26, 0
    %p304 = por %p302, %p303
    %p305 = scmp.ne.s32.totalorder %s293, %s294
    %p306 = scmp.eq.s32.totalorder %s27, 1
    %p307 = por %p305, %p306
    %p309 = scmp.ne.s32.totalorder %s294, %s308
    %p310 = scmp.eq.s32.totalorder %s27, 0
    %p311 = por %p309, %p310
    %s313 = sadd.s32 %s312, 1
    %p316 = scmp.eq.s32.totalorder %s21, 1
    %p317 = scmp.ne.s32.totalorder %s312, %s314
    %p318 = scmp.eq.s32.totalorder %s21, 0
    %p319 = por %p317, %p318
    %p320 = scmp.ne.s32.totalorder %s312, %s314
    %p321 = scmp.eq.s32.totalorder %s26, 1
    %p322 = por %p320, %p321
    %p323 = scmp.ne.s32.totalorder %s314, %s315
    %p324 = scmp.eq.s32.totalorder %s26, 0
    %p325 = por %p323, %p324
    %p326 = scmp.ne.s32.totalorder %s314, %s315
    %p327 = scmp.eq.s32.totalorder %s27, 1
    %p328 = por %p326, %p327
    %p330 = scmp.ne.s32.totalorder %s315, %s329
    %p331 = scmp.eq.s32.totalorder %s27, 0
    %p332 = por %p330, %p331
    %s334 = sadd.s32 %s333, 1
    %p337 = scmp.eq.s32.totalorder %s21, 1
    %p338 = scmp.ne.s32.totalorder %s333, %s335
    %p339 = scmp.eq.s32.totalorder %s21, 0
    %p340 = por %p338, %p339
    %p341 = scmp.ne.s32.totalorder %s333, %s335
    %p342 = scmp.eq.s32.totalorder %s26, 1
    %p343 = por %p341, %p342
    %p344 = scmp.ne.s32.totalorder %s335, %s336
    %p345 = scmp.eq.s32.totalorder %s26, 0
    %p346 = por %p344, %p345
    %p347 = scmp.ne.s32.totalorder %s335, %s336
    %p348 = scmp.eq.s32.totalorder %s27, 1
    %p349 = por %p347, %p348
    %p351 = scmp.ne.s32.totalorder %s336, %s350
    %p352 = scmp.eq.s32.totalorder %s27, 0
    %p353 = por %p351, %p352
    %s354 = ssub.s32 %s21, %s28
    %p355 = scmp.eq.s32.totalorder %s354, 0
    %s357 = sadd.s32 %s356, 1
    %s358 = scalar_select %p355, %s356, %s357
    %p361 = pneg %p355
    %p362 = scmp.eq.s32.totalorder %s21, 1
    %p363 = por %p361, %p362
    %p364 = scmp.ne.s32.totalorder %s356, %s359
    %p365 = scmp.eq.s32.totalorder %s21, 0
    %p366 = por %p364, %p365
    %p367 = scmp.ne.s32.totalorder %s356, %s359
    %p368 = scmp.eq.s32.totalorder %s26, 1
    %p369 = por %p367, %p368
    %p370 = scmp.ne.s32.totalorder %s359, %s360
    %p371 = scmp.eq.s32.totalorder %s26, 0
    %p372 = por %p370, %p371
    %p373 = scmp.ne.s32.totalorder %s359, %s360
    %p374 = scmp.eq.s32.totalorder %s27, 1
    %p375 = por %p373, %p374
    %p377 = scmp.ne.s32.totalorder %s360, %s376
    %p378 = scmp.eq.s32.totalorder %s27, 0
    %p379 = por %p377, %p378
    %p380 = scmp.le.s32.totalorder 1, %s21
    %p381 = scmp.lt.s32.totalorder %s21, 3
    %p382 = pnand %p380, %p381
    %p383 = pneg %p382
    // Predicated region
    $region9: #{depthwise_xcorr_forward.1} parent=5 // pred_check
      _
    $region10: #{depthwise_xcorr_forward.1} parent=5 // pred_check_branch
      %385 = sbr.rel (%p382) target = $region12
    $region11: #{depthwise_xcorr_forward.1} parent=5 // pred_region
      %s386 = ssub.s32 %s21, 1
      // Predicated region
      $region13: #{depthwise_xcorr_forward.1} parent=11 // pred_check
        %p387 = pneg %p42
      $region14: #{depthwise_xcorr_forward.1} parent=11 // pred_check_branch
        %389 = sbr.rel (%p387) target = $region16
      $region15: #{depthwise_xcorr_forward.1} parent=11 // pred_region
        _
      $region16: #{depthwise_xcorr_forward.1} parent=11 // pred_fallthru
        _
      // Predicated region
      $region17: #{depthwise_xcorr_forward.1} parent=11 // pred_check
        %p390 = pneg %p115
      $region18: #{depthwise_xcorr_forward.1} parent=11 // pred_check_branch
        %392 = sbr.rel (%p390) target = $region20
      $region19: #{depthwise_xcorr_forward.1} parent=11 // pred_region
        _
      $region20: #{depthwise_xcorr_forward.1} parent=11 // pred_fallthru
        _
      // Predicated region
      $region21: #{depthwise_xcorr_forward.1} parent=11 // pred_check
        %p393 = pneg %p136
      $region22: #{depthwise_xcorr_forward.1} parent=11 // pred_check_branch
        %395 = sbr.rel (%p393) target = $region24
      $region23: #{depthwise_xcorr_forward.1} parent=11 // pred_region
        _
      $region24: #{depthwise_xcorr_forward.1} parent=11 // pred_fallthru
        _
      // Predicated region
      $region25: #{depthwise_xcorr_forward.1} parent=11 // pred_check
        %p396 = pneg %p157
      $region26: #{depthwise_xcorr_forward.1} parent=11 // pred_check_branch
        %398 = sbr.rel (%p396) target = $region28
      $region27: #{depthwise_xcorr_forward.1} parent=11 // pred_region
        _
      $region28: #{depthwise_xcorr_forward.1} parent=11 // pred_fallthru
        _
      // Predicated region
      $region29: #{depthwise_xcorr_forward.1} parent=11 // pred_check
        %p399 = pneg %p178
      $region30: #{depthwise_xcorr_forward.1} parent=11 // pred_check_branch
        %401 = sbr.rel (%p399) target = $region32
      $region31: #{depthwise_xcorr_forward.1} parent=11 // pred_region
        _
      $region32: #{depthwise_xcorr_forward.1} parent=11 // pred_fallthru
        _
      // Predicated region
      $region33: #{depthwise_xcorr_forward.1} parent=11 // pred_check
        %p402 = pneg %p199
      $region34: #{depthwise_xcorr_forward.1} parent=11 // pred_check_branch
        %404 = sbr.rel (%p402) target = $region36
      $region35: #{depthwise_xcorr_forward.1} parent=11 // pred_region
        _
      $region36: #{depthwise_xcorr_forward.1} parent=11 // pred_fallthru
        _
      // Predicated region
      $region37: #{depthwise_xcorr_forward.1} parent=11 // pred_check
        %p405 = pneg %p220
      $region38: #{depthwise_xcorr_forward.1} parent=11 // pred_check_branch
        %407 = sbr.rel (%p405) target = $region40
      $region39: #{depthwise_xcorr_forward.1} parent=11 // pred_region
        _
      $region40: #{depthwise_xcorr_forward.1} parent=11 // pred_fallthru
        _
      // Predicated region
      $region41: #{depthwise_xcorr_forward.1} parent=11 // pred_check
        %p408 = pneg %p241
      $region42: #{depthwise_xcorr_forward.1} parent=11 // pred_check_branch
        %410 = sbr.rel (%p408) target = $region44
      $region43: #{depthwise_xcorr_forward.1} parent=11 // pred_region
        _
      $region44: #{depthwise_xcorr_forward.1} parent=11 // pred_fallthru
        _
      // Predicated region
      $region45: #{depthwise_xcorr_forward.1} parent=11 // pred_check
        %p411 = pneg %p262
      $region46: #{depthwise_xcorr_forward.1} parent=11 // pred_check_branch
        %413 = sbr.rel (%p411) target = $region48
      $region47: #{depthwise_xcorr_forward.1} parent=11 // pred_region
        _
      $region48: #{depthwise_xcorr_forward.1} parent=11 // pred_fallthru
        _
      // Predicated region
      $region49: #{depthwise_xcorr_forward.1} parent=11 // pred_check
        %p414 = pneg %p283
      $region50: #{depthwise_xcorr_forward.1} parent=11 // pred_check_branch
        %416 = sbr.rel (%p414) target = $region52
      $region51: #{depthwise_xcorr_forward.1} parent=11 // pred_region
        _
      $region52: #{depthwise_xcorr_forward.1} parent=11 // pred_fallthru
        _
      // Predicated region
      $region53: #{depthwise_xcorr_forward.1} parent=11 // pred_check
        %p417 = pneg %p304
      $region54: #{depthwise_xcorr_forward.1} parent=11 // pred_check_branch
        %419 = sbr.rel (%p417) target = $region56
      $region55: #{depthwise_xcorr_forward.1} parent=11 // pred_region
        _
      $region56: #{depthwise_xcorr_forward.1} parent=11 // pred_fallthru
        _
      // Predicated region
      $region57: #{depthwise_xcorr_forward.1} parent=11 // pred_check
        %p420 = pneg %p325
      $region58: #{depthwise_xcorr_forward.1} parent=11 // pred_check_branch
        %422 = sbr.rel (%p420) target = $region60
      $region59: #{depthwise_xcorr_forward.1} parent=11 // pred_region
        _
      $region60: #{depthwise_xcorr_forward.1} parent=11 // pred_fallthru
        _
      // Predicated region
      $region61: #{depthwise_xcorr_forward.1} parent=11 // pred_check
        %p423 = pneg %p346
      $region62: #{depthwise_xcorr_forward.1} parent=11 // pred_check_branch
        %425 = sbr.rel (%p423) target = $region64
      $region63: #{depthwise_xcorr_forward.1} parent=11 // pred_region
        _
      $region64: #{depthwise_xcorr_forward.1} parent=11 // pred_fallthru
        _
    $region12: #{depthwise_xcorr_forward.1} parent=5 // pred_fallthru
      _
    %p426 = scmp.lt.s32.totalorder %s21, 2
    // Predicated region
    $region65: #{depthwise_xcorr_forward.1} parent=5 // pred_check
      %p427 = pneg %p426
    $region66: #{depthwise_xcorr_forward.1} parent=5 // pred_check_branch
      %429 = sbr.rel (%p427) target = $region68
    $region67: #{depthwise_xcorr_forward.1} parent=5 // pred_region
      // Predicated region
      $region69: #{depthwise_xcorr_forward.1} parent=67 // pred_check
        %p430 = pneg %p62
      $region70: #{depthwise_xcorr_forward.1} parent=67 // pred_check_branch
        %432 = sbr.rel (%p430) target = $region72
      $region71: #{depthwise_xcorr_forward.1} parent=67 // pred_region
        %p433 = scmp.lt.s32.totalorder %s21, 1
        %s434 = scalar_select %p433, %s21, 1
        %s435 = smul.addr %s434, 8
        %s436 = scalar_lea.vmem %s1, %s435
      $region72: #{depthwise_xcorr_forward.1} parent=67 // pred_fallthru
        _
      // Predicated region
      $region73: #{depthwise_xcorr_forward.1} parent=67 // pred_check
        %p437 = pneg %p88
      $region74: #{depthwise_xcorr_forward.1} parent=67 // pred_check_branch
        %439 = sbr.rel (%p437) target = $region76
      $region75: #{depthwise_xcorr_forward.1} parent=67 // pred_region
        %p440 = scmp.lt.s32.totalorder %s21, 1
        %s441 = scalar_select %p440, %s21, 1
        %s442 = smul.addr %s441, 8
        %s443 = smul.addr %s442, 8
        %s444 = scalar_lea.vmem %s2, %s443
      $region76: #{depthwise_xcorr_forward.1} parent=67 // pred_fallthru
        _
    $region68: #{depthwise_xcorr_forward.1} parent=5 // pred_fallthru
      _
    %p445 = scmp.le.s32.totalorder 1, %s21
    %p446 = scmp.lt.s32.totalorder %s21, 3
    %p447 = pnand %p445, %p446
    %p448 = pneg %p447
    // Predicated region
    $region77: #{depthwise_xcorr_forward.1} parent=5 // pred_check
      _
    $region78: #{depthwise_xcorr_forward.1} parent=5 // pred_check_branch
      %450 = sbr.rel (%p447) target = $region80
    $region79: #{depthwise_xcorr_forward.1} parent=5 // pred_region
      %s451 = ssub.s32 %s21, 1
      %p452 = pneg %p42
      %p453 = pneg %p39
      %p454 = scmp.lt.s32.totalorder %s26, 1
      %s455 = scalar_select %p454, %s26, 1
      %s456 = smul.addr %s455, 8
      %s457 = scalar_lea.vmem %s1, %s456
      %p458 = pneg %p68
      %p459 = pneg %p65
      %p460 = scmp.lt.s32.totalorder %s26, 1
      %s461 = scalar_select %p460, %s26, 1
      %s462 = smul.addr %s461, 8
      %s463 = smul.addr %s462, 8
      %s464 = scalar_lea.vmem %s2, %s463
      %p465 = pneg %p94
      %p466 = pneg %p91
      %p467 = pneg %p115
      %p468 = pneg %p112
      %p469 = pneg %p136
      %p470 = pneg %p133
      %p471 = pneg %p157
      %p472 = pneg %p154
      %p473 = pneg %p178
      %p474 = pneg %p175
      %p475 = pneg %p199
      %p476 = pneg %p196
      %p477 = pneg %p220
      %p478 = pneg %p217
      %p479 = pneg %p241
      %p480 = pneg %p238
      %p481 = pneg %p262
      %p482 = pneg %p259
      %p483 = pneg %p283
      %p484 = pneg %p280
      %p485 = pneg %p304
      %p486 = pneg %p301
      %p487 = pneg %p325
      %p488 = pneg %p322
      %p489 = pneg %p346
      %p490 = pneg %p343
      %p491 = pneg %p372
      %p492 = pneg %p369
      %p493 = scmp.lt.s32.totalorder %s26, 1
      %s494 = scalar_select %p493, %s26, 1
      %s495 = smul.addr %s494, 8
      %s496 = smul.addr %s495, 8
      %s497 = scalar_lea.vmem %s15, %s496
      %p498 = scmp.lt.s32.totalorder %s26, 1
      %s499 = scalar_select %p498, %s26, 1
      %s500 = smul.addr %s499, 8
      %s501 = scalar_lea.vmem %s1, %s500
      %p502 = scmp.lt.s32.totalorder %s26, 1
      %s503 = scalar_select %p502, %s26, 1
      %s504 = smul.addr %s503, 8
      %s505 = smul.addr %s504, 8
      %s506 = scalar_lea.vmem %s2, %s505
      %p507 = scmp.lt.s32.totalorder %s26, 1
      %s508 = scalar_select %p507, %s26, 1
      %s509 = smul.addr %s508, 8
      %s510 = smul.addr %s509, 8
      %s511 = scalar_lea.vmem %s15, %s510
      %vm512 = vcmask 261120
      %513 = vst.msk [vmem:[#allocation2] sm:$0xff] %vm512, 0.0
      %514 = vst.msk [vmem:[#allocation2 + $0x8] sm:$0xff] %vm512, 0.0
      %515 = vst.msk [vmem:[#allocation2 + $0x10] sm:$0xff] %vm512, 0.0
      %516 = vst.msk [vmem:[#allocation2 + $0x18] sm:$0xff] %vm512, 0.0
      %517 = vst.msk [vmem:[#allocation2 + $0x20] sm:$0xff] %vm512, 0.0
      %518 = vst.msk [vmem:[#allocation2 + $0x28] sm:$0xff] %vm512, 0.0
      %519 = vst.msk [vmem:[#allocation2 + $0x30] sm:$0xff] %vm512, 0.0
      %520 = vst.msk [vmem:[#allocation2 + $0x38] sm:$0xff] %vm512, 0.0
      %521 = vst.msk [vmem:[#allocation2 + $0x40] sm:$0xff] %vm512, 0.0
      %522 = vst.msk [vmem:[#allocation2 + $0x48] sm:$0xff] %vm512, 0.0
      %523 = vst.msk [vmem:[#allocation2 + $0x50] sm:$0xff] %vm512, 0.0
      %524 = vst.msk [vmem:[#allocation2 + $0x58] sm:$0xff] %vm512, 0.0
      %vm525 = vcmask 523264
      %526 = vst.msk [vmem:[#allocation3] sm:$0xff] %vm525, 0.0
      %527 = vst.msk [vmem:[#allocation3 + $0x8] sm:$0xff] %vm525, 0.0
      %528 = vst.msk [vmem:[#allocation3 + $0x10] sm:$0xff] %vm525, 0.0
      %529 = vst.msk [vmem:[#allocation3 + $0x18] sm:$0xff] %vm525, 0.0
      %530 = vst.msk [vmem:[#allocation3 + $0x20] sm:$0xff] %vm525, 0.0
      %531 = vst.msk [vmem:[#allocation3 + $0x28] sm:$0xff] %vm525, 0.0
      %532 = vst.msk [vmem:[#allocation3 + $0x30] sm:$0xff] %vm525, 0.0
      %533 = vst.msk [vmem:[#allocation3 + $0x38] sm:$0xff] %vm525, 0.0
      %534 = vst.msk [vmem:[#allocation3 + $0x40] sm:$0xff] %vm525, 0.0
      %535 = vst.msk [vmem:[#allocation3 + $0x48] sm:$0xff] %vm525, 0.0
      %536 = vst.msk [vmem:[#allocation3 + $0x50] sm:$0xff] %vm525, 0.0
      %537 = vst.msk [vmem:[#allocation3 + $0x58] sm:$0xff] %vm525, 0.0
      %v538 = vld [vmem:[%s501] sm:$0xff]
      %v539 = vld [vmem:[%s3] sm:$0xff]
      %v540 = vld [vmem:[%s3 + $0x8] sm:$0xff]
      %v541 = vld [vmem:[%s3 + $0x10] sm:$0xff]
      %v542 = vld [vmem:[%s3 + $0x18] sm:$0xff]
      %v543 = vld [vmem:[%s3 + $0x20] sm:$0xff]
      %v544 = vld [vmem:[%s3 + $0x28] sm:$0xff]
      %v545 = vld [vmem:[%s3 + $0x30] sm:$0xff]
      %v546 = vld [vmem:[%s3 + $0x38] sm:$0xff]
      %v547 = vld [vmem:[%s3 + $0x40] sm:$0xff]
      %v548 = vld [vmem:[%s3 + $0x48] sm:$0xff]
      %v549 = vld [vmem:[%s3 + $0x50] sm:$0xff]
      %v550 = vld [vmem:[%s3 + $0x58] sm:$0xff]
      %v551 = vld [vmem:[%s3 + $0x60] sm:$0xf]
      %vm552 = vcmask 818176
      %v554 = vsel %vm552, %v538, 0
      %vm556 = vcmask 1043456
      %v558 = vsel %vm556, %v551, 0
      %560 = vmatpush.msra.mxu0 0.0
      %561 = vmatpush.msra.mxu0 0.0
      %562 = vmatpush.msra.mxu0 0.0
      %563 = vmatpush.msra.mxu0 %v558
      %564 = vmatpush.msra.mxu0 %v550
      %565 = vmatpush.msra.mxu0 %v549
      %566 = vmatpush.msra.mxu0 %v548
      %567 = vmatpush.msra.mxu0 %v547
      %568 = vmatpush.msra.mxu0 %v546
      %569 = vmatpush.msra.mxu0 %v545
      %570 = vmatpush.msra.mxu0 %v544
      %571 = vmatpush.msra.mxu0 %v543
      %572 = vmatpush.msra.mxu0 %v542
      %573 = vmatpush.msra.mxu0 %v541
      %574 = vmatpush.msra.mxu0 %v540
      %575 = vmatpush.msra.mxu0 %v539
      %576 = vmatmul.f32.gmra.mxu0 %v554
      %v577 = vpop.f32.mrf.mxu0
      %v578 = vadd.f32 0.0, %v577
      %579 = vdwg.mxu0
      %v580 = vld [vmem:[%s506] sm:$0xff]
      %v581 = vld [vmem:[%s506 + $0x8] sm:$0xff]
      %v582 = vld [vmem:[%s506 + $0x10] sm:$0xff]
      %v583 = vld [vmem:[%s506 + $0x18] sm:$0xff]
      %v584 = vld [vmem:[%s506 + $0x20] sm:$0xff]
      %v585 = vld [vmem:[%s506 + $0x28] sm:$0xff]
      %v586 = vld [vmem:[%s506 + $0x30] sm:$0xff]
      %v587 = vld [vmem:[%s506 + $0x38] sm:$0xff]
      %v588 = vld [vmem:[%s4] sm:$0xff]
      %v589 = vld [vmem:[%s4 + $0x8] sm:$0xff]
      %v590 = vld [vmem:[%s4 + $0x10] sm:$0xff]
      %v591 = vld [vmem:[%s4 + $0x18] sm:$0xff]
      %v592 = vld [vmem:[%s4 + $0x20] sm:$0xff]
      %v593 = vld [vmem:[%s4 + $0x28] sm:$0xff]
      %v594 = vld [vmem:[%s4 + $0x30] sm:$0xff]
      %v595 = vld [vmem:[%s4 + $0x38] sm:$0xff]
      %v596 = vld [vmem:[%s4 + $0x40] sm:$0xff]
      %v597 = vld [vmem:[%s4 + $0x48] sm:$0xff]
      %v598 = vld [vmem:[%s4 + $0x50] sm:$0xff]
      %v599 = vld [vmem:[%s4 + $0x58] sm:$0xff]
      %v600 = vld [vmem:[%s4 + $0x60] sm:$0xf]
      %v601 = vperm.slane %v578, 0
      %v603 = vsel %vm552, %v580, 0
      %v606 = vsel %vm552, %v581, 0
      %v609 = vsel %vm552, %v582, 0
      %v612 = vsel %vm552, %v583, 0
      %v615 = vsel %vm552, %v584, 0
      %v618 = vsel %vm552, %v585, 0
      %v621 = vsel %vm552, %v586, 0
      %v624 = vsel %vm552, %v587, 0
      %v627 = vsel %vm556, %v600, 0
      %629 = vmatpush.msra.mxu0 0.0
      %630 = vmatpush.msra.mxu0 0.0
      %631 = vmatpush.msra.mxu0 0.0
      %632 = vmatpush.msra.mxu0 %v627
      %633 = vmatpush.msra.mxu0 %v599
      %634 = vmatpush.msra.mxu0 %v598
      %635 = vmatpush.msra.mxu0 %v597
      %636 = vmatpush.msra.mxu0 %v596
      %637 = vmatpush.msra.mxu0 %v595
      %638 = vmatpush.msra.mxu0 %v594
      %639 = vmatpush.msra.mxu0 %v593
      %640 = vmatpush.msra.mxu0 %v592
      %641 = vmatpush.msra.mxu0 %v591
      %642 = vmatpush.msra.mxu0 %v590
      %643 = vmatpush.msra.mxu0 %v589
      %644 = vmatpush.msra.mxu0 %v588
      %645 = vmatmul.f32.gmra.mxu0 %v603
      %v646 = vpop.f32.mrf.mxu0
      %v647 = vadd.f32 %v601, %v646
      %648 = vmatmul.f32.gmra.mxu0 %v606
      %v649 = vpop.f32.mrf.mxu0
      %v650 = vadd.f32 %v601, %v649
      %651 = vmatmul.f32.gmra.mxu0 %v609
      %v652 = vpop.f32.mrf.mxu0
      %v653 = vadd.f32 %v601, %v652
      %654 = vmatmul.f32.gmra.mxu0 %v612
      %v655 = vpop.f32.mrf.mxu0
      %v656 = vadd.f32 %v601, %v655
      %657 = vmatmul.f32.gmra.mxu0 %v615
      %v658 = vpop.f32.mrf.mxu0
      %v659 = vadd.f32 %v601, %v658
      %660 = vmatmul.f32.gmra.mxu0 %v618
      %v661 = vpop.f32.mrf.mxu0
      %v662 = vadd.f32 %v601, %v661
      %663 = vmatmul.f32.gmra.mxu0 %v621
      %v664 = vpop.f32.mrf.mxu0
      %v665 = vadd.f32 %v601, %v664
      %666 = vmatmul.f32.gmra.mxu0 %v624
      %v667 = vpop.f32.mrf.mxu0
      %v668 = vadd.f32 %v601, %v667
      %669 = vdwg.mxu0
      %v670 = vld [vmem:[%s5] sm:$0x1]
      %v672 = vperm.slane %v670, 0
      %v674 = vmul.f32 %v647, %v672
      %v675 = vmul.f32 %v650, %v672
      %v676 = vmul.f32 %v653, %v672
      %v677 = vmul.f32 %v656, %v672
      %v678 = vmul.f32 %v659, %v672
      %v679 = vmul.f32 %v662, %v672
      %v680 = vmul.f32 %v665, %v672
      %v681 = vmul.f32 %v668, %v672
      %v682 = vld [vmem:[%s6] sm:$0x1]
      %v684 = vperm.slane %v682, 0
      %v686 = vadd.f32 %v674, %v684
      %v687 = vadd.f32 %v675, %v684
      %v688 = vadd.f32 %v676, %v684
      %v689 = vadd.f32 %v677, %v684
      %v690 = vadd.f32 %v678, %v684
      %v691 = vadd.f32 %v679, %v684
      %v692 = vadd.f32 %v680, %v684
      %v693 = vadd.f32 %v681, %v684
      %v694 = vmax.f32 %v686, 0.0
      %v695 = vmax.f32 %v687, 0.0
      %v696 = vmax.f32 %v688, 0.0
      %v697 = vmax.f32 %v689, 0.0
      %v698 = vmax.f32 %v690, 0.0
      %v699 = vmax.f32 %v691, 0.0
      %v700 = vmax.f32 %v692, 0.0
      %v701 = vmax.f32 %v693, 0.0
      %702 = vst.msk [vmem:[#allocation2 + $0x10] sm:$0xff] %vm512, %v694
      %703 = vst.msk [vmem:[#allocation2 + $0x18] sm:$0xff] %vm512, %v695
      %704 = vst.msk [vmem:[#allocation2 + $0x20] sm:$0xff] %vm512, %v696
      %705 = vst.msk [vmem:[#allocation2 + $0x28] sm:$0xff] %vm512, %v697
      %706 = vst.msk [vmem:[#allocation2 + $0x30] sm:$0xff] %vm512, %v698
      %707 = vst.msk [vmem:[#allocation2 + $0x38] sm:$0xff] %vm512, %v699
      %708 = vst.msk [vmem:[#allocation2 + $0x40] sm:$0xff] %vm512, %v700
      %709 = vst.msk [vmem:[#allocation2 + $0x48] sm:$0xff] %vm512, %v701
      %v710 = vld [vmem:[#allocation2 + $0x7] sm:$0xff]
      %v711 = vld [vmem:[#allocation2 + $0xf] sm:$0xff]
      %v712 = vld [vmem:[#allocation2 + $0x17] sm:$0xff]
      %v713 = vld [vmem:[#allocation2 + $0x1f] sm:$0xff]
      %v714 = vld [vmem:[#allocation2 + $0x27] sm:$0xff]
      %v715 = vld [vmem:[#allocation2 + $0x2f] sm:$0xff]
      %v716 = vld [vmem:[#allocation2 + $0x37] sm:$0xff]
      %v717 = vld [vmem:[#allocation2 + $0x3f] sm:$0xff]
      %v718 = vld [vmem:[%s0] sm:$0xff]
      %v719 = vld [vmem:[%s0 + $0x8] sm:$0xff]
      %v720 = vld [vmem:[%s0 + $0x10] sm:$0xff]
      %v721 = vld [vmem:[%s0 + $0x18] sm:$0xff]
      %v722 = vld [vmem:[%s0 + $0x20] sm:$0xff]
      %v723 = vld [vmem:[%s0 + $0x28] sm:$0xff]
      %v724 = vld [vmem:[%s0 + $0x30] sm:$0xff]
      %v725 = vld [vmem:[%s0 + $0x38] sm:$0xff]
      %727 = vset.pattern.permute.xlu0 0
      %728 = vperm.xlu0 %727, %v718
      %v729 = vpop.permute.xlu0 %728
      %732 = vset.pattern.permute.xlu0 0
      %733 = vperm.xlu0 %732, %v719
      %v734 = vpop.permute.xlu0 %733
      %737 = vset.pattern.permute.xlu0 0
      %738 = vperm.xlu0 %737, %v720
      %v739 = vpop.permute.xlu0 %738
      %742 = vset.pattern.permute.xlu0 0
      %743 = vperm.xlu0 %742, %v721
      %v744 = vpop.permute.xlu0 %743
      %747 = vset.pattern.permute.xlu0 0
      %748 = vperm.xlu0 %747, %v722
      %v749 = vpop.permute.xlu0 %748
      %752 = vset.pattern.permute.xlu0 0
      %753 = vperm.xlu0 %752, %v723
      %v754 = vpop.permute.xlu0 %753
      %757 = vset.pattern.permute.xlu0 0
      %758 = vperm.xlu0 %757, %v724
      %v759 = vpop.permute.xlu0 %758
      %762 = vset.pattern.permute.xlu0 0
      %763 = vperm.xlu0 %762, %v725
      %v764 = vpop.permute.xlu0 %763
      %v766 = vmul.f32 %v710, %v729
      %v767 = vmul.f32 %v711, %v734
      %v768 = vmul.f32 %v712, %v739
      %v769 = vmul.f32 %v713, %v744
      %v770 = vmul.f32 %v714, %v749
      %v771 = vmul.f32 %v715, %v754
      %v772 = vmul.f32 %v716, %v759
      %v773 = vmul.f32 %v717, %v764
      %v774 = vld [vmem:[%s7] sm:$0xff]
      %v775 = vld [vmem:[%s7 + $0x8] sm:$0xff]
      %v776 = vld [vmem:[%s7 + $0x10] sm:$0xff]
      %v777 = vld [vmem:[%s7 + $0x18] sm:$0xff]
      %v778 = vld [vmem:[#allocation2 + $0x8] sm:$0xff]
      %v779 = vld [vmem:[#allocation2 + $0x10] sm:$0xff]
      %v780 = vld [vmem:[#allocation2 + $0x18] sm:$0xff]
      %v781 = vld [vmem:[#allocation2 + $0x20] sm:$0xff]
      %v782 = vld [vmem:[#allocation2 + $0x28] sm:$0xff]
      %v783 = vld [vmem:[#allocation2 + $0x30] sm:$0xff]
      %v784 = vld [vmem:[#allocation2 + $0x38] sm:$0xff]
      %v785 = vld [vmem:[#allocation2 + $0x40] sm:$0xff]
      %s786 = scalar_lea.vmem %s0, 64
      %v787 = vld [vmem:[%s786] sm:$0xff]
      %v788 = vld [vmem:[%s786 + $0x8] sm:$0xff]
      %v789 = vld [vmem:[%s786 + $0x10] sm:$0xff]
      %v790 = vld [vmem:[%s786 + $0x18] sm:$0xff]
      %v791 = vld [vmem:[%s786 + $0x20] sm:$0xff]
      %v792 = vld [vmem:[%s786 + $0x28] sm:$0xff]
      %v793 = vld [vmem:[%s786 + $0x30] sm:$0xff]
      %v794 = vld [vmem:[%s786 + $0x38] sm:$0xff]
      %796 = vset.pattern.permute.xlu0 0
      %797 = vperm.xlu0 %796, %v787
      %v798 = vpop.permute.xlu0 %797
      %801 = vset.pattern.permute.xlu0 0
      %802 = vperm.xlu0 %801, %v788
      %v803 = vpop.permute.xlu0 %802
      %806 = vset.pattern.permute.xlu0 0
      %807 = vperm.xlu0 %806, %v789
      %v808 = vpop.permute.xlu0 %807
      %811 = vset.pattern.permute.xlu0 0
      %812 = vperm.xlu0 %811, %v790
      %v813 = vpop.permute.xlu0 %812
      %816 = vset.pattern.permute.xlu0 0
      %817 = vperm.xlu0 %816, %v791
      %v818 = vpop.permute.xlu0 %817
      %821 = vset.pattern.permute.xlu0 0
      %822 = vperm.xlu0 %821, %v792
      %v823 = vpop.permute.xlu0 %822
      %826 = vset.pattern.permute.xlu0 0
      %827 = vperm.xlu0 %826, %v793
      %v828 = vpop.permute.xlu0 %827
      %831 = vset.pattern.permute.xlu0 0
      %832 = vperm.xlu0 %831, %v794
      %v833 = vpop.permute.xlu0 %832
      %v835 = vmul.f32 %v778, %v798
      %v836 = vmul.f32 %v779, %v803
      %v837 = vmul.f32 %v780, %v808
      %v838 = vmul.f32 %v781, %v813
      %v839 = vmul.f32 %v782, %v818
      %v840 = vmul.f32 %v783, %v823
      %v841 = vmul.f32 %v784, %v828
      %v842 = vmul.f32 %v785, %v833
      %v843 = vld [vmem:[%s7 + $0x20] sm:$0xff]
      %v844 = vld [vmem:[%s7 + $0x28] sm:$0xff]
      %v845 = vld [vmem:[%s7 + $0x30] sm:$0xff]
      %v846 = vld [vmem:[%s7 + $0x38] sm:$0xff]
      %v848 = vsel %vm512, %v835, 0
      %v851 = vsel %vm512, %v836, 0
      %v854 = vsel %vm512, %v837, 0
      %v857 = vsel %vm512, %v838, 0
      %v860 = vsel %vm512, %v839, 0
      %v863 = vsel %vm512, %v840, 0
      %v866 = vsel %vm512, %v841, 0
      %v869 = vsel %vm512, %v842, 0
      %871 = vmatpush.msra.mxu0 0.0
      %872 = vmatpush.msra.mxu0 0.0
      %873 = vmatpush.msra.mxu0 0.0
      %874 = vmatpush.msra.mxu0 0.0
      %875 = vmatpush.msra.mxu0 0.0
      %876 = vmatpush.msra.mxu0 0.0
      %877 = vmatpush.msra.mxu0 0.0
      %878 = vmatpush.msra.mxu0 0.0
      %879 = vmatpush.msra.mxu0 0.0
      %880 = vmatpush.msra.mxu0 0.0
      %881 = vmatpush.msra.mxu0 0.0
      %882 = vmatpush.msra.mxu0 0.0
      %883 = vmatpush.msra.mxu0 %v846
      %884 = vmatpush.msra.mxu0 %v845
      %885 = vmatpush.msra.mxu0 %v844
      %886 = vmatpush.msra.mxu0 %v843
      %887 = vmatmul.f32.gmra.mxu0 %v848
      %v888 = vpop.f32.mrf.mxu0
      %v889 = vadd.f32 0.0, %v888
      %890 = vmatmul.f32.gmra.mxu0 %v851
      %v891 = vpop.f32.mrf.mxu0
      %v892 = vadd.f32 0.0, %v891
      %893 = vmatmul.f32.gmra.mxu0 %v854
      %v894 = vpop.f32.mrf.mxu0
      %v895 = vadd.f32 0.0, %v894
      %896 = vmatmul.f32.gmra.mxu0 %v857
      %v897 = vpop.f32.mrf.mxu0
      %v898 = vadd.f32 0.0, %v897
      %899 = vmatmul.f32.gmra.mxu0 %v860
      %v900 = vpop.f32.mrf.mxu0
      %v901 = vadd.f32 0.0, %v900
      %902 = vmatmul.f32.gmra.mxu0 %v863
      %v903 = vpop.f32.mrf.mxu0
      %v904 = vadd.f32 0.0, %v903
      %905 = vmatmul.f32.gmra.mxu0 %v866
      %v906 = vpop.f32.mrf.mxu0
      %v907 = vadd.f32 0.0, %v906
      %908 = vmatmul.f32.gmra.mxu0 %v869
      %v909 = vpop.f32.mrf.mxu0
      %v910 = vadd.f32 0.0, %v909
      %911 = vdwg.mxu0
      %v913 = vsel %vm512, %v766, 0
      %v916 = vsel %vm512, %v767, 0
      %v919 = vsel %vm512, %v768, 0
      %v922 = vsel %vm512, %v769, 0
      %v925 = vsel %vm512, %v770, 0
      %v928 = vsel %vm512, %v771, 0
      %v931 = vsel %vm512, %v772, 0
      %v934 = vsel %vm512, %v773, 0
      %936 = vmatpush.msra.mxu0 0.0
      %937 = vmatpush.msra.mxu0 0.0
      %938 = vmatpush.msra.mxu0 0.0
      %939 = vmatpush.msra.mxu0 0.0
      %940 = vmatpush.msra.mxu0 0.0
      %941 = vmatpush.msra.mxu0 0.0
      %942 = vmatpush.msra.mxu0 0.0
      %943 = vmatpush.msra.mxu0 0.0
      %944 = vmatpush.msra.mxu0 0.0
      %945 = vmatpush.msra.mxu0 0.0
      %946 = vmatpush.msra.mxu0 0.0
      %947 = vmatpush.msra.mxu0 0.0
      %948 = vmatpush.msra.mxu0 %v777
      %949 = vmatpush.msra.mxu0 %v776
      %950 = vmatpush.msra.mxu0 %v775
      %951 = vmatpush.msra.mxu0 %v774
      %952 = vmatmul.f32.gmra.mxu0 %v913
      %v953 = vpop.f32.mrf.mxu0
      %v954 = vadd.f32 %v889, %v953
      %955 = vmatmul.f32.gmra.mxu0 %v916
      %v956 = vpop.f32.mrf.mxu0
      %v957 = vadd.f32 %v892, %v956
      %958 = vmatmul.f32.gmra.mxu0 %v919
      %v959 = vpop.f32.mrf.mxu0
      %v960 = vadd.f32 %v895, %v959
      %961 = vmatmul.f32.gmra.mxu0 %v922
      %v962 = vpop.f32.mrf.mxu0
      %v963 = vadd.f32 %v898, %v962
      %964 = vmatmul.f32.gmra.mxu0 %v925
      %v965 = vpop.f32.mrf.mxu0
      %v966 = vadd.f32 %v901, %v965
      %967 = vmatmul.f32.gmra.mxu0 %v928
      %v968 = vpop.f32.mrf.mxu0
      %v969 = vadd.f32 %v904, %v968
      %970 = vmatmul.f32.gmra.mxu0 %v931
      %v971 = vpop.f32.mrf.mxu0
      %v972 = vadd.f32 %v907, %v971
      %973 = vmatmul.f32.gmra.mxu0 %v934
      %v974 = vpop.f32.mrf.mxu0
      %v975 = vadd.f32 %v910, %v974
      %976 = vdwg.mxu0
      %v977 = vld [vmem:[#allocation2 + $0x9] sm:$0xff]
      %v978 = vld [vmem:[#allocation2 + $0x11] sm:$0xff]
      %v979 = vld [vmem:[#allocation2 + $0x19] sm:$0xff]
      %v980 = vld [vmem:[#allocation2 + $0x21] sm:$0xff]
      %v981 = vld [vmem:[#allocation2 + $0x29] sm:$0xff]
      %v982 = vld [vmem:[#allocation2 + $0x31] sm:$0xff]
      %v983 = vld [vmem:[#allocation2 + $0x39] sm:$0xff]
      %v984 = vld [vmem:[#allocation2 + $0x41] sm:$0xff]
      %s985 = scalar_lea.vmem %s0, 128
      %v986 = vld [vmem:[%s985] sm:$0xff]
      %v987 = vld [vmem:[%s985 + $0x8] sm:$0xff]
      %v988 = vld [vmem:[%s985 + $0x10] sm:$0xff]
      %v989 = vld [vmem:[%s985 + $0x18] sm:$0xff]
      %v990 = vld [vmem:[%s985 + $0x20] sm:$0xff]
      %v991 = vld [vmem:[%s985 + $0x28] sm:$0xff]
      %v992 = vld [vmem:[%s985 + $0x30] sm:$0xff]
      %v993 = vld [vmem:[%s985 + $0x38] sm:$0xff]
      %995 = vset.pattern.permute.xlu0 0
      %996 = vperm.xlu0 %995, %v986
      %v997 = vpop.permute.xlu0 %996
      %1000 = vset.pattern.permute.xlu0 0
      %1001 = vperm.xlu0 %1000, %v987
      %v1002 = vpop.permute.xlu0 %1001
      %1005 = vset.pattern.permute.xlu0 0
      %1006 = vperm.xlu0 %1005, %v988
      %v1007 = vpop.permute.xlu0 %1006
      %1010 = vset.pattern.permute.xlu0 0
      %1011 = vperm.xlu0 %1010, %v989
      %v1012 = vpop.permute.xlu0 %1011
      %1015 = vset.pattern.permute.xlu0 0
      %1016 = vperm.xlu0 %1015, %v990
      %v1017 = vpop.permute.xlu0 %1016
      %1020 = vset.pattern.permute.xlu0 0
      %1021 = vperm.xlu0 %1020, %v991
      %v1022 = vpop.permute.xlu0 %1021
      %1025 = vset.pattern.permute.xlu0 0
      %1026 = vperm.xlu0 %1025, %v992
      %v1027 = vpop.permute.xlu0 %1026
      %1030 = vset.pattern.permute.xlu0 0
      %1031 = vperm.xlu0 %1030, %v993
      %v1032 = vpop.permute.xlu0 %1031
      %v1034 = vmul.f32 %v977, %v997
      %v1035 = vmul.f32 %v978, %v1002
      %v1036 = vmul.f32 %v979, %v1007
      %v1037 = vmul.f32 %v980, %v1012
      %v1038 = vmul.f32 %v981, %v1017
      %v1039 = vmul.f32 %v982, %v1022
      %v1040 = vmul.f32 %v983, %v1027
      %v1041 = vmul.f32 %v984, %v1032
      %v1042 = vld [vmem:[%s7 + $0x40] sm:$0xff]
      %v1043 = vld [vmem:[%s7 + $0x48] sm:$0xff]
      %v1044 = vld [vmem:[%s7 + $0x50] sm:$0xff]
      %v1045 = vld [vmem:[%s7 + $0x58] sm:$0xff]
      %v1047 = vsel %vm512, %v1034, 0
      %v1050 = vsel %vm512, %v1035, 0
      %v1053 = vsel %vm512, %v1036, 0
      %v1056 = vsel %vm512, %v1037, 0
      %v1059 = vsel %vm512, %v1038, 0
      %v1062 = vsel %vm512, %v1039, 0
      %v1065 = vsel %vm512, %v1040, 0
      %v1068 = vsel %vm512, %v1041, 0
      %1070 = vmatpush.msra.mxu0 0.0
      %1071 = vmatpush.msra.mxu0 0.0
      %1072 = vmatpush.msra.mxu0 0.0
      %1073 = vmatpush.msra.mxu0 0.0
      %1074 = vmatpush.msra.mxu0 0.0
      %1075 = vmatpush.msra.mxu0 0.0
      %1076 = vmatpush.msra.mxu0 0.0
      %1077 = vmatpush.msra.mxu0 0.0
      %1078 = vmatpush.msra.mxu0 0.0
      %1079 = vmatpush.msra.mxu0 0.0
      %1080 = vmatpush.msra.mxu0 0.0
      %1081 = vmatpush.msra.mxu0 0.0
      %1082 = vmatpush.msra.mxu0 %v1045
      %1083 = vmatpush.msra.mxu0 %v1044
      %1084 = vmatpush.msra.mxu0 %v1043
      %1085 = vmatpush.msra.mxu0 %v1042
      %1086 = vmatmul.f32.gmra.mxu0 %v1047
      %v1087 = vpop.f32.mrf.mxu0
      %v1088 = vadd.f32 0.0, %v1087
      %1089 = vmatmul.f32.gmra.mxu0 %v1050
      %v1090 = vpop.f32.mrf.mxu0
      %v1091 = vadd.f32 0.0, %v1090
      %1092 = vmatmul.f32.gmra.mxu0 %v1053
      %v1093 = vpop.f32.mrf.mxu0
      %v1094 = vadd.f32 0.0, %v1093
      %1095 = vmatmul.f32.gmra.mxu0 %v1056
      %v1096 = vpop.f32.mrf.mxu0
      %v1097 = vadd.f32 0.0, %v1096
      %1098 = vmatmul.f32.gmra.mxu0 %v1059
      %v1099 = vpop.f32.mrf.mxu0
      %v1100 = vadd.f32 0.0, %v1099
      %1101 = vmatmul.f32.gmra.mxu0 %v1062
      %v1102 = vpop.f32.mrf.mxu0
      %v1103 = vadd.f32 0.0, %v1102
      %1104 = vmatmul.f32.gmra.mxu0 %v1065
      %v1105 = vpop.f32.mrf.mxu0
      %v1106 = vadd.f32 0.0, %v1105
      %1107 = vmatmul.f32.gmra.mxu0 %v1068
      %v1108 = vpop.f32.mrf.mxu0
      %v1109 = vadd.f32 0.0, %v1108
      %1110 = vdwg.mxu0
      %v1111 = vadd.f32 %v954, %v1088
      %v1112 = vadd.f32 %v957, %v1091
      %v1113 = vadd.f32 %v960, %v1094
      %v1114 = vadd.f32 %v963, %v1097
      %v1115 = vadd.f32 %v966, %v1100
      %v1116 = vadd.f32 %v969, %v1103
      %v1117 = vadd.f32 %v972, %v1106
      %v1118 = vadd.f32 %v975, %v1109
      %v1119 = vld [vmem:[#allocation2 + $0xf] sm:$0xff]
      %v1120 = vld [vmem:[#allocation2 + $0x17] sm:$0xff]
      %v1121 = vld [vmem:[#allocation2 + $0x1f] sm:$0xff]
      %v1122 = vld [vmem:[#allocation2 + $0x27] sm:$0xff]
      %v1123 = vld [vmem:[#allocation2 + $0x2f] sm:$0xff]
      %v1124 = vld [vmem:[#allocation2 + $0x37] sm:$0xff]
      %v1125 = vld [vmem:[#allocation2 + $0x3f] sm:$0xff]
      %v1126 = vld [vmem:[#allocation2 + $0x47] sm:$0xff]
      %s1127 = scalar_lea.vmem %s0, 192
      %v1128 = vld [vmem:[%s1127] sm:$0xff]
      %v1129 = vld [vmem:[%s1127 + $0x8] sm:$0xff]
      %v1130 = vld [vmem:[%s1127 + $0x10] sm:$0xff]
      %v1131 = vld [vmem:[%s1127 + $0x18] sm:$0xff]
      %v1132 = vld [vmem:[%s1127 + $0x20] sm:$0xff]
      %v1133 = vld [vmem:[%s1127 + $0x28] sm:$0xff]
      %v1134 = vld [vmem:[%s1127 + $0x30] sm:$0xff]
      %v1135 = vld [vmem:[%s1127 + $0x38] sm:$0xff]
      %1137 = vset.pattern.permute.xlu0 0
      %1138 = vperm.xlu0 %1137, %v1128
      %v1139 = vpop.permute.xlu0 %1138
      %1142 = vset.pattern.permute.xlu0 0
      %1143 = vperm.xlu0 %1142, %v1129
      %v1144 = vpop.permute.xlu0 %1143
      %1147 = vset.pattern.permute.xlu0 0
      %1148 = vperm.xlu0 %1147, %v1130
      %v1149 = vpop.permute.xlu0 %1148
      %1152 = vset.pattern.permute.xlu0 0
      %1153 = vperm.xlu0 %1152, %v1131
      %v1154 = vpop.permute.xlu0 %1153
      %1157 = vset.pattern.permute.xlu0 0
      %1158 = vperm.xlu0 %1157, %v1132
      %v1159 = vpop.permute.xlu0 %1158
      %1162 = vset.pattern.permute.xlu0 0
      %1163 = vperm.xlu0 %1162, %v1133
      %v1164 = vpop.permute.xlu0 %1163
      %1167 = vset.pattern.permute.xlu0 0
      %1168 = vperm.xlu0 %1167, %v1134
      %v1169 = vpop.permute.xlu0 %1168
      %1172 = vset.pattern.permute.xlu0 0
      %1173 = vperm.xlu0 %1172, %v1135
      %v1174 = vpop.permute.xlu0 %1173
      %v1176 = vmul.f32 %v1119, %v1139
      %v1177 = vmul.f32 %v1120, %v1144
      %v1178 = vmul.f32 %v1121, %v1149
      %v1179 = vmul.f32 %v1122, %v1154
      %v1180 = vmul.f32 %v1123, %v1159
      %v1181 = vmul.f32 %v1124, %v1164
      %v1182 = vmul.f32 %v1125, %v1169
      %v1183 = vmul.f32 %v1126, %v1174
      %v1184 = vld [vmem:[%s7 + $0x60] sm:$0xff]
      %v1185 = vld [vmem:[%s7 + $0x68] sm:$0xff]
      %v1186 = vld [vmem:[%s7 + $0x70] sm:$0xff]
      %v1187 = vld [vmem:[%s7 + $0x78] sm:$0xff]
      %v1189 = vsel %vm512, %v1176, 0
      %v1192 = vsel %vm512, %v1177, 0
      %v1195 = vsel %vm512, %v1178, 0
      %v1198 = vsel %vm512, %v1179, 0
      %v1201 = vsel %vm512, %v1180, 0
      %v1204 = vsel %vm512, %v1181, 0
      %v1207 = vsel %vm512, %v1182, 0
      %v1210 = vsel %vm512, %v1183, 0
      %1212 = vmatpush.msra.mxu0 0.0
      %1213 = vmatpush.msra.mxu0 0.0
      %1214 = vmatpush.msra.mxu0 0.0
      %1215 = vmatpush.msra.mxu0 0.0
      %1216 = vmatpush.msra.mxu0 0.0
      %1217 = vmatpush.msra.mxu0 0.0
      %1218 = vmatpush.msra.mxu0 0.0
      %1219 = vmatpush.msra.mxu0 0.0
      %1220 = vmatpush.msra.mxu0 0.0
      %1221 = vmatpush.msra.mxu0 0.0
      %1222 = vmatpush.msra.mxu0 0.0
      %1223 = vmatpush.msra.mxu0 0.0
      %1224 = vmatpush.msra.mxu0 %v1187
      %1225 = vmatpush.msra.mxu0 %v1186
      %1226 = vmatpush.msra.mxu0 %v1185
      %1227 = vmatpush.msra.mxu0 %v1184
      %1228 = vmatmul.f32.gmra.mxu0 %v1189
      %v1229 = vpop.f32.mrf.mxu0
      %v1230 = vadd.f32 0.0, %v1229
      %1231 = vmatmul.f32.gmra.mxu0 %v1192
      %v1232 = vpop.f32.mrf.mxu0
      %v1233 = vadd.f32 0.0, %v1232
      %1234 = vmatmul.f32.gmra.mxu0 %v1195
      %v1235 = vpop.f32.mrf.mxu0
      %v1236 = vadd.f32 0.0, %v1235
      %1237 = vmatmul.f32.gmra.mxu0 %v1198
      %v1238 = vpop.f32.mrf.mxu0
      %v1239 = vadd.f32 0.0, %v1238
      %1240 = vmatmul.f32.gmra.mxu0 %v1201
      %v1241 = vpop.f32.mrf.mxu0
      %v1242 = vadd.f32 0.0, %v1241
      %1243 = vmatmul.f32.gmra.mxu0 %v1204
      %v1244 = vpop.f32.mrf.mxu0
      %v1245 = vadd.f32 0.0, %v1244
      %1246 = vmatmul.f32.gmra.mxu0 %v1207
      %v1247 = vpop.f32.mrf.mxu0
      %v1248 = vadd.f32 0.0, %v1247
      %1249 = vmatmul.f32.gmra.mxu0 %v1210
      %v1250 = vpop.f32.mrf.mxu0
      %v1251 = vadd.f32 0.0, %v1250
      %1252 = vdwg.mxu0
      %v1253 = vadd.f32 %v1111, %v1230
      %v1254 = vadd.f32 %v1112, %v1233
      %v1255 = vadd.f32 %v1113, %v1236
      %v1256 = vadd.f32 %v1114, %v1239
      %v1257 = vadd.f32 %v1115, %v1242
      %v1258 = vadd.f32 %v1116, %v1245
      %v1259 = vadd.f32 %v1117, %v1248
      %v1260 = vadd.f32 %v1118, %v1251
      %v1261 = vld [vmem:[#allocation2 + $0x10] sm:$0xff]
      %v1262 = vld [vmem:[#allocation2 + $0x18] sm:$0xff]
      %v1263 = vld [vmem:[#allocation2 + $0x20] sm:$0xff]
      %v1264 = vld [vmem:[#allocation2 + $0x28] sm:$0xff]
      %v1265 = vld [vmem:[#allocation2 + $0x30] sm:$0xff]
      %v1266 = vld [vmem:[#allocation2 + $0x38] sm:$0xff]
      %v1267 = vld [vmem:[#allocation2 + $0x40] sm:$0xff]
      %v1268 = vld [vmem:[#allocation2 + $0x48] sm:$0xff]
      %v1269 = vld [vmem:[%s7 + $0x80] sm:$0xff]
      %v1270 = vld [vmem:[%s7 + $0x88] sm:$0xff]
      %v1271 = vld [vmem:[%s7 + $0x90] sm:$0xff]
      %v1272 = vld [vmem:[%s7 + $0x98] sm:$0xff]
      %v1274 = vsel %vm512, %v1261, 0
      %v1277 = vsel %vm512, %v1262, 0
      %v1280 = vsel %vm512, %v1263, 0
      %v1283 = vsel %vm512, %v1264, 0
      %v1286 = vsel %vm512, %v1265, 0
      %v1289 = vsel %vm512, %v1266, 0
      %v1292 = vsel %vm512, %v1267, 0
      %v1295 = vsel %vm512, %v1268, 0
      %1297 = vmatpush.msra.mxu0 0.0
      %1298 = vmatpush.msra.mxu0 0.0
      %1299 = vmatpush.msra.mxu0 0.0
      %1300 = vmatpush.msra.mxu0 0.0
      %1301 = vmatpush.msra.mxu0 0.0
      %1302 = vmatpush.msra.mxu0 0.0
      %1303 = vmatpush.msra.mxu0 0.0
      %1304 = vmatpush.msra.mxu0 0.0
      %1305 = vmatpush.msra.mxu0 0.0
      %1306 = vmatpush.msra.mxu0 0.0
      %1307 = vmatpush.msra.mxu0 0.0
      %1308 = vmatpush.msra.mxu0 0.0
      %1309 = vmatpush.msra.mxu0 %v1272
      %1310 = vmatpush.msra.mxu0 %v1271
      %1311 = vmatpush.msra.mxu0 %v1270
      %1312 = vmatpush.msra.mxu0 %v1269
      %1313 = vmatmul.f32.gmra.mxu0 %v1274
      %v1314 = vpop.f32.mrf.mxu0
      %v1315 = vadd.f32 0.0, %v1314
      %1316 = vmatmul.f32.gmra.mxu0 %v1277
      %v1317 = vpop.f32.mrf.mxu0
      %v1318 = vadd.f32 0.0, %v1317
      %1319 = vmatmul.f32.gmra.mxu0 %v1280
      %v1320 = vpop.f32.mrf.mxu0
      %v1321 = vadd.f32 0.0, %v1320
      %1322 = vmatmul.f32.gmra.mxu0 %v1283
      %v1323 = vpop.f32.mrf.mxu0
      %v1324 = vadd.f32 0.0, %v1323
      %1325 = vmatmul.f32.gmra.mxu0 %v1286
      %v1326 = vpop.f32.mrf.mxu0
      %v1327 = vadd.f32 0.0, %v1326
      %1328 = vmatmul.f32.gmra.mxu0 %v1289
      %v1329 = vpop.f32.mrf.mxu0
      %v1330 = vadd.f32 0.0, %v1329
      %1331 = vmatmul.f32.gmra.mxu0 %v1292
      %v1332 = vpop.f32.mrf.mxu0
      %v1333 = vadd.f32 0.0, %v1332
      %1334 = vmatmul.f32.gmra.mxu0 %v1295
      %v1335 = vpop.f32.mrf.mxu0
      %v1336 = vadd.f32 0.0, %v1335
      %1337 = vdwg.mxu0
      %v1338 = vadd.f32 %v1253, %v1315
      %v1339 = vadd.f32 %v1254, %v1318
      %v1340 = vadd.f32 %v1255, %v1321
      %v1341 = vadd.f32 %v1256, %v1324
      %v1342 = vadd.f32 %v1257, %v1327
      %v1343 = vadd.f32 %v1258, %v1330
      %v1344 = vadd.f32 %v1259, %v1333
      %v1345 = vadd.f32 %v1260, %v1336
      %v1346 = vld [vmem:[#allocation2 + $0x11] sm:$0xff]
      %v1347 = vld [vmem:[#allocation2 + $0x19] sm:$0xff]
      %v1348 = vld [vmem:[#allocation2 + $0x21] sm:$0xff]
      %v1349 = vld [vmem:[#allocation2 + $0x29] sm:$0xff]
      %v1350 = vld [vmem:[#allocation2 + $0x31] sm:$0xff]
      %v1351 = vld [vmem:[#allocation2 + $0x39] sm:$0xff]
      %v1352 = vld [vmem:[#allocation2 + $0x41] sm:$0xff]
      %v1353 = vld [vmem:[#allocation2 + $0x49] sm:$0xff]
      %s1354 = scalar_lea.vmem %s0, 320
      %v1355 = vld [vmem:[%s1354] sm:$0xff]
      %v1356 = vld [vmem:[%s1354 + $0x8] sm:$0xff]
      %v1357 = vld [vmem:[%s1354 + $0x10] sm:$0xff]
      %v1358 = vld [vmem:[%s1354 + $0x18] sm:$0xff]
      %v1359 = vld [vmem:[%s1354 + $0x20] sm:$0xff]
      %v1360 = vld [vmem:[%s1354 + $0x28] sm:$0xff]
      %v1361 = vld [vmem:[%s1354 + $0x30] sm:$0xff]
      %v1362 = vld [vmem:[%s1354 + $0x38] sm:$0xff]
      %1364 = vset.pattern.permute.xlu0 0
      %1365 = vperm.xlu0 %1364, %v1355
      %v1366 = vpop.permute.xlu0 %1365
      %1369 = vset.pattern.permute.xlu0 0
      %1370 = vperm.xlu0 %1369, %v1356
      %v1371 = vpop.permute.xlu0 %1370
      %1374 = vset.pattern.permute.xlu0 0
      %1375 = vperm.xlu0 %1374, %v1357
      %v1376 = vpop.permute.xlu0 %1375
      %1379 = vset.pattern.permute.xlu0 0
      %1380 = vperm.xlu0 %1379, %v1358
      %v1381 = vpop.permute.xlu0 %1380
      %1384 = vset.pattern.permute.xlu0 0
      %1385 = vperm.xlu0 %1384, %v1359
      %v1386 = vpop.permute.xlu0 %1385
      %1389 = vset.pattern.permute.xlu0 0
      %1390 = vperm.xlu0 %1389, %v1360
      %v1391 = vpop.permute.xlu0 %1390
      %1394 = vset.pattern.permute.xlu0 0
      %1395 = vperm.xlu0 %1394, %v1361
      %v1396 = vpop.permute.xlu0 %1395
      %1399 = vset.pattern.permute.xlu0 0
      %1400 = vperm.xlu0 %1399, %v1362
      %v1401 = vpop.permute.xlu0 %1400
      %v1403 = vmul.f32 %v1346, %v1366
      %v1404 = vmul.f32 %v1347, %v1371
      %v1405 = vmul.f32 %v1348, %v1376
      %v1406 = vmul.f32 %v1349, %v1381
      %v1407 = vmul.f32 %v1350, %v1386
      %v1408 = vmul.f32 %v1351, %v1391
      %v1409 = vmul.f32 %v1352, %v1396
      %v1410 = vmul.f32 %v1353, %v1401
      %v1411 = vld [vmem:[%s7 + $0xa0] sm:$0xff]
      %v1412 = vld [vmem:[%s7 + $0xa8] sm:$0xff]
      %v1413 = vld [vmem:[%s7 + $0xb0] sm:$0xff]
      %v1414 = vld [vmem:[%s7 + $0xb8] sm:$0xff]
      %v1416 = vsel %vm512, %v1403, 0
      %v1419 = vsel %vm512, %v1404, 0
      %v1422 = vsel %vm512, %v1405, 0
      %v1425 = vsel %vm512, %v1406, 0
      %v1428 = vsel %vm512, %v1407, 0
      %v1431 = vsel %vm512, %v1408, 0
      %v1434 = vsel %vm512, %v1409, 0
      %v1437 = vsel %vm512, %v1410, 0
      %1439 = vmatpush.msra.mxu0 0.0
      %1440 = vmatpush.msra.mxu0 0.0
      %1441 = vmatpush.msra.mxu0 0.0
      %1442 = vmatpush.msra.mxu0 0.0
      %1443 = vmatpush.msra.mxu0 0.0
      %1444 = vmatpush.msra.mxu0 0.0
      %1445 = vmatpush.msra.mxu0 0.0
      %1446 = vmatpush.msra.mxu0 0.0
      %1447 = vmatpush.msra.mxu0 0.0
      %1448 = vmatpush.msra.mxu0 0.0
      %1449 = vmatpush.msra.mxu0 0.0
      %1450 = vmatpush.msra.mxu0 0.0
      %1451 = vmatpush.msra.mxu0 %v1414
      %1452 = vmatpush.msra.mxu0 %v1413
      %1453 = vmatpush.msra.mxu0 %v1412
      %1454 = vmatpush.msra.mxu0 %v1411
      %1455 = vmatmul.f32.gmra.mxu0 %v1416
      %v1456 = vpop.f32.mrf.mxu0
      %v1457 = vadd.f32 0.0, %v1456
      %1458 = vmatmul.f32.gmra.mxu0 %v1419
      %v1459 = vpop.f32.mrf.mxu0
      %v1460 = vadd.f32 0.0, %v1459
      %1461 = vmatmul.f32.gmra.mxu0 %v1422
      %v1462 = vpop.f32.mrf.mxu0
      %v1463 = vadd.f32 0.0, %v1462
      %1464 = vmatmul.f32.gmra.mxu0 %v1425
      %v1465 = vpop.f32.mrf.mxu0
      %v1466 = vadd.f32 0.0, %v1465
      %1467 = vmatmul.f32.gmra.mxu0 %v1428
      %v1468 = vpop.f32.mrf.mxu0
      %v1469 = vadd.f32 0.0, %v1468
      %1470 = vmatmul.f32.gmra.mxu0 %v1431
      %v1471 = vpop.f32.mrf.mxu0
      %v1472 = vadd.f32 0.0, %v1471
      %1473 = vmatmul.f32.gmra.mxu0 %v1434
      %v1474 = vpop.f32.mrf.mxu0
      %v1475 = vadd.f32 0.0, %v1474
      %1476 = vmatmul.f32.gmra.mxu0 %v1437
      %v1477 = vpop.f32.mrf.mxu0
      %v1478 = vadd.f32 0.0, %v1477
      %1479 = vdwg.mxu0
      %v1480 = vadd.f32 %v1338, %v1457
      %v1481 = vadd.f32 %v1339, %v1460
      %v1482 = vadd.f32 %v1340, %v1463
      %v1483 = vadd.f32 %v1341, %v1466
      %v1484 = vadd.f32 %v1342, %v1469
      %v1485 = vadd.f32 %v1343, %v1472
      %v1486 = vadd.f32 %v1344, %v1475
      %v1487 = vadd.f32 %v1345, %v1478
      %v1488 = vld [vmem:[#allocation2 + $0x17] sm:$0xff]
      %v1489 = vld [vmem:[#allocation2 + $0x1f] sm:$0xff]
      %v1490 = vld [vmem:[#allocation2 + $0x27] sm:$0xff]
      %v1491 = vld [vmem:[#allocation2 + $0x2f] sm:$0xff]
      %v1492 = vld [vmem:[#allocation2 + $0x37] sm:$0xff]
      %v1493 = vld [vmem:[#allocation2 + $0x3f] sm:$0xff]
      %v1494 = vld [vmem:[#allocation2 + $0x47] sm:$0xff]
      %v1495 = vld [vmem:[#allocation2 + $0x4f] sm:$0xff]
      %s1496 = scalar_lea.vmem %s0, 384
      %v1497 = vld [vmem:[%s1496] sm:$0xff]
      %v1498 = vld [vmem:[%s1496 + $0x8] sm:$0xff]
      %v1499 = vld [vmem:[%s1496 + $0x10] sm:$0xff]
      %v1500 = vld [vmem:[%s1496 + $0x18] sm:$0xff]
      %v1501 = vld [vmem:[%s1496 + $0x20] sm:$0xff]
      %v1502 = vld [vmem:[%s1496 + $0x28] sm:$0xff]
      %v1503 = vld [vmem:[%s1496 + $0x30] sm:$0xff]
      %v1504 = vld [vmem:[%s1496 + $0x38] sm:$0xff]
      %1506 = vset.pattern.permute.xlu0 0
      %1507 = vperm.xlu0 %1506, %v1497
      %v1508 = vpop.permute.xlu0 %1507
      %1511 = vset.pattern.permute.xlu0 0
      %1512 = vperm.xlu0 %1511, %v1498
      %v1513 = vpop.permute.xlu0 %1512
      %1516 = vset.pattern.permute.xlu0 0
      %1517 = vperm.xlu0 %1516, %v1499
      %v1518 = vpop.permute.xlu0 %1517
      %1521 = vset.pattern.permute.xlu0 0
      %1522 = vperm.xlu0 %1521, %v1500
      %v1523 = vpop.permute.xlu0 %1522
      %1526 = vset.pattern.permute.xlu0 0
      %1527 = vperm.xlu0 %1526, %v1501
      %v1528 = vpop.permute.xlu0 %1527
      %1531 = vset.pattern.permute.xlu0 0
      %1532 = vperm.xlu0 %1531, %v1502
      %v1533 = vpop.permute.xlu0 %1532
      %1536 = vset.pattern.permute.xlu0 0
      %1537 = vperm.xlu0 %1536, %v1503
      %v1538 = vpop.permute.xlu0 %1537
      %1541 = vset.pattern.permute.xlu0 0
      %1542 = vperm.xlu0 %1541, %v1504
      %v1543 = vpop.permute.xlu0 %1542
      %v1545 = vmul.f32 %v1488, %v1508
      %v1546 = vmul.f32 %v1489, %v1513
      %v1547 = vmul.f32 %v1490, %v1518
      %v1548 = vmul.f32 %v1491, %v1523
      %v1549 = vmul.f32 %v1492, %v1528
      %v1550 = vmul.f32 %v1493, %v1533
      %v1551 = vmul.f32 %v1494, %v1538
      %v1552 = vmul.f32 %v1495, %v1543
      %v1553 = vld [vmem:[%s7 + $0xc0] sm:$0xff]
      %v1554 = vld [vmem:[%s7 + $0xc8] sm:$0xff]
      %v1555 = vld [vmem:[%s7 + $0xd0] sm:$0xff]
      %v1556 = vld [vmem:[%s7 + $0xd8] sm:$0xff]
      %v1558 = vsel %vm512, %v1545, 0
      %v1561 = vsel %vm512, %v1546, 0
      %v1564 = vsel %vm512, %v1547, 0
      %v1567 = vsel %vm512, %v1548, 0
      %v1570 = vsel %vm512, %v1549, 0
      %v1573 = vsel %vm512, %v1550, 0
      %v1576 = vsel %vm512, %v1551, 0
      %v1579 = vsel %vm512, %v1552, 0
      %1581 = vmatpush.msra.mxu0 0.0
      %1582 = vmatpush.msra.mxu0 0.0
      %1583 = vmatpush.msra.mxu0 0.0
      %1584 = vmatpush.msra.mxu0 0.0
      %1585 = vmatpush.msra.mxu0 0.0
      %1586 = vmatpush.msra.mxu0 0.0
      %1587 = vmatpush.msra.mxu0 0.0
      %1588 = vmatpush.msra.mxu0 0.0
      %1589 = vmatpush.msra.mxu0 0.0
      %1590 = vmatpush.msra.mxu0 0.0
      %1591 = vmatpush.msra.mxu0 0.0
      %1592 = vmatpush.msra.mxu0 0.0
      %1593 = vmatpush.msra.mxu0 %v1556
      %1594 = vmatpush.msra.mxu0 %v1555
      %1595 = vmatpush.msra.mxu0 %v1554
      %1596 = vmatpush.msra.mxu0 %v1553
      %1597 = vmatmul.f32.gmra.mxu0 %v1558
      %v1598 = vpop.f32.mrf.mxu0
      %v1599 = vadd.f32 0.0, %v1598
      %1600 = vmatmul.f32.gmra.mxu0 %v1561
      %v1601 = vpop.f32.mrf.mxu0
      %v1602 = vadd.f32 0.0, %v1601
      %1603 = vmatmul.f32.gmra.mxu0 %v1564
      %v1604 = vpop.f32.mrf.mxu0
      %v1605 = vadd.f32 0.0, %v1604
      %1606 = vmatmul.f32.gmra.mxu0 %v1567
      %v1607 = vpop.f32.mrf.mxu0
      %v1608 = vadd.f32 0.0, %v1607
      %1609 = vmatmul.f32.gmra.mxu0 %v1570
      %v1610 = vpop.f32.mrf.mxu0
      %v1611 = vadd.f32 0.0, %v1610
      %1612 = vmatmul.f32.gmra.mxu0 %v1573
      %v1613 = vpop.f32.mrf.mxu0
      %v1614 = vadd.f32 0.0, %v1613
      %1615 = vmatmul.f32.gmra.mxu0 %v1576
      %v1616 = vpop.f32.mrf.mxu0
      %v1617 = vadd.f32 0.0, %v1616
      %1618 = vmatmul.f32.gmra.mxu0 %v1579
      %v1619 = vpop.f32.mrf.mxu0
      %v1620 = vadd.f32 0.0, %v1619
      %1621 = vdwg.mxu0
      %v1622 = vadd.f32 %v1480, %v1599
      %v1623 = vadd.f32 %v1481, %v1602
      %v1624 = vadd.f32 %v1482, %v1605
      %v1625 = vadd.f32 %v1483, %v1608
      %v1626 = vadd.f32 %v1484, %v1611
      %v1627 = vadd.f32 %v1485, %v1614
      %v1628 = vadd.f32 %v1486, %v1617
      %v1629 = vadd.f32 %v1487, %v1620
      %v1630 = vld [vmem:[#allocation2 + $0x18] sm:$0xff]
      %v1631 = vld [vmem:[#allocation2 + $0x20] sm:$0xff]
      %v1632 = vld [vmem:[#allocation2 + $0x28] sm:$0xff]
      %v1633 = vld [vmem:[#allocation2 + $0x30] sm:$0xff]
      %v1634 = vld [vmem:[#allocation2 + $0x38] sm:$0xff]
      %v1635 = vld [vmem:[#allocation2 + $0x40] sm:$0xff]
      %v1636 = vld [vmem:[#allocation2 + $0x48] sm:$0xff]
      %v1637 = vld [vmem:[#allocation2 + $0x50] sm:$0xff]
      %s1638 = scalar_lea.vmem %s0, 448
      %v1639 = vld [vmem:[%s1638] sm:$0xff]
      %v1640 = vld [vmem:[%s1638 + $0x8] sm:$0xff]
      %v1641 = vld [vmem:[%s1638 + $0x10] sm:$0xff]
      %v1642 = vld [vmem:[%s1638 + $0x18] sm:$0xff]
      %v1643 = vld [vmem:[%s1638 + $0x20] sm:$0xff]
      %v1644 = vld [vmem:[%s1638 + $0x28] sm:$0xff]
      %v1645 = vld [vmem:[%s1638 + $0x30] sm:$0xff]
      %v1646 = vld [vmem:[%s1638 + $0x38] sm:$0xff]
      %1648 = vset.pattern.permute.xlu0 0
      %1649 = vperm.xlu0 %1648, %v1639
      %v1650 = vpop.permute.xlu0 %1649
      %1653 = vset.pattern.permute.xlu0 0
      %1654 = vperm.xlu0 %1653, %v1640
      %v1655 = vpop.permute.xlu0 %1654
      %1658 = vset.pattern.permute.xlu0 0
      %1659 = vperm.xlu0 %1658, %v1641
      %v1660 = vpop.permute.xlu0 %1659
      %1663 = vset.pattern.permute.xlu0 0
      %1664 = vperm.xlu0 %1663, %v1642
      %v1665 = vpop.permute.xlu0 %1664
      %1668 = vset.pattern.permute.xlu0 0
      %1669 = vperm.xlu0 %1668, %v1643
      %v1670 = vpop.permute.xlu0 %1669
      %1673 = vset.pattern.permute.xlu0 0
      %1674 = vperm.xlu0 %1673, %v1644
      %v1675 = vpop.permute.xlu0 %1674
      %1678 = vset.pattern.permute.xlu0 0
      %1679 = vperm.xlu0 %1678, %v1645
      %v1680 = vpop.permute.xlu0 %1679
      %1683 = vset.pattern.permute.xlu0 0
      %1684 = vperm.xlu0 %1683, %v1646
      %v1685 = vpop.permute.xlu0 %1684
      %v1687 = vmul.f32 %v1630, %v1650
      %v1688 = vmul.f32 %v1631, %v1655
      %v1689 = vmul.f32 %v1632, %v1660
      %v1690 = vmul.f32 %v1633, %v1665
      %v1691 = vmul.f32 %v1634, %v1670
      %v1692 = vmul.f32 %v1635, %v1675
      %v1693 = vmul.f32 %v1636, %v1680
      %v1694 = vmul.f32 %v1637, %v1685
      %v1695 = vld [vmem:[%s7 + $0xe0] sm:$0xff]
      %v1696 = vld [vmem:[%s7 + $0xe8] sm:$0xff]
      %v1697 = vld [vmem:[%s7 + $0xf0] sm:$0xff]
      %v1698 = vld [vmem:[%s7 + $0xf8] sm:$0xff]
      %v1700 = vsel %vm512, %v1687, 0
      %v1703 = vsel %vm512, %v1688, 0
      %v1706 = vsel %vm512, %v1689, 0
      %v1709 = vsel %vm512, %v1690, 0
      %v1712 = vsel %vm512, %v1691, 0
      %v1715 = vsel %vm512, %v1692, 0
      %v1718 = vsel %vm512, %v1693, 0
      %v1721 = vsel %vm512, %v1694, 0
      %1723 = vmatpush.msra.mxu0 0.0
      %1724 = vmatpush.msra.mxu0 0.0
      %1725 = vmatpush.msra.mxu0 0.0
      %1726 = vmatpush.msra.mxu0 0.0
      %1727 = vmatpush.msra.mxu0 0.0
      %1728 = vmatpush.msra.mxu0 0.0
      %1729 = vmatpush.msra.mxu0 0.0
      %1730 = vmatpush.msra.mxu0 0.0
      %1731 = vmatpush.msra.mxu0 0.0
      %1732 = vmatpush.msra.mxu0 0.0
      %1733 = vmatpush.msra.mxu0 0.0
      %1734 = vmatpush.msra.mxu0 0.0
      %1735 = vmatpush.msra.mxu0 %v1698
      %1736 = vmatpush.msra.mxu0 %v1697
      %1737 = vmatpush.msra.mxu0 %v1696
      %1738 = vmatpush.msra.mxu0 %v1695
      %1739 = vmatmul.f32.gmra.mxu0 %v1700
      %v1740 = vpop.f32.mrf.mxu0
      %v1741 = vadd.f32 0.0, %v1740
      %1742 = vmatmul.f32.gmra.mxu0 %v1703
      %v1743 = vpop.f32.mrf.mxu0
      %v1744 = vadd.f32 0.0, %v1743
      %1745 = vmatmul.f32.gmra.mxu0 %v1706
      %v1746 = vpop.f32.mrf.mxu0
      %v1747 = vadd.f32 0.0, %v1746
      %1748 = vmatmul.f32.gmra.mxu0 %v1709
      %v1749 = vpop.f32.mrf.mxu0
      %v1750 = vadd.f32 0.0, %v1749
      %1751 = vmatmul.f32.gmra.mxu0 %v1712
      %v1752 = vpop.f32.mrf.mxu0
      %v1753 = vadd.f32 0.0, %v1752
      %1754 = vmatmul.f32.gmra.mxu0 %v1715
      %v1755 = vpop.f32.mrf.mxu0
      %v1756 = vadd.f32 0.0, %v1755
      %1757 = vmatmul.f32.gmra.mxu0 %v1718
      %v1758 = vpop.f32.mrf.mxu0
      %v1759 = vadd.f32 0.0, %v1758
      %1760 = vmatmul.f32.gmra.mxu0 %v1721
      %v1761 = vpop.f32.mrf.mxu0
      %v1762 = vadd.f32 0.0, %v1761
      %1763 = vdwg.mxu0
      %v1764 = vadd.f32 %v1622, %v1741
      %v1765 = vadd.f32 %v1623, %v1744
      %v1766 = vadd.f32 %v1624, %v1747
      %v1767 = vadd.f32 %v1625, %v1750
      %v1768 = vadd.f32 %v1626, %v1753
      %v1769 = vadd.f32 %v1627, %v1756
      %v1770 = vadd.f32 %v1628, %v1759
      %v1771 = vadd.f32 %v1629, %v1762
      %v1772 = vld [vmem:[#allocation2 + $0x19] sm:$0xff]
      %v1773 = vld [vmem:[#allocation2 + $0x21] sm:$0xff]
      %v1774 = vld [vmem:[#allocation2 + $0x29] sm:$0xff]
      %v1775 = vld [vmem:[#allocation2 + $0x31] sm:$0xff]
      %v1776 = vld [vmem:[#allocation2 + $0x39] sm:$0xff]
      %v1777 = vld [vmem:[#allocation2 + $0x41] sm:$0xff]
      %v1778 = vld [vmem:[#allocation2 + $0x49] sm:$0xff]
      %v1779 = vld [vmem:[#allocation2 + $0x51] sm:$0xff]
      %s1780 = scalar_lea.vmem %s0, 512
      %v1781 = vld [vmem:[%s1780] sm:$0xff]
      %v1782 = vld [vmem:[%s1780 + $0x8] sm:$0xff]
      %v1783 = vld [vmem:[%s1780 + $0x10] sm:$0xff]
      %v1784 = vld [vmem:[%s1780 + $0x18] sm:$0xff]
      %v1785 = vld [vmem:[%s1780 + $0x20] sm:$0xff]
      %v1786 = vld [vmem:[%s1780 + $0x28] sm:$0xff]
      %v1787 = vld [vmem:[%s1780 + $0x30] sm:$0xff]
      %v1788 = vld [vmem:[%s1780 + $0x38] sm:$0xff]
      %1790 = vset.pattern.permute.xlu0 0
      %1791 = vperm.xlu0 %1790, %v1781
      %v1792 = vpop.permute.xlu0 %1791
      %1795 = vset.pattern.permute.xlu0 0
      %1796 = vperm.xlu0 %1795, %v1782
      %v1797 = vpop.permute.xlu0 %1796
      %1800 = vset.pattern.permute.xlu0 0
      %1801 = vperm.xlu0 %1800, %v1783
      %v1802 = vpop.permute.xlu0 %1801
      %1805 = vset.pattern.permute.xlu0 0
      %1806 = vperm.xlu0 %1805, %v1784
      %v1807 = vpop.permute.xlu0 %1806
      %1810 = vset.pattern.permute.xlu0 0
      %1811 = vperm.xlu0 %1810, %v1785
      %v1812 = vpop.permute.xlu0 %1811
      %1815 = vset.pattern.permute.xlu0 0
      %1816 = vperm.xlu0 %1815, %v1786
      %v1817 = vpop.permute.xlu0 %1816
      %1820 = vset.pattern.permute.xlu0 0
      %1821 = vperm.xlu0 %1820, %v1787
      %v1822 = vpop.permute.xlu0 %1821
      %1825 = vset.pattern.permute.xlu0 0
      %1826 = vperm.xlu0 %1825, %v1788
      %v1827 = vpop.permute.xlu0 %1826
      %v1829 = vmul.f32 %v1772, %v1792
      %v1830 = vmul.f32 %v1773, %v1797
      %v1831 = vmul.f32 %v1774, %v1802
      %v1832 = vmul.f32 %v1775, %v1807
      %v1833 = vmul.f32 %v1776, %v1812
      %v1834 = vmul.f32 %v1777, %v1817
      %v1835 = vmul.f32 %v1778, %v1822
      %v1836 = vmul.f32 %v1779, %v1827
      %v1837 = vld [vmem:[%s7 + $0x100] sm:$0xff]
      %v1838 = vld [vmem:[%s7 + $0x108] sm:$0xff]
      %v1839 = vld [vmem:[%s7 + $0x110] sm:$0xff]
      %v1840 = vld [vmem:[%s7 + $0x118] sm:$0xff]
      %v1842 = vsel %vm512, %v1829, 0
      %v1845 = vsel %vm512, %v1830, 0
      %v1848 = vsel %vm512, %v1831, 0
      %v1851 = vsel %vm512, %v1832, 0
      %v1854 = vsel %vm512, %v1833, 0
      %v1857 = vsel %vm512, %v1834, 0
      %v1860 = vsel %vm512, %v1835, 0
      %v1863 = vsel %vm512, %v1836, 0
      %1865 = vmatpush.msra.mxu0 0.0
      %1866 = vmatpush.msra.mxu0 0.0
      %1867 = vmatpush.msra.mxu0 0.0
      %1868 = vmatpush.msra.mxu0 0.0
      %1869 = vmatpush.msra.mxu0 0.0
      %1870 = vmatpush.msra.mxu0 0.0
      %1871 = vmatpush.msra.mxu0 0.0
      %1872 = vmatpush.msra.mxu0 0.0
      %1873 = vmatpush.msra.mxu0 0.0
      %1874 = vmatpush.msra.mxu0 0.0
      %1875 = vmatpush.msra.mxu0 0.0
      %1876 = vmatpush.msra.mxu0 0.0
      %1877 = vmatpush.msra.mxu0 %v1840
      %1878 = vmatpush.msra.mxu0 %v1839
      %1879 = vmatpush.msra.mxu0 %v1838
      %1880 = vmatpush.msra.mxu0 %v1837
      %1881 = vmatmul.f32.gmra.mxu0 %v1842
      %v1882 = vpop.f32.mrf.mxu0
      %v1883 = vadd.f32 0.0, %v1882
      %1884 = vmatmul.f32.gmra.mxu0 %v1845
      %v1885 = vpop.f32.mrf.mxu0
      %v1886 = vadd.f32 0.0, %v1885
      %1887 = vmatmul.f32.gmra.mxu0 %v1848
      %v1888 = vpop.f32.mrf.mxu0
      %v1889 = vadd.f32 0.0, %v1888
      %1890 = vmatmul.f32.gmra.mxu0 %v1851
      %v1891 = vpop.f32.mrf.mxu0
      %v1892 = vadd.f32 0.0, %v1891
      %1893 = vmatmul.f32.gmra.mxu0 %v1854
      %v1894 = vpop.f32.mrf.mxu0
      %v1895 = vadd.f32 0.0, %v1894
      %1896 = vmatmul.f32.gmra.mxu0 %v1857
      %v1897 = vpop.f32.mrf.mxu0
      %v1898 = vadd.f32 0.0, %v1897
      %1899 = vmatmul.f32.gmra.mxu0 %v1860
      %v1900 = vpop.f32.mrf.mxu0
      %v1901 = vadd.f32 0.0, %v1900
      %1902 = vmatmul.f32.gmra.mxu0 %v1863
      %v1903 = vpop.f32.mrf.mxu0
      %v1904 = vadd.f32 0.0, %v1903
      %1905 = vdwg.mxu0
      %v1906 = vadd.f32 %v1764, %v1883
      %v1907 = vadd.f32 %v1765, %v1886
      %v1908 = vadd.f32 %v1766, %v1889
      %v1909 = vadd.f32 %v1767, %v1892
      %v1910 = vadd.f32 %v1768, %v1895
      %v1911 = vadd.f32 %v1769, %v1898
      %v1912 = vadd.f32 %v1770, %v1901
      %v1913 = vadd.f32 %v1771, %v1904
      %v1914 = vld [vmem:[%s8] sm:$0x1]
      %v1916 = vperm.slane %v1914, 0
      %v1918 = vmul.f32 %v1906, %v1916
      %v1919 = vmul.f32 %v1907, %v1916
      %v1920 = vmul.f32 %v1908, %v1916
      %v1921 = vmul.f32 %v1909, %v1916
      %v1922 = vmul.f32 %v1910, %v1916
      %v1923 = vmul.f32 %v1911, %v1916
      %v1924 = vmul.f32 %v1912, %v1916
      %v1925 = vmul.f32 %v1913, %v1916
      %v1926 = vld [vmem:[%s9] sm:$0x1]
      %v1928 = vperm.slane %v1926, 0
      %v1930 = vadd.f32 %v1918, %v1928
      %v1931 = vadd.f32 %v1919, %v1928
      %v1932 = vadd.f32 %v1920, %v1928
      %v1933 = vadd.f32 %v1921, %v1928
      %v1934 = vadd.f32 %v1922, %v1928
      %v1935 = vadd.f32 %v1923, %v1928
      %v1936 = vadd.f32 %v1924, %v1928
      %v1937 = vadd.f32 %v1925, %v1928
      %v1938 = vmax.f32 %v1930, 0.0
      %v1939 = vmax.f32 %v1931, 0.0
      %v1940 = vmax.f32 %v1932, 0.0
      %v1941 = vmax.f32 %v1933, 0.0
      %v1942 = vmax.f32 %v1934, 0.0
      %v1943 = vmax.f32 %v1935, 0.0
      %v1944 = vmax.f32 %v1936, 0.0
      %v1945 = vmax.f32 %v1937, 0.0
      %1946 = vst.msk [vmem:[#allocation2 + $0x10] sm:$0xff] %vm512, %v1938
      %1947 = vst.msk [vmem:[#allocation2 + $0x18] sm:$0xff] %vm512, %v1939
      %1948 = vst.msk [vmem:[#allocation2 + $0x20] sm:$0xff] %vm512, %v1940
      %1949 = vst.msk [vmem:[#allocation2 + $0x28] sm:$0xff] %vm512, %v1941
      %1950 = vst.msk [vmem:[#allocation2 + $0x30] sm:$0xff] %vm512, %v1942
      %1951 = vst.msk [vmem:[#allocation2 + $0x38] sm:$0xff] %vm512, %v1943
      %1952 = vst.msk [vmem:[#allocation2 + $0x40] sm:$0xff] %vm512, %v1944
      %1953 = vst.msk [vmem:[#allocation2 + $0x48] sm:$0xff] %vm512, %v1945
      %v1954 = vld [vmem:[#allocation2 + $0x7] sm:$0xff]
      %v1955 = vld [vmem:[#allocation2 + $0xf] sm:$0xff]
      %v1956 = vld [vmem:[#allocation2 + $0x17] sm:$0xff]
      %v1957 = vld [vmem:[#allocation2 + $0x1f] sm:$0xff]
      %v1958 = vld [vmem:[#allocation2 + $0x27] sm:$0xff]
      %v1959 = vld [vmem:[#allocation2 + $0x2f] sm:$0xff]
      %v1960 = vld [vmem:[#allocation2 + $0x37] sm:$0xff]
      %v1961 = vld [vmem:[#allocation2 + $0x3f] sm:$0xff]
      %v1962 = vld [vmem:[%s0] sm:$0xff]
      %v1963 = vld [vmem:[%s0 + $0x8] sm:$0xff]
      %v1964 = vld [vmem:[%s0 + $0x10] sm:$0xff]
      %v1965 = vld [vmem:[%s0 + $0x18] sm:$0xff]
      %v1966 = vld [vmem:[%s0 + $0x20] sm:$0xff]
      %v1967 = vld [vmem:[%s0 + $0x28] sm:$0xff]
      %v1968 = vld [vmem:[%s0 + $0x30] sm:$0xff]
      %v1969 = vld [vmem:[%s0 + $0x38] sm:$0xff]
      %1971 = vset.pattern.permute.xlu0 0
      %1972 = vperm.xlu0 %1971, %v1962
      %v1973 = vpop.permute.xlu0 %1972
      %1976 = vset.pattern.permute.xlu0 0
      %1977 = vperm.xlu0 %1976, %v1963
      %v1978 = vpop.permute.xlu0 %1977
      %1981 = vset.pattern.permute.xlu0 0
      %1982 = vperm.xlu0 %1981, %v1964
      %v1983 = vpop.permute.xlu0 %1982
      %1986 = vset.pattern.permute.xlu0 0
      %1987 = vperm.xlu0 %1986, %v1965
      %v1988 = vpop.permute.xlu0 %1987
      %1991 = vset.pattern.permute.xlu0 0
      %1992 = vperm.xlu0 %1991, %v1966
      %v1993 = vpop.permute.xlu0 %1992
      %1996 = vset.pattern.permute.xlu0 0
      %1997 = vperm.xlu0 %1996, %v1967
      %v1998 = vpop.permute.xlu0 %1997
      %2001 = vset.pattern.permute.xlu0 0
      %2002 = vperm.xlu0 %2001, %v1968
      %v2003 = vpop.permute.xlu0 %2002
      %2006 = vset.pattern.permute.xlu0 0
      %2007 = vperm.xlu0 %2006, %v1969
      %v2008 = vpop.permute.xlu0 %2007
      %v2010 = vmul.f32 %v1954, %v1973
      %v2011 = vmul.f32 %v1955, %v1978
      %v2012 = vmul.f32 %v1956, %v1983
      %v2013 = vmul.f32 %v1957, %v1988
      %v2014 = vmul.f32 %v1958, %v1993
      %v2015 = vmul.f32 %v1959, %v1998
      %v2016 = vmul.f32 %v1960, %v2003
      %v2017 = vmul.f32 %v1961, %v2008
      %v2018 = vld [vmem:[%s10] sm:$0xff]
      %v2019 = vld [vmem:[%s10 + $0x8] sm:$0xff]
      %v2020 = vld [vmem:[%s10 + $0x10] sm:$0xff]
      %v2021 = vld [vmem:[%s10 + $0x18] sm:$0xff]
      %v2022 = vld [vmem:[#allocation2 + $0x8] sm:$0xff]
      %v2023 = vld [vmem:[#allocation2 + $0x10] sm:$0xff]
      %v2024 = vld [vmem:[#allocation2 + $0x18] sm:$0xff]
      %v2025 = vld [vmem:[#allocation2 + $0x20] sm:$0xff]
      %v2026 = vld [vmem:[#allocation2 + $0x28] sm:$0xff]
      %v2027 = vld [vmem:[#allocation2 + $0x30] sm:$0xff]
      %v2028 = vld [vmem:[#allocation2 + $0x38] sm:$0xff]
      %v2029 = vld [vmem:[#allocation2 + $0x40] sm:$0xff]
      %v2030 = vld [vmem:[%s786] sm:$0xff]
      %v2031 = vld [vmem:[%s786 + $0x8] sm:$0xff]
      %v2032 = vld [vmem:[%s786 + $0x10] sm:$0xff]
      %v2033 = vld [vmem:[%s786 + $0x18] sm:$0xff]
      %v2034 = vld [vmem:[%s786 + $0x20] sm:$0xff]
      %v2035 = vld [vmem:[%s786 + $0x28] sm:$0xff]
      %v2036 = vld [vmem:[%s786 + $0x30] sm:$0xff]
      %v2037 = vld [vmem:[%s786 + $0x38] sm:$0xff]
      %2039 = vset.pattern.permute.xlu0 0
      %2040 = vperm.xlu0 %2039, %v2030
      %v2041 = vpop.permute.xlu0 %2040
      %2044 = vset.pattern.permute.xlu0 0
      %2045 = vperm.xlu0 %2044, %v2031
      %v2046 = vpop.permute.xlu0 %2045
      %2049 = vset.pattern.permute.xlu0 0
      %2050 = vperm.xlu0 %2049, %v2032
      %v2051 = vpop.permute.xlu0 %2050
      %2054 = vset.pattern.permute.xlu0 0
      %2055 = vperm.xlu0 %2054, %v2033
      %v2056 = vpop.permute.xlu0 %2055
      %2059 = vset.pattern.permute.xlu0 0
      %2060 = vperm.xlu0 %2059, %v2034
      %v2061 = vpop.permute.xlu0 %2060
      %2064 = vset.pattern.permute.xlu0 0
      %2065 = vperm.xlu0 %2064, %v2035
      %v2066 = vpop.permute.xlu0 %2065
      %2069 = vset.pattern.permute.xlu0 0
      %2070 = vperm.xlu0 %2069, %v2036
      %v2071 = vpop.permute.xlu0 %2070
      %2074 = vset.pattern.permute.xlu0 0
      %2075 = vperm.xlu0 %2074, %v2037
      %v2076 = vpop.permute.xlu0 %2075
      %v2078 = vmul.f32 %v2022, %v2041
      %v2079 = vmul.f32 %v2023, %v2046
      %v2080 = vmul.f32 %v2024, %v2051
      %v2081 = vmul.f32 %v2025, %v2056
      %v2082 = vmul.f32 %v2026, %v2061
      %v2083 = vmul.f32 %v2027, %v2066
      %v2084 = vmul.f32 %v2028, %v2071
      %v2085 = vmul.f32 %v2029, %v2076
      %v2086 = vld [vmem:[%s10 + $0x20] sm:$0xff]
      %v2087 = vld [vmem:[%s10 + $0x28] sm:$0xff]
      %v2088 = vld [vmem:[%s10 + $0x30] sm:$0xff]
      %v2089 = vld [vmem:[%s10 + $0x38] sm:$0xff]
      %v2091 = vsel %vm512, %v2078, 0
      %v2094 = vsel %vm512, %v2079, 0
      %v2097 = vsel %vm512, %v2080, 0
      %v2100 = vsel %vm512, %v2081, 0
      %v2103 = vsel %vm512, %v2082, 0
      %v2106 = vsel %vm512, %v2083, 0
      %v2109 = vsel %vm512, %v2084, 0
      %v2112 = vsel %vm512, %v2085, 0
      %2114 = vmatpush.msra.mxu0 0.0
      %2115 = vmatpush.msra.mxu0 0.0
      %2116 = vmatpush.msra.mxu0 0.0
      %2117 = vmatpush.msra.mxu0 0.0
      %2118 = vmatpush.msra.mxu0 0.0
      %2119 = vmatpush.msra.mxu0 0.0
      %2120 = vmatpush.msra.mxu0 0.0
      %2121 = vmatpush.msra.mxu0 0.0
      %2122 = vmatpush.msra.mxu0 0.0
      %2123 = vmatpush.msra.mxu0 0.0
      %2124 = vmatpush.msra.mxu0 0.0
      %2125 = vmatpush.msra.mxu0 0.0
      %2126 = vmatpush.msra.mxu0 %v2089
      %2127 = vmatpush.msra.mxu0 %v2088
      %2128 = vmatpush.msra.mxu0 %v2087
      %2129 = vmatpush.msra.mxu0 %v2086
      %2130 = vmatmul.f32.gmra.mxu0 %v2091
      %v2131 = vpop.f32.mrf.mxu0
      %v2132 = vadd.f32 0.0, %v2131
      %2133 = vmatmul.f32.gmra.mxu0 %v2094
      %v2134 = vpop.f32.mrf.mxu0
      %v2135 = vadd.f32 0.0, %v2134
      %2136 = vmatmul.f32.gmra.mxu0 %v2097
      %v2137 = vpop.f32.mrf.mxu0
      %v2138 = vadd.f32 0.0, %v2137
      %2139 = vmatmul.f32.gmra.mxu0 %v2100
      %v2140 = vpop.f32.mrf.mxu0
      %v2141 = vadd.f32 0.0, %v2140
      %2142 = vmatmul.f32.gmra.mxu0 %v2103
      %v2143 = vpop.f32.mrf.mxu0
      %v2144 = vadd.f32 0.0, %v2143
      %2145 = vmatmul.f32.gmra.mxu0 %v2106
      %v2146 = vpop.f32.mrf.mxu0
      %v2147 = vadd.f32 0.0, %v2146
      %2148 = vmatmul.f32.gmra.mxu0 %v2109
      %v2149 = vpop.f32.mrf.mxu0
      %v2150 = vadd.f32 0.0, %v2149
      %2151 = vmatmul.f32.gmra.mxu0 %v2112
      %v2152 = vpop.f32.mrf.mxu0
      %v2153 = vadd.f32 0.0, %v2152
      %2154 = vdwg.mxu0
      %v2156 = vsel %vm512, %v2010, 0
      %v2159 = vsel %vm512, %v2011, 0
      %v2162 = vsel %vm512, %v2012, 0
      %v2165 = vsel %vm512, %v2013, 0
      %v2168 = vsel %vm512, %v2014, 0
      %v2171 = vsel %vm512, %v2015, 0
      %v2174 = vsel %vm512, %v2016, 0
      %v2177 = vsel %vm512, %v2017, 0
      %2179 = vmatpush.msra.mxu0 0.0
      %2180 = vmatpush.msra.mxu0 0.0
      %2181 = vmatpush.msra.mxu0 0.0
      %2182 = vmatpush.msra.mxu0 0.0
      %2183 = vmatpush.msra.mxu0 0.0
      %2184 = vmatpush.msra.mxu0 0.0
      %2185 = vmatpush.msra.mxu0 0.0
      %2186 = vmatpush.msra.mxu0 0.0
      %2187 = vmatpush.msra.mxu0 0.0
      %2188 = vmatpush.msra.mxu0 0.0
      %2189 = vmatpush.msra.mxu0 0.0
      %2190 = vmatpush.msra.mxu0 0.0
      %2191 = vmatpush.msra.mxu0 %v2021
      %2192 = vmatpush.msra.mxu0 %v2020
      %2193 = vmatpush.msra.mxu0 %v2019
      %2194 = vmatpush.msra.mxu0 %v2018
      %2195 = vmatmul.f32.gmra.mxu0 %v2156
      %v2196 = vpop.f32.mrf.mxu0
      %v2197 = vadd.f32 %v2132, %v2196
      %2198 = vmatmul.f32.gmra.mxu0 %v2159
      %v2199 = vpop.f32.mrf.mxu0
      %v2200 = vadd.f32 %v2135, %v2199
      %2201 = vmatmul.f32.gmra.mxu0 %v2162
      %v2202 = vpop.f32.mrf.mxu0
      %v2203 = vadd.f32 %v2138, %v2202
      %2204 = vmatmul.f32.gmra.mxu0 %v2165
      %v2205 = vpop.f32.mrf.mxu0
      %v2206 = vadd.f32 %v2141, %v2205
      %2207 = vmatmul.f32.gmra.mxu0 %v2168
      %v2208 = vpop.f32.mrf.mxu0
      %v2209 = vadd.f32 %v2144, %v2208
      %2210 = vmatmul.f32.gmra.mxu0 %v2171
      %v2211 = vpop.f32.mrf.mxu0
      %v2212 = vadd.f32 %v2147, %v2211
      %2213 = vmatmul.f32.gmra.mxu0 %v2174
      %v2214 = vpop.f32.mrf.mxu0
      %v2215 = vadd.f32 %v2150, %v2214
      %2216 = vmatmul.f32.gmra.mxu0 %v2177
      %v2217 = vpop.f32.mrf.mxu0
      %v2218 = vadd.f32 %v2153, %v2217
      %2219 = vdwg.mxu0
      %v2220 = vld [vmem:[#allocation2 + $0x9] sm:$0xff]
      %v2221 = vld [vmem:[#allocation2 + $0x11] sm:$0xff]
      %v2222 = vld [vmem:[#allocation2 + $0x19] sm:$0xff]
      %v2223 = vld [vmem:[#allocation2 + $0x21] sm:$0xff]
      %v2224 = vld [vmem:[#allocation2 + $0x29] sm:$0xff]
      %v2225 = vld [vmem:[#allocation2 + $0x31] sm:$0xff]
      %v2226 = vld [vmem:[#allocation2 + $0x39] sm:$0xff]
      %v2227 = vld [vmem:[#allocation2 + $0x41] sm:$0xff]
      %v2228 = vld [vmem:[%s985] sm:$0xff]
      %v2229 = vld [vmem:[%s985 + $0x8] sm:$0xff]
      %v2230 = vld [vmem:[%s985 + $0x10] sm:$0xff]
      %v2231 = vld [vmem:[%s985 + $0x18] sm:$0xff]
      %v2232 = vld [vmem:[%s985 + $0x20] sm:$0xff]
      %v2233 = vld [vmem:[%s985 + $0x28] sm:$0xff]
      %v2234 = vld [vmem:[%s985 + $0x30] sm:$0xff]
      %v2235 = vld [vmem:[%s985 + $0x38] sm:$0xff]
      %2237 = vset.pattern.permute.xlu0 0
      %2238 = vperm.xlu0 %2237, %v2228
      %v2239 = vpop.permute.xlu0 %2238
      %2242 = vset.pattern.permute.xlu0 0
      %2243 = vperm.xlu0 %2242, %v2229
      %v2244 = vpop.permute.xlu0 %2243
      %2247 = vset.pattern.permute.xlu0 0
      %2248 = vperm.xlu0 %2247, %v2230
      %v2249 = vpop.permute.xlu0 %2248
      %2252 = vset.pattern.permute.xlu0 0
      %2253 = vperm.xlu0 %2252, %v2231
      %v2254 = vpop.permute.xlu0 %2253
      %2257 = vset.pattern.permute.xlu0 0
      %2258 = vperm.xlu0 %2257, %v2232
      %v2259 = vpop.permute.xlu0 %2258
      %2262 = vset.pattern.permute.xlu0 0
      %2263 = vperm.xlu0 %2262, %v2233
      %v2264 = vpop.permute.xlu0 %2263
      %2267 = vset.pattern.permute.xlu0 0
      %2268 = vperm.xlu0 %2267, %v2234
      %v2269 = vpop.permute.xlu0 %2268
      %2272 = vset.pattern.permute.xlu0 0
      %2273 = vperm.xlu0 %2272, %v2235
      %v2274 = vpop.permute.xlu0 %2273
      %v2276 = vmul.f32 %v2220, %v2239
      %v2277 = vmul.f32 %v2221, %v2244
      %v2278 = vmul.f32 %v2222, %v2249
      %v2279 = vmul.f32 %v2223, %v2254
      %v2280 = vmul.f32 %v2224, %v2259
      %v2281 = vmul.f32 %v2225, %v2264
      %v2282 = vmul.f32 %v2226, %v2269
      %v2283 = vmul.f32 %v2227, %v2274
      %v2284 = vld [vmem:[%s10 + $0x40] sm:$0xff]
      %v2285 = vld [vmem:[%s10 + $0x48] sm:$0xff]
      %v2286 = vld [vmem:[%s10 + $0x50] sm:$0xff]
      %v2287 = vld [vmem:[%s10 + $0x58] sm:$0xff]
      %v2289 = vsel %vm512, %v2276, 0
      %v2292 = vsel %vm512, %v2277, 0
      %v2295 = vsel %vm512, %v2278, 0
      %v2298 = vsel %vm512, %v2279, 0
      %v2301 = vsel %vm512, %v2280, 0
      %v2304 = vsel %vm512, %v2281, 0
      %v2307 = vsel %vm512, %v2282, 0
      %v2310 = vsel %vm512, %v2283, 0
      %2312 = vmatpush.msra.mxu0 0.0
      %2313 = vmatpush.msra.mxu0 0.0
      %2314 = vmatpush.msra.mxu0 0.0
      %2315 = vmatpush.msra.mxu0 0.0
      %2316 = vmatpush.msra.mxu0 0.0
      %2317 = vmatpush.msra.mxu0 0.0
      %2318 = vmatpush.msra.mxu0 0.0
      %2319 = vmatpush.msra.mxu0 0.0
      %2320 = vmatpush.msra.mxu0 0.0
      %2321 = vmatpush.msra.mxu0 0.0
      %2322 = vmatpush.msra.mxu0 0.0
      %2323 = vmatpush.msra.mxu0 0.0
      %2324 = vmatpush.msra.mxu0 %v2287
      %2325 = vmatpush.msra.mxu0 %v2286
      %2326 = vmatpush.msra.mxu0 %v2285
      %2327 = vmatpush.msra.mxu0 %v2284
      %2328 = vmatmul.f32.gmra.mxu0 %v2289
      %v2329 = vpop.f32.mrf.mxu0
      %v2330 = vadd.f32 0.0, %v2329
      %2331 = vmatmul.f32.gmra.mxu0 %v2292
      %v2332 = vpop.f32.mrf.mxu0
      %v2333 = vadd.f32 0.0, %v2332
      %2334 = vmatmul.f32.gmra.mxu0 %v2295
      %v2335 = vpop.f32.mrf.mxu0
      %v2336 = vadd.f32 0.0, %v2335
      %2337 = vmatmul.f32.gmra.mxu0 %v2298
      %v2338 = vpop.f32.mrf.mxu0
      %v2339 = vadd.f32 0.0, %v2338
      %2340 = vmatmul.f32.gmra.mxu0 %v2301
      %v2341 = vpop.f32.mrf.mxu0
      %v2342 = vadd.f32 0.0, %v2341
      %2343 = vmatmul.f32.gmra.mxu0 %v2304
      %v2344 = vpop.f32.mrf.mxu0
      %v2345 = vadd.f32 0.0, %v2344
      %2346 = vmatmul.f32.gmra.mxu0 %v2307
      %v2347 = vpop.f32.mrf.mxu0
      %v2348 = vadd.f32 0.0, %v2347
      %2349 = vmatmul.f32.gmra.mxu0 %v2310
      %v2350 = vpop.f32.mrf.mxu0
      %v2351 = vadd.f32 0.0, %v2350
      %2352 = vdwg.mxu0
      %v2353 = vadd.f32 %v2197, %v2330
      %v2354 = vadd.f32 %v2200, %v2333
      %v2355 = vadd.f32 %v2203, %v2336
      %v2356 = vadd.f32 %v2206, %v2339
      %v2357 = vadd.f32 %v2209, %v2342
      %v2358 = vadd.f32 %v2212, %v2345
      %v2359 = vadd.f32 %v2215, %v2348
      %v2360 = vadd.f32 %v2218, %v2351
      %v2361 = vld [vmem:[#allocation2 + $0xf] sm:$0xff]
      %v2362 = vld [vmem:[#allocation2 + $0x17] sm:$0xff]
      %v2363 = vld [vmem:[#allocation2 + $0x1f] sm:$0xff]
      %v2364 = vld [vmem:[#allocation2 + $0x27] sm:$0xff]
      %v2365 = vld [vmem:[#allocation2 + $0x2f] sm:$0xff]
      %v2366 = vld [vmem:[#allocation2 + $0x37] sm:$0xff]
      %v2367 = vld [vmem:[#allocation2 + $0x3f] sm:$0xff]
      %v2368 = vld [vmem:[#allocation2 + $0x47] sm:$0xff]
      %v2369 = vld [vmem:[%s1127] sm:$0xff]
      %v2370 = vld [vmem:[%s1127 + $0x8] sm:$0xff]
      %v2371 = vld [vmem:[%s1127 + $0x10] sm:$0xff]
      %v2372 = vld [vmem:[%s1127 + $0x18] sm:$0xff]
      %v2373 = vld [vmem:[%s1127 + $0x20] sm:$0xff]
      %v2374 = vld [vmem:[%s1127 + $0x28] sm:$0xff]
      %v2375 = vld [vmem:[%s1127 + $0x30] sm:$0xff]
      %v2376 = vld [vmem:[%s1127 + $0x38] sm:$0xff]
      %2378 = vset.pattern.permute.xlu0 0
      %2379 = vperm.xlu0 %2378, %v2369
      %v2380 = vpop.permute.xlu0 %2379
      %2383 = vset.pattern.permute.xlu0 0
      %2384 = vperm.xlu0 %2383, %v2370
      %v2385 = vpop.permute.xlu0 %2384
      %2388 = vset.pattern.permute.xlu0 0
      %2389 = vperm.xlu0 %2388, %v2371
      %v2390 = vpop.permute.xlu0 %2389
      %2393 = vset.pattern.permute.xlu0 0
      %2394 = vperm.xlu0 %2393, %v2372
      %v2395 = vpop.permute.xlu0 %2394
      %2398 = vset.pattern.permute.xlu0 0
      %2399 = vperm.xlu0 %2398, %v2373
      %v2400 = vpop.permute.xlu0 %2399
      %2403 = vset.pattern.permute.xlu0 0
      %2404 = vperm.xlu0 %2403, %v2374
      %v2405 = vpop.permute.xlu0 %2404
      %2408 = vset.pattern.permute.xlu0 0
      %2409 = vperm.xlu0 %2408, %v2375
      %v2410 = vpop.permute.xlu0 %2409
      %2413 = vset.pattern.permute.xlu0 0
      %2414 = vperm.xlu0 %2413, %v2376
      %v2415 = vpop.permute.xlu0 %2414
      %v2417 = vmul.f32 %v2361, %v2380
      %v2418 = vmul.f32 %v2362, %v2385
      %v2419 = vmul.f32 %v2363, %v2390
      %v2420 = vmul.f32 %v2364, %v2395
      %v2421 = vmul.f32 %v2365, %v2400
      %v2422 = vmul.f32 %v2366, %v2405
      %v2423 = vmul.f32 %v2367, %v2410
      %v2424 = vmul.f32 %v2368, %v2415
      %v2425 = vld [vmem:[%s10 + $0x60] sm:$0xff]
      %v2426 = vld [vmem:[%s10 + $0x68] sm:$0xff]
      %v2427 = vld [vmem:[%s10 + $0x70] sm:$0xff]
      %v2428 = vld [vmem:[%s10 + $0x78] sm:$0xff]
      %v2430 = vsel %vm512, %v2417, 0
      %v2433 = vsel %vm512, %v2418, 0
      %v2436 = vsel %vm512, %v2419, 0
      %v2439 = vsel %vm512, %v2420, 0
      %v2442 = vsel %vm512, %v2421, 0
      %v2445 = vsel %vm512, %v2422, 0
      %v2448 = vsel %vm512, %v2423, 0
      %v2451 = vsel %vm512, %v2424, 0
      %2453 = vmatpush.msra.mxu0 0.0
      %2454 = vmatpush.msra.mxu0 0.0
      %2455 = vmatpush.msra.mxu0 0.0
      %2456 = vmatpush.msra.mxu0 0.0
      %2457 = vmatpush.msra.mxu0 0.0
      %2458 = vmatpush.msra.mxu0 0.0
      %2459 = vmatpush.msra.mxu0 0.0
      %2460 = vmatpush.msra.mxu0 0.0
      %2461 = vmatpush.msra.mxu0 0.0
      %2462 = vmatpush.msra.mxu0 0.0
      %2463 = vmatpush.msra.mxu0 0.0
      %2464 = vmatpush.msra.mxu0 0.0
      %2465 = vmatpush.msra.mxu0 %v2428
      %2466 = vmatpush.msra.mxu0 %v2427
      %2467 = vmatpush.msra.mxu0 %v2426
      %2468 = vmatpush.msra.mxu0 %v2425
      %2469 = vmatmul.f32.gmra.mxu0 %v2430
      %v2470 = vpop.f32.mrf.mxu0
      %v2471 = vadd.f32 0.0, %v2470
      %2472 = vmatmul.f32.gmra.mxu0 %v2433
      %v2473 = vpop.f32.mrf.mxu0
      %v2474 = vadd.f32 0.0, %v2473
      %2475 = vmatmul.f32.gmra.mxu0 %v2436
      %v2476 = vpop.f32.mrf.mxu0
      %v2477 = vadd.f32 0.0, %v2476
      %2478 = vmatmul.f32.gmra.mxu0 %v2439
      %v2479 = vpop.f32.mrf.mxu0
      %v2480 = vadd.f32 0.0, %v2479
      %2481 = vmatmul.f32.gmra.mxu0 %v2442
      %v2482 = vpop.f32.mrf.mxu0
      %v2483 = vadd.f32 0.0, %v2482
      %2484 = vmatmul.f32.gmra.mxu0 %v2445
      %v2485 = vpop.f32.mrf.mxu0
      %v2486 = vadd.f32 0.0, %v2485
      %2487 = vmatmul.f32.gmra.mxu0 %v2448
      %v2488 = vpop.f32.mrf.mxu0
      %v2489 = vadd.f32 0.0, %v2488
      %2490 = vmatmul.f32.gmra.mxu0 %v2451
      %v2491 = vpop.f32.mrf.mxu0
      %v2492 = vadd.f32 0.0, %v2491
      %2493 = vdwg.mxu0
      %v2494 = vadd.f32 %v2353, %v2471
      %v2495 = vadd.f32 %v2354, %v2474
      %v2496 = vadd.f32 %v2355, %v2477
      %v2497 = vadd.f32 %v2356, %v2480
      %v2498 = vadd.f32 %v2357, %v2483
      %v2499 = vadd.f32 %v2358, %v2486
      %v2500 = vadd.f32 %v2359, %v2489
      %v2501 = vadd.f32 %v2360, %v2492
      %v2502 = vld [vmem:[#allocation2 + $0x10] sm:$0xff]
      %v2503 = vld [vmem:[#allocation2 + $0x18] sm:$0xff]
      %v2504 = vld [vmem:[#allocation2 + $0x20] sm:$0xff]
      %v2505 = vld [vmem:[#allocation2 + $0x28] sm:$0xff]
      %v2506 = vld [vmem:[#allocation2 + $0x30] sm:$0xff]
      %v2507 = vld [vmem:[#allocation2 + $0x38] sm:$0xff]
      %v2508 = vld [vmem:[#allocation2 + $0x40] sm:$0xff]
      %v2509 = vld [vmem:[#allocation2 + $0x48] sm:$0xff]
      %v2510 = vld [vmem:[%s10 + $0x80] sm:$0xff]
      %v2511 = vld [vmem:[%s10 + $0x88] sm:$0xff]
      %v2512 = vld [vmem:[%s10 + $0x90] sm:$0xff]
      %v2513 = vld [vmem:[%s10 + $0x98] sm:$0xff]
      %v2515 = vsel %vm512, %v2502, 0
      %v2518 = vsel %vm512, %v2503, 0
      %v2521 = vsel %vm512, %v2504, 0
      %v2524 = vsel %vm512, %v2505, 0
      %v2527 = vsel %vm512, %v2506, 0
      %v2530 = vsel %vm512, %v2507, 0
      %v2533 = vsel %vm512, %v2508, 0
      %v2536 = vsel %vm512, %v2509, 0
      %2538 = vmatpush.msra.mxu0 0.0
      %2539 = vmatpush.msra.mxu0 0.0
      %2540 = vmatpush.msra.mxu0 0.0
      %2541 = vmatpush.msra.mxu0 0.0
      %2542 = vmatpush.msra.mxu0 0.0
      %2543 = vmatpush.msra.mxu0 0.0
      %2544 = vmatpush.msra.mxu0 0.0
      %2545 = vmatpush.msra.mxu0 0.0
      %2546 = vmatpush.msra.mxu0 0.0
      %2547 = vmatpush.msra.mxu0 0.0
      %2548 = vmatpush.msra.mxu0 0.0
      %2549 = vmatpush.msra.mxu0 0.0
      %2550 = vmatpush.msra.mxu0 %v2513
      %2551 = vmatpush.msra.mxu0 %v2512
      %2552 = vmatpush.msra.mxu0 %v2511
      %2553 = vmatpush.msra.mxu0 %v2510
      %2554 = vmatmul.f32.gmra.mxu0 %v2515
      %v2555 = vpop.f32.mrf.mxu0
      %v2556 = vadd.f32 0.0, %v2555
      %2557 = vmatmul.f32.gmra.mxu0 %v2518
      %v2558 = vpop.f32.mrf.mxu0
      %v2559 = vadd.f32 0.0, %v2558
      %2560 = vmatmul.f32.gmra.mxu0 %v2521
      %v2561 = vpop.f32.mrf.mxu0
      %v2562 = vadd.f32 0.0, %v2561
      %2563 = vmatmul.f32.gmra.mxu0 %v2524
      %v2564 = vpop.f32.mrf.mxu0
      %v2565 = vadd.f32 0.0, %v2564
      %2566 = vmatmul.f32.gmra.mxu0 %v2527
      %v2567 = vpop.f32.mrf.mxu0
      %v2568 = vadd.f32 0.0, %v2567
      %2569 = vmatmul.f32.gmra.mxu0 %v2530
      %v2570 = vpop.f32.mrf.mxu0
      %v2571 = vadd.f32 0.0, %v2570
      %2572 = vmatmul.f32.gmra.mxu0 %v2533
      %v2573 = vpop.f32.mrf.mxu0
      %v2574 = vadd.f32 0.0, %v2573
      %2575 = vmatmul.f32.gmra.mxu0 %v2536
      %v2576 = vpop.f32.mrf.mxu0
      %v2577 = vadd.f32 0.0, %v2576
      %2578 = vdwg.mxu0
      %v2579 = vadd.f32 %v2494, %v2556
      %v2580 = vadd.f32 %v2495, %v2559
      %v2581 = vadd.f32 %v2496, %v2562
      %v2582 = vadd.f32 %v2497, %v2565
      %v2583 = vadd.f32 %v2498, %v2568
      %v2584 = vadd.f32 %v2499, %v2571
      %v2585 = vadd.f32 %v2500, %v2574
      %v2586 = vadd.f32 %v2501, %v2577
      %v2587 = vld [vmem:[#allocation2 + $0x11] sm:$0xff]
      %v2588 = vld [vmem:[#allocation2 + $0x19] sm:$0xff]
      %v2589 = vld [vmem:[#allocation2 + $0x21] sm:$0xff]
      %v2590 = vld [vmem:[#allocation2 + $0x29] sm:$0xff]
      %v2591 = vld [vmem:[#allocation2 + $0x31] sm:$0xff]
      %v2592 = vld [vmem:[#allocation2 + $0x39] sm:$0xff]
      %v2593 = vld [vmem:[#allocation2 + $0x41] sm:$0xff]
      %v2594 = vld [vmem:[#allocation2 + $0x49] sm:$0xff]
      %v2595 = vld [vmem:[%s1354] sm:$0xff]
      %v2596 = vld [vmem:[%s1354 + $0x8] sm:$0xff]
      %v2597 = vld [vmem:[%s1354 + $0x10] sm:$0xff]
      %v2598 = vld [vmem:[%s1354 + $0x18] sm:$0xff]
      %v2599 = vld [vmem:[%s1354 + $0x20] sm:$0xff]
      %v2600 = vld [vmem:[%s1354 + $0x28] sm:$0xff]
      %v2601 = vld [vmem:[%s1354 + $0x30] sm:$0xff]
      %v2602 = vld [vmem:[%s1354 + $0x38] sm:$0xff]
      %2604 = vset.pattern.permute.xlu0 0
      %2605 = vperm.xlu0 %2604, %v2595
      %v2606 = vpop.permute.xlu0 %2605
      %2609 = vset.pattern.permute.xlu0 0
      %2610 = vperm.xlu0 %2609, %v2596
      %v2611 = vpop.permute.xlu0 %2610
      %2614 = vset.pattern.permute.xlu0 0
      %2615 = vperm.xlu0 %2614, %v2597
      %v2616 = vpop.permute.xlu0 %2615
      %2619 = vset.pattern.permute.xlu0 0
      %2620 = vperm.xlu0 %2619, %v2598
      %v2621 = vpop.permute.xlu0 %2620
      %2624 = vset.pattern.permute.xlu0 0
      %2625 = vperm.xlu0 %2624, %v2599
      %v2626 = vpop.permute.xlu0 %2625
      %2629 = vset.pattern.permute.xlu0 0
      %2630 = vperm.xlu0 %2629, %v2600
      %v2631 = vpop.permute.xlu0 %2630
      %2634 = vset.pattern.permute.xlu0 0
      %2635 = vperm.xlu0 %2634, %v2601
      %v2636 = vpop.permute.xlu0 %2635
      %2639 = vset.pattern.permute.xlu0 0
      %2640 = vperm.xlu0 %2639, %v2602
      %v2641 = vpop.permute.xlu0 %2640
      %v2643 = vmul.f32 %v2587, %v2606
      %v2644 = vmul.f32 %v2588, %v2611
      %v2645 = vmul.f32 %v2589, %v2616
      %v2646 = vmul.f32 %v2590, %v2621
      %v2647 = vmul.f32 %v2591, %v2626
      %v2648 = vmul.f32 %v2592, %v2631
      %v2649 = vmul.f32 %v2593, %v2636
      %v2650 = vmul.f32 %v2594, %v2641
      %v2651 = vld [vmem:[%s10 + $0xa0] sm:$0xff]
      %v2652 = vld [vmem:[%s10 + $0xa8] sm:$0xff]
      %v2653 = vld [vmem:[%s10 + $0xb0] sm:$0xff]
      %v2654 = vld [vmem:[%s10 + $0xb8] sm:$0xff]
      %v2656 = vsel %vm512, %v2643, 0
      %v2659 = vsel %vm512, %v2644, 0
      %v2662 = vsel %vm512, %v2645, 0
      %v2665 = vsel %vm512, %v2646, 0
      %v2668 = vsel %vm512, %v2647, 0
      %v2671 = vsel %vm512, %v2648, 0
      %v2674 = vsel %vm512, %v2649, 0
      %v2677 = vsel %vm512, %v2650, 0
      %2679 = vmatpush.msra.mxu0 0.0
      %2680 = vmatpush.msra.mxu0 0.0
      %2681 = vmatpush.msra.mxu0 0.0
      %2682 = vmatpush.msra.mxu0 0.0
      %2683 = vmatpush.msra.mxu0 0.0
      %2684 = vmatpush.msra.mxu0 0.0
      %2685 = vmatpush.msra.mxu0 0.0
      %2686 = vmatpush.msra.mxu0 0.0
      %2687 = vmatpush.msra.mxu0 0.0
      %2688 = vmatpush.msra.mxu0 0.0
      %2689 = vmatpush.msra.mxu0 0.0
      %2690 = vmatpush.msra.mxu0 0.0
      %2691 = vmatpush.msra.mxu0 %v2654
      %2692 = vmatpush.msra.mxu0 %v2653
      %2693 = vmatpush.msra.mxu0 %v2652
      %2694 = vmatpush.msra.mxu0 %v2651
      %2695 = vmatmul.f32.gmra.mxu0 %v2656
      %v2696 = vpop.f32.mrf.mxu0
      %v2697 = vadd.f32 0.0, %v2696
      %2698 = vmatmul.f32.gmra.mxu0 %v2659
      %v2699 = vpop.f32.mrf.mxu0
      %v2700 = vadd.f32 0.0, %v2699
      %2701 = vmatmul.f32.gmra.mxu0 %v2662
      %v2702 = vpop.f32.mrf.mxu0
      %v2703 = vadd.f32 0.0, %v2702
      %2704 = vmatmul.f32.gmra.mxu0 %v2665
      %v2705 = vpop.f32.mrf.mxu0
      %v2706 = vadd.f32 0.0, %v2705
      %2707 = vmatmul.f32.gmra.mxu0 %v2668
      %v2708 = vpop.f32.mrf.mxu0
      %v2709 = vadd.f32 0.0, %v2708
      %2710 = vmatmul.f32.gmra.mxu0 %v2671
      %v2711 = vpop.f32.mrf.mxu0
      %v2712 = vadd.f32 0.0, %v2711
      %2713 = vmatmul.f32.gmra.mxu0 %v2674
      %v2714 = vpop.f32.mrf.mxu0
      %v2715 = vadd.f32 0.0, %v2714
      %2716 = vmatmul.f32.gmra.mxu0 %v2677
      %v2717 = vpop.f32.mrf.mxu0
      %v2718 = vadd.f32 0.0, %v2717
      %2719 = vdwg.mxu0
      %v2720 = vadd.f32 %v2579, %v2697
      %v2721 = vadd.f32 %v2580, %v2700
      %v2722 = vadd.f32 %v2581, %v2703
      %v2723 = vadd.f32 %v2582, %v2706
      %v2724 = vadd.f32 %v2583, %v2709
      %v2725 = vadd.f32 %v2584, %v2712
      %v2726 = vadd.f32 %v2585, %v2715
      %v2727 = vadd.f32 %v2586, %v2718
      %v2728 = vld [vmem:[#allocation2 + $0x17] sm:$0xff]
      %v2729 = vld [vmem:[#allocation2 + $0x1f] sm:$0xff]
      %v2730 = vld [vmem:[#allocation2 + $0x27] sm:$0xff]
      %v2731 = vld [vmem:[#allocation2 + $0x2f] sm:$0xff]
      %v2732 = vld [vmem:[#allocation2 + $0x37] sm:$0xff]
      %v2733 = vld [vmem:[#allocation2 + $0x3f] sm:$0xff]
      %v2734 = vld [vmem:[#allocation2 + $0x47] sm:$0xff]
      %v2735 = vld [vmem:[#allocation2 + $0x4f] sm:$0xff]
      %v2736 = vld [vmem:[%s1496] sm:$0xff]
      %v2737 = vld [vmem:[%s1496 + $0x8] sm:$0xff]
      %v2738 = vld [vmem:[%s1496 + $0x10] sm:$0xff]
      %v2739 = vld [vmem:[%s1496 + $0x18] sm:$0xff]
      %v2740 = vld [vmem:[%s1496 + $0x20] sm:$0xff]
      %v2741 = vld [vmem:[%s1496 + $0x28] sm:$0xff]
      %v2742 = vld [vmem:[%s1496 + $0x30] sm:$0xff]
      %v2743 = vld [vmem:[%s1496 + $0x38] sm:$0xff]
      %2745 = vset.pattern.permute.xlu0 0
      %2746 = vperm.xlu0 %2745, %v2736
      %v2747 = vpop.permute.xlu0 %2746
      %2750 = vset.pattern.permute.xlu0 0
      %2751 = vperm.xlu0 %2750, %v2737
      %v2752 = vpop.permute.xlu0 %2751
      %2755 = vset.pattern.permute.xlu0 0
      %2756 = vperm.xlu0 %2755, %v2738
      %v2757 = vpop.permute.xlu0 %2756
      %2760 = vset.pattern.permute.xlu0 0
      %2761 = vperm.xlu0 %2760, %v2739
      %v2762 = vpop.permute.xlu0 %2761
      %2765 = vset.pattern.permute.xlu0 0
      %2766 = vperm.xlu0 %2765, %v2740
      %v2767 = vpop.permute.xlu0 %2766
      %2770 = vset.pattern.permute.xlu0 0
      %2771 = vperm.xlu0 %2770, %v2741
      %v2772 = vpop.permute.xlu0 %2771
      %2775 = vset.pattern.permute.xlu0 0
      %2776 = vperm.xlu0 %2775, %v2742
      %v2777 = vpop.permute.xlu0 %2776
      %2780 = vset.pattern.permute.xlu0 0
      %2781 = vperm.xlu0 %2780, %v2743
      %v2782 = vpop.permute.xlu0 %2781
      %v2784 = vmul.f32 %v2728, %v2747
      %v2785 = vmul.f32 %v2729, %v2752
      %v2786 = vmul.f32 %v2730, %v2757
      %v2787 = vmul.f32 %v2731, %v2762
      %v2788 = vmul.f32 %v2732, %v2767
      %v2789 = vmul.f32 %v2733, %v2772
      %v2790 = vmul.f32 %v2734, %v2777
      %v2791 = vmul.f32 %v2735, %v2782
      %v2792 = vld [vmem:[%s10 + $0xc0] sm:$0xff]
      %v2793 = vld [vmem:[%s10 + $0xc8] sm:$0xff]
      %v2794 = vld [vmem:[%s10 + $0xd0] sm:$0xff]
      %v2795 = vld [vmem:[%s10 + $0xd8] sm:$0xff]
      %v2797 = vsel %vm512, %v2784, 0
      %v2800 = vsel %vm512, %v2785, 0
      %v2803 = vsel %vm512, %v2786, 0
      %v2806 = vsel %vm512, %v2787, 0
      %v2809 = vsel %vm512, %v2788, 0
      %v2812 = vsel %vm512, %v2789, 0
      %v2815 = vsel %vm512, %v2790, 0
      %v2818 = vsel %vm512, %v2791, 0
      %2820 = vmatpush.msra.mxu0 0.0
      %2821 = vmatpush.msra.mxu0 0.0
      %2822 = vmatpush.msra.mxu0 0.0
      %2823 = vmatpush.msra.mxu0 0.0
      %2824 = vmatpush.msra.mxu0 0.0
      %2825 = vmatpush.msra.mxu0 0.0
      %2826 = vmatpush.msra.mxu0 0.0
      %2827 = vmatpush.msra.mxu0 0.0
      %2828 = vmatpush.msra.mxu0 0.0
      %2829 = vmatpush.msra.mxu0 0.0
      %2830 = vmatpush.msra.mxu0 0.0
      %2831 = vmatpush.msra.mxu0 0.0
      %2832 = vmatpush.msra.mxu0 %v2795
      %2833 = vmatpush.msra.mxu0 %v2794
      %2834 = vmatpush.msra.mxu0 %v2793
      %2835 = vmatpush.msra.mxu0 %v2792
      %2836 = vmatmul.f32.gmra.mxu0 %v2797
      %v2837 = vpop.f32.mrf.mxu0
      %v2838 = vadd.f32 0.0, %v2837
      %2839 = vmatmul.f32.gmra.mxu0 %v2800
      %v2840 = vpop.f32.mrf.mxu0
      %v2841 = vadd.f32 0.0, %v2840
      %2842 = vmatmul.f32.gmra.mxu0 %v2803
      %v2843 = vpop.f32.mrf.mxu0
      %v2844 = vadd.f32 0.0, %v2843
      %2845 = vmatmul.f32.gmra.mxu0 %v2806
      %v2846 = vpop.f32.mrf.mxu0
      %v2847 = vadd.f32 0.0, %v2846
      %2848 = vmatmul.f32.gmra.mxu0 %v2809
      %v2849 = vpop.f32.mrf.mxu0
      %v2850 = vadd.f32 0.0, %v2849
      %2851 = vmatmul.f32.gmra.mxu0 %v2812
      %v2852 = vpop.f32.mrf.mxu0
      %v2853 = vadd.f32 0.0, %v2852
      %2854 = vmatmul.f32.gmra.mxu0 %v2815
      %v2855 = vpop.f32.mrf.mxu0
      %v2856 = vadd.f32 0.0, %v2855
      %2857 = vmatmul.f32.gmra.mxu0 %v2818
      %v2858 = vpop.f32.mrf.mxu0
      %v2859 = vadd.f32 0.0, %v2858
      %2860 = vdwg.mxu0
      %v2861 = vadd.f32 %v2720, %v2838
      %v2862 = vadd.f32 %v2721, %v2841
      %v2863 = vadd.f32 %v2722, %v2844
      %v2864 = vadd.f32 %v2723, %v2847
      %v2865 = vadd.f32 %v2724, %v2850
      %v2866 = vadd.f32 %v2725, %v2853
      %v2867 = vadd.f32 %v2726, %v2856
      %v2868 = vadd.f32 %v2727, %v2859
      %v2869 = vld [vmem:[#allocation2 + $0x18] sm:$0xff]
      %v2870 = vld [vmem:[#allocation2 + $0x20] sm:$0xff]
      %v2871 = vld [vmem:[#allocation2 + $0x28] sm:$0xff]
      %v2872 = vld [vmem:[#allocation2 + $0x30] sm:$0xff]
      %v2873 = vld [vmem:[#allocation2 + $0x38] sm:$0xff]
      %v2874 = vld [vmem:[#allocation2 + $0x40] sm:$0xff]
      %v2875 = vld [vmem:[#allocation2 + $0x48] sm:$0xff]
      %v2876 = vld [vmem:[#allocation2 + $0x50] sm:$0xff]
      %v2877 = vld [vmem:[%s1638] sm:$0xff]
      %v2878 = vld [vmem:[%s1638 + $0x8] sm:$0xff]
      %v2879 = vld [vmem:[%s1638 + $0x10] sm:$0xff]
      %v2880 = vld [vmem:[%s1638 + $0x18] sm:$0xff]
      %v2881 = vld [vmem:[%s1638 + $0x20] sm:$0xff]
      %v2882 = vld [vmem:[%s1638 + $0x28] sm:$0xff]
      %v2883 = vld [vmem:[%s1638 + $0x30] sm:$0xff]
      %v2884 = vld [vmem:[%s1638 + $0x38] sm:$0xff]
      %2886 = vset.pattern.permute.xlu0 0
      %2887 = vperm.xlu0 %2886, %v2877
      %v2888 = vpop.permute.xlu0 %2887
      %2891 = vset.pattern.permute.xlu0 0
      %2892 = vperm.xlu0 %2891, %v2878
      %v2893 = vpop.permute.xlu0 %2892
      %2896 = vset.pattern.permute.xlu0 0
      %2897 = vperm.xlu0 %2896, %v2879
      %v2898 = vpop.permute.xlu0 %2897
      %2901 = vset.pattern.permute.xlu0 0
      %2902 = vperm.xlu0 %2901, %v2880
      %v2903 = vpop.permute.xlu0 %2902
      %2906 = vset.pattern.permute.xlu0 0
      %2907 = vperm.xlu0 %2906, %v2881
      %v2908 = vpop.permute.xlu0 %2907
      %2911 = vset.pattern.permute.xlu0 0
      %2912 = vperm.xlu0 %2911, %v2882
      %v2913 = vpop.permute.xlu0 %2912
      %2916 = vset.pattern.permute.xlu0 0
      %2917 = vperm.xlu0 %2916, %v2883
      %v2918 = vpop.permute.xlu0 %2917
      %2921 = vset.pattern.permute.xlu0 0
      %2922 = vperm.xlu0 %2921, %v2884
      %v2923 = vpop.permute.xlu0 %2922
      %v2925 = vmul.f32 %v2869, %v2888
      %v2926 = vmul.f32 %v2870, %v2893
      %v2927 = vmul.f32 %v2871, %v2898
      %v2928 = vmul.f32 %v2872, %v2903
      %v2929 = vmul.f32 %v2873, %v2908
      %v2930 = vmul.f32 %v2874, %v2913
      %v2931 = vmul.f32 %v2875, %v2918
      %v2932 = vmul.f32 %v2876, %v2923
      %v2933 = vld [vmem:[%s10 + $0xe0] sm:$0xff]
      %v2934 = vld [vmem:[%s10 + $0xe8] sm:$0xff]
      %v2935 = vld [vmem:[%s10 + $0xf0] sm:$0xff]
      %v2936 = vld [vmem:[%s10 + $0xf8] sm:$0xff]
      %v2938 = vsel %vm512, %v2925, 0
      %v2941 = vsel %vm512, %v2926, 0
      %v2944 = vsel %vm512, %v2927, 0
      %v2947 = vsel %vm512, %v2928, 0
      %v2950 = vsel %vm512, %v2929, 0
      %v2953 = vsel %vm512, %v2930, 0
      %v2956 = vsel %vm512, %v2931, 0
      %v2959 = vsel %vm512, %v2932, 0
      %2961 = vmatpush.msra.mxu0 0.0
      %2962 = vmatpush.msra.mxu0 0.0
      %2963 = vmatpush.msra.mxu0 0.0
      %2964 = vmatpush.msra.mxu0 0.0
      %2965 = vmatpush.msra.mxu0 0.0
      %2966 = vmatpush.msra.mxu0 0.0
      %2967 = vmatpush.msra.mxu0 0.0
      %2968 = vmatpush.msra.mxu0 0.0
      %2969 = vmatpush.msra.mxu0 0.0
      %2970 = vmatpush.msra.mxu0 0.0
      %2971 = vmatpush.msra.mxu0 0.0
      %2972 = vmatpush.msra.mxu0 0.0
      %2973 = vmatpush.msra.mxu0 %v2936
      %2974 = vmatpush.msra.mxu0 %v2935
      %2975 = vmatpush.msra.mxu0 %v2934
      %2976 = vmatpush.msra.mxu0 %v2933
      %2977 = vmatmul.f32.gmra.mxu0 %v2938
      %v2978 = vpop.f32.mrf.mxu0
      %v2979 = vadd.f32 0.0, %v2978
      %2980 = vmatmul.f32.gmra.mxu0 %v2941
      %v2981 = vpop.f32.mrf.mxu0
      %v2982 = vadd.f32 0.0, %v2981
      %2983 = vmatmul.f32.gmra.mxu0 %v2944
      %v2984 = vpop.f32.mrf.mxu0
      %v2985 = vadd.f32 0.0, %v2984
      %2986 = vmatmul.f32.gmra.mxu0 %v2947
      %v2987 = vpop.f32.mrf.mxu0
      %v2988 = vadd.f32 0.0, %v2987
      %2989 = vmatmul.f32.gmra.mxu0 %v2950
      %v2990 = vpop.f32.mrf.mxu0
      %v2991 = vadd.f32 0.0, %v2990
      %2992 = vmatmul.f32.gmra.mxu0 %v2953
      %v2993 = vpop.f32.mrf.mxu0
      %v2994 = vadd.f32 0.0, %v2993
      %2995 = vmatmul.f32.gmra.mxu0 %v2956
      %v2996 = vpop.f32.mrf.mxu0
      %v2997 = vadd.f32 0.0, %v2996
      %2998 = vmatmul.f32.gmra.mxu0 %v2959
      %v2999 = vpop.f32.mrf.mxu0
      %v3000 = vadd.f32 0.0, %v2999
      %3001 = vdwg.mxu0
      %v3002 = vadd.f32 %v2861, %v2979
      %v3003 = vadd.f32 %v2862, %v2982
      %v3004 = vadd.f32 %v2863, %v2985
      %v3005 = vadd.f32 %v2864, %v2988
      %v3006 = vadd.f32 %v2865, %v2991
      %v3007 = vadd.f32 %v2866, %v2994
      %v3008 = vadd.f32 %v2867, %v2997
      %v3009 = vadd.f32 %v2868, %v3000
      %v3010 = vld [vmem:[#allocation2 + $0x19] sm:$0xff]
      %v3011 = vld [vmem:[#allocation2 + $0x21] sm:$0xff]
      %v3012 = vld [vmem:[#allocation2 + $0x29] sm:$0xff]
      %v3013 = vld [vmem:[#allocation2 + $0x31] sm:$0xff]
      %v3014 = vld [vmem:[#allocation2 + $0x39] sm:$0xff]
      %v3015 = vld [vmem:[#allocation2 + $0x41] sm:$0xff]
      %v3016 = vld [vmem:[#allocation2 + $0x49] sm:$0xff]
      %v3017 = vld [vmem:[#allocation2 + $0x51] sm:$0xff]
      %v3018 = vld [vmem:[%s1780] sm:$0xff]
      %v3019 = vld [vmem:[%s1780 + $0x8] sm:$0xff]
      %v3020 = vld [vmem:[%s1780 + $0x10] sm:$0xff]
      %v3021 = vld [vmem:[%s1780 + $0x18] sm:$0xff]
      %v3022 = vld [vmem:[%s1780 + $0x20] sm:$0xff]
      %v3023 = vld [vmem:[%s1780 + $0x28] sm:$0xff]
      %v3024 = vld [vmem:[%s1780 + $0x30] sm:$0xff]
      %v3025 = vld [vmem:[%s1780 + $0x38] sm:$0xff]
      %3027 = vset.pattern.permute.xlu0 0
      %3028 = vperm.xlu0 %3027, %v3018
      %v3029 = vpop.permute.xlu0 %3028
      %3032 = vset.pattern.permute.xlu0 0
      %3033 = vperm.xlu0 %3032, %v3019
      %v3034 = vpop.permute.xlu0 %3033
      %3037 = vset.pattern.permute.xlu0 0
      %3038 = vperm.xlu0 %3037, %v3020
      %v3039 = vpop.permute.xlu0 %3038
      %3042 = vset.pattern.permute.xlu0 0
      %3043 = vperm.xlu0 %3042, %v3021
      %v3044 = vpop.permute.xlu0 %3043
      %3047 = vset.pattern.permute.xlu0 0
      %3048 = vperm.xlu0 %3047, %v3022
      %v3049 = vpop.permute.xlu0 %3048
      %3052 = vset.pattern.permute.xlu0 0
      %3053 = vperm.xlu0 %3052, %v3023
      %v3054 = vpop.permute.xlu0 %3053
      %3057 = vset.pattern.permute.xlu0 0
      %3058 = vperm.xlu0 %3057, %v3024
      %v3059 = vpop.permute.xlu0 %3058
      %3062 = vset.pattern.permute.xlu0 0
      %3063 = vperm.xlu0 %3062, %v3025
      %v3064 = vpop.permute.xlu0 %3063
      %v3066 = vmul.f32 %v3010, %v3029
      %v3067 = vmul.f32 %v3011, %v3034
      %v3068 = vmul.f32 %v3012, %v3039
      %v3069 = vmul.f32 %v3013, %v3044
      %v3070 = vmul.f32 %v3014, %v3049
      %v3071 = vmul.f32 %v3015, %v3054
      %v3072 = vmul.f32 %v3016, %v3059
      %v3073 = vmul.f32 %v3017, %v3064
      %v3074 = vld [vmem:[%s10 + $0x100] sm:$0xff]
      %v3075 = vld [vmem:[%s10 + $0x108] sm:$0xff]
      %v3076 = vld [vmem:[%s10 + $0x110] sm:$0xff]
      %v3077 = vld [vmem:[%s10 + $0x118] sm:$0xff]
      %v3079 = vsel %vm512, %v3066, 0
      %v3082 = vsel %vm512, %v3067, 0
      %v3085 = vsel %vm512, %v3068, 0
      %v3088 = vsel %vm512, %v3069, 0
      %v3091 = vsel %vm512, %v3070, 0
      %v3094 = vsel %vm512, %v3071, 0
      %v3097 = vsel %vm512, %v3072, 0
      %v3100 = vsel %vm512, %v3073, 0
      %3102 = vmatpush.msra.mxu0 0.0
      %3103 = vmatpush.msra.mxu0 0.0
      %3104 = vmatpush.msra.mxu0 0.0
      %3105 = vmatpush.msra.mxu0 0.0
      %3106 = vmatpush.msra.mxu0 0.0
      %3107 = vmatpush.msra.mxu0 0.0
      %3108 = vmatpush.msra.mxu0 0.0
      %3109 = vmatpush.msra.mxu0 0.0
      %3110 = vmatpush.msra.mxu0 0.0
      %3111 = vmatpush.msra.mxu0 0.0
      %3112 = vmatpush.msra.mxu0 0.0
      %3113 = vmatpush.msra.mxu0 0.0
      %3114 = vmatpush.msra.mxu0 %v3077
      %3115 = vmatpush.msra.mxu0 %v3076
      %3116 = vmatpush.msra.mxu0 %v3075
      %3117 = vmatpush.msra.mxu0 %v3074
      %3118 = vmatmul.f32.gmra.mxu0 %v3079
      %v3119 = vpop.f32.mrf.mxu0
      %v3120 = vadd.f32 0.0, %v3119
      %3121 = vmatmul.f32.gmra.mxu0 %v3082
      %v3122 = vpop.f32.mrf.mxu0
      %v3123 = vadd.f32 0.0, %v3122
      %3124 = vmatmul.f32.gmra.mxu0 %v3085
      %v3125 = vpop.f32.mrf.mxu0
      %v3126 = vadd.f32 0.0, %v3125
      %3127 = vmatmul.f32.gmra.mxu0 %v3088
      %v3128 = vpop.f32.mrf.mxu0
      %v3129 = vadd.f32 0.0, %v3128
      %3130 = vmatmul.f32.gmra.mxu0 %v3091
      %v3131 = vpop.f32.mrf.mxu0
      %v3132 = vadd.f32 0.0, %v3131
      %3133 = vmatmul.f32.gmra.mxu0 %v3094
      %v3134 = vpop.f32.mrf.mxu0
      %v3135 = vadd.f32 0.0, %v3134
      %3136 = vmatmul.f32.gmra.mxu0 %v3097
      %v3137 = vpop.f32.mrf.mxu0
      %v3138 = vadd.f32 0.0, %v3137
      %3139 = vmatmul.f32.gmra.mxu0 %v3100
      %v3140 = vpop.f32.mrf.mxu0
      %v3141 = vadd.f32 0.0, %v3140
      %3142 = vdwg.mxu0
      %v3143 = vadd.f32 %v3002, %v3120
      %v3144 = vadd.f32 %v3003, %v3123
      %v3145 = vadd.f32 %v3004, %v3126
      %v3146 = vadd.f32 %v3005, %v3129
      %v3147 = vadd.f32 %v3006, %v3132
      %v3148 = vadd.f32 %v3007, %v3135
      %v3149 = vadd.f32 %v3008, %v3138
      %v3150 = vadd.f32 %v3009, %v3141
      %v3151 = vld [vmem:[%s11] sm:$0x1]
      %v3153 = vperm.slane %v3151, 0
      %v3155 = vmul.f32 %v3143, %v3153
      %v3156 = vmul.f32 %v3144, %v3153
      %v3157 = vmul.f32 %v3145, %v3153
      %v3158 = vmul.f32 %v3146, %v3153
      %v3159 = vmul.f32 %v3147, %v3153
      %v3160 = vmul.f32 %v3148, %v3153
      %v3161 = vmul.f32 %v3149, %v3153
      %v3162 = vmul.f32 %v3150, %v3153
      %v3163 = vld [vmem:[%s12] sm:$0x1]
      %v3165 = vperm.slane %v3163, 0
      %v3167 = vadd.f32 %v3155, %v3165
      %v3168 = vadd.f32 %v3156, %v3165
      %v3169 = vadd.f32 %v3157, %v3165
      %v3170 = vadd.f32 %v3158, %v3165
      %v3171 = vadd.f32 %v3159, %v3165
      %v3172 = vadd.f32 %v3160, %v3165
      %v3173 = vadd.f32 %v3161, %v3165
      %v3174 = vadd.f32 %v3162, %v3165
      %v3175 = vmax.f32 %v3167, 0.0
      %v3176 = vmax.f32 %v3168, 0.0
      %v3177 = vmax.f32 %v3169, 0.0
      %v3178 = vmax.f32 %v3170, 0.0
      %v3179 = vmax.f32 %v3171, 0.0
      %v3180 = vmax.f32 %v3172, 0.0
      %v3181 = vmax.f32 %v3173, 0.0
      %v3182 = vmax.f32 %v3174, 0.0
      %3183 = vst.msk [vmem:[#allocation3 + $0x10] sm:$0xff] %vm525, %v3175
      %3184 = vst.msk [vmem:[#allocation3 + $0x18] sm:$0xff] %vm525, %v3176
      %3185 = vst.msk [vmem:[#allocation3 + $0x20] sm:$0xff] %vm525, %v3177
      %3186 = vst.msk [vmem:[#allocation3 + $0x28] sm:$0xff] %vm525, %v3178
      %3187 = vst.msk [vmem:[#allocation3 + $0x30] sm:$0xff] %vm525, %v3179
      %3188 = vst.msk [vmem:[#allocation3 + $0x38] sm:$0xff] %vm525, %v3180
      %3189 = vst.msk [vmem:[#allocation3 + $0x40] sm:$0xff] %vm525, %v3181
      %3190 = vst.msk [vmem:[#allocation3 + $0x48] sm:$0xff] %vm525, %v3182
      %v3191 = vld [vmem:[#allocation3 + $0x7] sm:$0xff]
      %v3192 = vld [vmem:[#allocation3 + $0xf] sm:$0xff]
      %v3193 = vld [vmem:[#allocation3 + $0x17] sm:$0xff]
      %v3194 = vld [vmem:[#allocation3 + $0x1f] sm:$0xff]
      %v3195 = vld [vmem:[#allocation3 + $0x27] sm:$0xff]
      %v3196 = vld [vmem:[#allocation3 + $0x2f] sm:$0xff]
      %v3197 = vld [vmem:[#allocation3 + $0x37] sm:$0xff]
      %v3198 = vld [vmem:[#allocation3 + $0x3f] sm:$0xff]
      %v3199 = vld [vmem:[%s0] sm:$0xff]
      %v3200 = vld [vmem:[%s0 + $0x8] sm:$0xff]
      %v3201 = vld [vmem:[%s0 + $0x10] sm:$0xff]
      %v3202 = vld [vmem:[%s0 + $0x18] sm:$0xff]
      %v3203 = vld [vmem:[%s0 + $0x20] sm:$0xff]
      %v3204 = vld [vmem:[%s0 + $0x28] sm:$0xff]
      %v3205 = vld [vmem:[%s0 + $0x30] sm:$0xff]
      %v3206 = vld [vmem:[%s0 + $0x38] sm:$0xff]
      %3208 = vset.pattern.permute.xlu0 0
      %3209 = vperm.xlu0 %3208, %v3199
      %v3210 = vpop.permute.xlu0 %3209
      %3213 = vset.pattern.permute.xlu0 0
      %3214 = vperm.xlu0 %3213, %v3200
      %v3215 = vpop.permute.xlu0 %3214
      %3218 = vset.pattern.permute.xlu0 0
      %3219 = vperm.xlu0 %3218, %v3201
      %v3220 = vpop.permute.xlu0 %3219
      %3223 = vset.pattern.permute.xlu0 0
      %3224 = vperm.xlu0 %3223, %v3202
      %v3225 = vpop.permute.xlu0 %3224
      %3228 = vset.pattern.permute.xlu0 0
      %3229 = vperm.xlu0 %3228, %v3203
      %v3230 = vpop.permute.xlu0 %3229
      %3233 = vset.pattern.permute.xlu0 0
      %3234 = vperm.xlu0 %3233, %v3204
      %v3235 = vpop.permute.xlu0 %3234
      %3238 = vset.pattern.permute.xlu0 0
      %3239 = vperm.xlu0 %3238, %v3205
      %v3240 = vpop.permute.xlu0 %3239
      %3243 = vset.pattern.permute.xlu0 0
      %3244 = vperm.xlu0 %3243, %v3206
      %v3245 = vpop.permute.xlu0 %3244
      %v3247 = vmul.f32 %v3191, %v3210
      %v3248 = vmul.f32 %v3192, %v3215
      %v3249 = vmul.f32 %v3193, %v3220
      %v3250 = vmul.f32 %v3194, %v3225
      %v3251 = vmul.f32 %v3195, %v3230
      %v3252 = vmul.f32 %v3196, %v3235
      %v3253 = vmul.f32 %v3197, %v3240
      %v3254 = vmul.f32 %v3198, %v3245
      %v3255 = vld [vmem:[%s13] sm:$0xff]
      %v3256 = vld [vmem:[%s13 + $0x8] sm:$0xff]
      %v3257 = vld [vmem:[%s13 + $0x10] sm:$0xff]
      %v3258 = vld [vmem:[%s13 + $0x18] sm:$0xff]
      %v3259 = vld [vmem:[%s13 + $0x20] sm:$0xff]
      %v3260 = vld [vmem:[%s13 + $0x28] sm:$0xff]
      %v3261 = vld [vmem:[%s13 + $0x30] sm:$0xff]
      %v3262 = vld [vmem:[%s13 + $0x38] sm:$0xff]
      %v3263 = vld [vmem:[#allocation3 + $0x8] sm:$0xff]
      %v3264 = vld [vmem:[#allocation3 + $0x10] sm:$0xff]
      %v3265 = vld [vmem:[#allocation3 + $0x18] sm:$0xff]
      %v3266 = vld [vmem:[#allocation3 + $0x20] sm:$0xff]
      %v3267 = vld [vmem:[#allocation3 + $0x28] sm:$0xff]
      %v3268 = vld [vmem:[#allocation3 + $0x30] sm:$0xff]
      %v3269 = vld [vmem:[#allocation3 + $0x38] sm:$0xff]
      %v3270 = vld [vmem:[#allocation3 + $0x40] sm:$0xff]
      %v3271 = vld [vmem:[%s786] sm:$0xff]
      %v3272 = vld [vmem:[%s786 + $0x8] sm:$0xff]
      %v3273 = vld [vmem:[%s786 + $0x10] sm:$0xff]
      %v3274 = vld [vmem:[%s786 + $0x18] sm:$0xff]
      %v3275 = vld [vmem:[%s786 + $0x20] sm:$0xff]
      %v3276 = vld [vmem:[%s786 + $0x28] sm:$0xff]
      %v3277 = vld [vmem:[%s786 + $0x30] sm:$0xff]
      %v3278 = vld [vmem:[%s786 + $0x38] sm:$0xff]
      %3280 = vset.pattern.permute.xlu0 0
      %3281 = vperm.xlu0 %3280, %v3271
      %v3282 = vpop.permute.xlu0 %3281
      %3285 = vset.pattern.permute.xlu0 0
      %3286 = vperm.xlu0 %3285, %v3272
      %v3287 = vpop.permute.xlu0 %3286
      %3290 = vset.pattern.permute.xlu0 0
      %3291 = vperm.xlu0 %3290, %v3273
      %v3292 = vpop.permute.xlu0 %3291
      %3295 = vset.pattern.permute.xlu0 0
      %3296 = vperm.xlu0 %3295, %v3274
      %v3297 = vpop.permute.xlu0 %3296
      %3300 = vset.pattern.permute.xlu0 0
      %3301 = vperm.xlu0 %3300, %v3275
      %v3302 = vpop.permute.xlu0 %3301
      %3305 = vset.pattern.permute.xlu0 0
      %3306 = vperm.xlu0 %3305, %v3276
      %v3307 = vpop.permute.xlu0 %3306
      %3310 = vset.pattern.permute.xlu0 0
      %3311 = vperm.xlu0 %3310, %v3277
      %v3312 = vpop.permute.xlu0 %3311
      %3315 = vset.pattern.permute.xlu0 0
      %3316 = vperm.xlu0 %3315, %v3278
      %v3317 = vpop.permute.xlu0 %3316
      %v3319 = vmul.f32 %v3263, %v3282
      %v3320 = vmul.f32 %v3264, %v3287
      %v3321 = vmul.f32 %v3265, %v3292
      %v3322 = vmul.f32 %v3266, %v3297
      %v3323 = vmul.f32 %v3267, %v3302
      %v3324 = vmul.f32 %v3268, %v3307
      %v3325 = vmul.f32 %v3269, %v3312
      %v3326 = vmul.f32 %v3270, %v3317
      %v3327 = vld [vmem:[%s13 + $0x40] sm:$0xff]
      %v3328 = vld [vmem:[%s13 + $0x48] sm:$0xff]
      %v3329 = vld [vmem:[%s13 + $0x50] sm:$0xff]
      %v3330 = vld [vmem:[%s13 + $0x58] sm:$0xff]
      %v3331 = vld [vmem:[%s13 + $0x60] sm:$0xff]
      %v3332 = vld [vmem:[%s13 + $0x68] sm:$0xff]
      %v3333 = vld [vmem:[%s13 + $0x70] sm:$0xff]
      %v3334 = vld [vmem:[%s13 + $0x78] sm:$0xff]
      %v3336 = vsel %vm525, %v3319, 0
      %v3339 = vsel %vm525, %v3320, 0
      %v3342 = vsel %vm525, %v3321, 0
      %v3345 = vsel %vm525, %v3322, 0
      %v3348 = vsel %vm525, %v3323, 0
      %v3351 = vsel %vm525, %v3324, 0
      %v3354 = vsel %vm525, %v3325, 0
      %v3357 = vsel %vm525, %v3326, 0
      %3359 = vmatpush.msra.mxu0 0.0
      %3360 = vmatpush.msra.mxu0 0.0
      %3361 = vmatpush.msra.mxu0 0.0
      %3362 = vmatpush.msra.mxu0 0.0
      %3363 = vmatpush.msra.mxu0 0.0
      %3364 = vmatpush.msra.mxu0 0.0
      %3365 = vmatpush.msra.mxu0 0.0
      %3366 = vmatpush.msra.mxu0 0.0
      %3367 = vmatpush.msra.mxu0 %v3334
      %3368 = vmatpush.msra.mxu0 %v3333
      %3369 = vmatpush.msra.mxu0 %v3332
      %3370 = vmatpush.msra.mxu0 %v3331
      %3371 = vmatpush.msra.mxu0 %v3330
      %3372 = vmatpush.msra.mxu0 %v3329
      %3373 = vmatpush.msra.mxu0 %v3328
      %3374 = vmatpush.msra.mxu0 %v3327
      %3375 = vmatmul.f32.gmra.mxu0 %v3336
      %v3376 = vpop.f32.mrf.mxu0
      %v3377 = vadd.f32 0.0, %v3376
      %3378 = vmatmul.f32.gmra.mxu0 %v3339
      %v3379 = vpop.f32.mrf.mxu0
      %v3380 = vadd.f32 0.0, %v3379
      %3381 = vmatmul.f32.gmra.mxu0 %v3342
      %v3382 = vpop.f32.mrf.mxu0
      %v3383 = vadd.f32 0.0, %v3382
      %3384 = vmatmul.f32.gmra.mxu0 %v3345
      %v3385 = vpop.f32.mrf.mxu0
      %v3386 = vadd.f32 0.0, %v3385
      %3387 = vmatmul.f32.gmra.mxu0 %v3348
      %v3388 = vpop.f32.mrf.mxu0
      %v3389 = vadd.f32 0.0, %v3388
      %3390 = vmatmul.f32.gmra.mxu0 %v3351
      %v3391 = vpop.f32.mrf.mxu0
      %v3392 = vadd.f32 0.0, %v3391
      %3393 = vmatmul.f32.gmra.mxu0 %v3354
      %v3394 = vpop.f32.mrf.mxu0
      %v3395 = vadd.f32 0.0, %v3394
      %3396 = vmatmul.f32.gmra.mxu0 %v3357
      %v3397 = vpop.f32.mrf.mxu0
      %v3398 = vadd.f32 0.0, %v3397
      %3399 = vdwg.mxu0
      %v3401 = vsel %vm525, %v3247, 0
      %v3404 = vsel %vm525, %v3248, 0
      %v3407 = vsel %vm525, %v3249, 0
      %v3410 = vsel %vm525, %v3250, 0
      %v3413 = vsel %vm525, %v3251, 0
      %v3416 = vsel %vm525, %v3252, 0
      %v3419 = vsel %vm525, %v3253, 0
      %v3422 = vsel %vm525, %v3254, 0
      %3424 = vmatpush.msra.mxu0 0.0
      %3425 = vmatpush.msra.mxu0 0.0
      %3426 = vmatpush.msra.mxu0 0.0
      %3427 = vmatpush.msra.mxu0 0.0
      %3428 = vmatpush.msra.mxu0 0.0
      %3429 = vmatpush.msra.mxu0 0.0
      %3430 = vmatpush.msra.mxu0 0.0
      %3431 = vmatpush.msra.mxu0 0.0
      %3432 = vmatpush.msra.mxu0 %v3262
      %3433 = vmatpush.msra.mxu0 %v3261
      %3434 = vmatpush.msra.mxu0 %v3260
      %3435 = vmatpush.msra.mxu0 %v3259
      %3436 = vmatpush.msra.mxu0 %v3258
      %3437 = vmatpush.msra.mxu0 %v3257
      %3438 = vmatpush.msra.mxu0 %v3256
      %3439 = vmatpush.msra.mxu0 %v3255
      %3440 = vmatmul.f32.gmra.mxu0 %v3401
      %v3441 = vpop.f32.mrf.mxu0
      %v3442 = vadd.f32 %v3377, %v3441
      %3443 = vmatmul.f32.gmra.mxu0 %v3404
      %v3444 = vpop.f32.mrf.mxu0
      %v3445 = vadd.f32 %v3380, %v3444
      %3446 = vmatmul.f32.gmra.mxu0 %v3407
      %v3447 = vpop.f32.mrf.mxu0
      %v3448 = vadd.f32 %v3383, %v3447
      %3449 = vmatmul.f32.gmra.mxu0 %v3410
      %v3450 = vpop.f32.mrf.mxu0
      %v3451 = vadd.f32 %v3386, %v3450
      %3452 = vmatmul.f32.gmra.mxu0 %v3413
      %v3453 = vpop.f32.mrf.mxu0
      %v3454 = vadd.f32 %v3389, %v3453
      %3455 = vmatmul.f32.gmra.mxu0 %v3416
      %v3456 = vpop.f32.mrf.mxu0
      %v3457 = vadd.f32 %v3392, %v3456
      %3458 = vmatmul.f32.gmra.mxu0 %v3419
      %v3459 = vpop.f32.mrf.mxu0
      %v3460 = vadd.f32 %v3395, %v3459
      %3461 = vmatmul.f32.gmra.mxu0 %v3422
      %v3462 = vpop.f32.mrf.mxu0
      %v3463 = vadd.f32 %v3398, %v3462
      %3464 = vdwg.mxu0
      %v3465 = vld [vmem:[#allocation3 + $0x9] sm:$0xff]
      %v3466 = vld [vmem:[#allocation3 + $0x11] sm:$0xff]
      %v3467 = vld [vmem:[#allocation3 + $0x19] sm:$0xff]
      %v3468 = vld [vmem:[#allocation3 + $0x21] sm:$0xff]
      %v3469 = vld [vmem:[#allocation3 + $0x29] sm:$0xff]
      %v3470 = vld [vmem:[#allocation3 + $0x31] sm:$0xff]
      %v3471 = vld [vmem:[#allocation3 + $0x39] sm:$0xff]
      %v3472 = vld [vmem:[#allocation3 + $0x41] sm:$0xff]
      %v3473 = vld [vmem:[%s985] sm:$0xff]
      %v3474 = vld [vmem:[%s985 + $0x8] sm:$0xff]
      %v3475 = vld [vmem:[%s985 + $0x10] sm:$0xff]
      %v3476 = vld [vmem:[%s985 + $0x18] sm:$0xff]
      %v3477 = vld [vmem:[%s985 + $0x20] sm:$0xff]
      %v3478 = vld [vmem:[%s985 + $0x28] sm:$0xff]
      %v3479 = vld [vmem:[%s985 + $0x30] sm:$0xff]
      %v3480 = vld [vmem:[%s985 + $0x38] sm:$0xff]
      %3482 = vset.pattern.permute.xlu0 0
      %3483 = vperm.xlu0 %3482, %v3473
      %v3484 = vpop.permute.xlu0 %3483
      %3487 = vset.pattern.permute.xlu0 0
      %3488 = vperm.xlu0 %3487, %v3474
      %v3489 = vpop.permute.xlu0 %3488
      %3492 = vset.pattern.permute.xlu0 0
      %3493 = vperm.xlu0 %3492, %v3475
      %v3494 = vpop.permute.xlu0 %3493
      %3497 = vset.pattern.permute.xlu0 0
      %3498 = vperm.xlu0 %3497, %v3476
      %v3499 = vpop.permute.xlu0 %3498
      %3502 = vset.pattern.permute.xlu0 0
      %3503 = vperm.xlu0 %3502, %v3477
      %v3504 = vpop.permute.xlu0 %3503
      %3507 = vset.pattern.permute.xlu0 0
      %3508 = vperm.xlu0 %3507, %v3478
      %v3509 = vpop.permute.xlu0 %3508
      %3512 = vset.pattern.permute.xlu0 0
      %3513 = vperm.xlu0 %3512, %v3479
      %v3514 = vpop.permute.xlu0 %3513
      %3517 = vset.pattern.permute.xlu0 0
      %3518 = vperm.xlu0 %3517, %v3480
      %v3519 = vpop.permute.xlu0 %3518
      %v3521 = vmul.f32 %v3465, %v3484
      %v3522 = vmul.f32 %v3466, %v3489
      %v3523 = vmul.f32 %v3467, %v3494
      %v3524 = vmul.f32 %v3468, %v3499
      %v3525 = vmul.f32 %v3469, %v3504
      %v3526 = vmul.f32 %v3470, %v3509
      %v3527 = vmul.f32 %v3471, %v3514
      %v3528 = vmul.f32 %v3472, %v3519
      %v3529 = vld [vmem:[%s13 + $0x80] sm:$0xff]
      %v3530 = vld [vmem:[%s13 + $0x88] sm:$0xff]
      %v3531 = vld [vmem:[%s13 + $0x90] sm:$0xff]
      %v3532 = vld [vmem:[%s13 + $0x98] sm:$0xff]
      %v3533 = vld [vmem:[%s13 + $0xa0] sm:$0xff]
      %v3534 = vld [vmem:[%s13 + $0xa8] sm:$0xff]
      %v3535 = vld [vmem:[%s13 + $0xb0] sm:$0xff]
      %v3536 = vld [vmem:[%s13 + $0xb8] sm:$0xff]
      %v3538 = vsel %vm525, %v3521, 0
      %v3541 = vsel %vm525, %v3522, 0
      %v3544 = vsel %vm525, %v3523, 0
      %v3547 = vsel %vm525, %v3524, 0
      %v3550 = vsel %vm525, %v3525, 0
      %v3553 = vsel %vm525, %v3526, 0
      %v3556 = vsel %vm525, %v3527, 0
      %v3559 = vsel %vm525, %v3528, 0
      %3561 = vmatpush.msra.mxu0 0.0
      %3562 = vmatpush.msra.mxu0 0.0
      %3563 = vmatpush.msra.mxu0 0.0
      %3564 = vmatpush.msra.mxu0 0.0
      %3565 = vmatpush.msra.mxu0 0.0
      %3566 = vmatpush.msra.mxu0 0.0
      %3567 = vmatpush.msra.mxu0 0.0
      %3568 = vmatpush.msra.mxu0 0.0
      %3569 = vmatpush.msra.mxu0 %v3536
      %3570 = vmatpush.msra.mxu0 %v3535
      %3571 = vmatpush.msra.mxu0 %v3534
      %3572 = vmatpush.msra.mxu0 %v3533
      %3573 = vmatpush.msra.mxu0 %v3532
      %3574 = vmatpush.msra.mxu0 %v3531
      %3575 = vmatpush.msra.mxu0 %v3530
      %3576 = vmatpush.msra.mxu0 %v3529
      %3577 = vmatmul.f32.gmra.mxu0 %v3538
      %v3578 = vpop.f32.mrf.mxu0
      %v3579 = vadd.f32 0.0, %v3578
      %3580 = vmatmul.f32.gmra.mxu0 %v3541
      %v3581 = vpop.f32.mrf.mxu0
      %v3582 = vadd.f32 0.0, %v3581
      %3583 = vmatmul.f32.gmra.mxu0 %v3544
      %v3584 = vpop.f32.mrf.mxu0
      %v3585 = vadd.f32 0.0, %v3584
      %3586 = vmatmul.f32.gmra.mxu0 %v3547
      %v3587 = vpop.f32.mrf.mxu0
      %v3588 = vadd.f32 0.0, %v3587
      %3589 = vmatmul.f32.gmra.mxu0 %v3550
      %v3590 = vpop.f32.mrf.mxu0
      %v3591 = vadd.f32 0.0, %v3590
      %3592 = vmatmul.f32.gmra.mxu0 %v3553
      %v3593 = vpop.f32.mrf.mxu0
      %v3594 = vadd.f32 0.0, %v3593
      %3595 = vmatmul.f32.gmra.mxu0 %v3556
      %v3596 = vpop.f32.mrf.mxu0
      %v3597 = vadd.f32 0.0, %v3596
      %3598 = vmatmul.f32.gmra.mxu0 %v3559
      %v3599 = vpop.f32.mrf.mxu0
      %v3600 = vadd.f32 0.0, %v3599
      %3601 = vdwg.mxu0
      %v3602 = vadd.f32 %v3442, %v3579
      %v3603 = vadd.f32 %v3445, %v3582
      %v3604 = vadd.f32 %v3448, %v3585
      %v3605 = vadd.f32 %v3451, %v3588
      %v3606 = vadd.f32 %v3454, %v3591
      %v3607 = vadd.f32 %v3457, %v3594
      %v3608 = vadd.f32 %v3460, %v3597
      %v3609 = vadd.f32 %v3463, %v3600
      %v3610 = vld [vmem:[#allocation3 + $0xf] sm:$0xff]
      %v3611 = vld [vmem:[#allocation3 + $0x17] sm:$0xff]
      %v3612 = vld [vmem:[#allocation3 + $0x1f] sm:$0xff]
      %v3613 = vld [vmem:[#allocation3 + $0x27] sm:$0xff]
      %v3614 = vld [vmem:[#allocation3 + $0x2f] sm:$0xff]
      %v3615 = vld [vmem:[#allocation3 + $0x37] sm:$0xff]
      %v3616 = vld [vmem:[#allocation3 + $0x3f] sm:$0xff]
      %v3617 = vld [vmem:[#allocation3 + $0x47] sm:$0xff]
      %v3618 = vld [vmem:[%s1127] sm:$0xff]
      %v3619 = vld [vmem:[%s1127 + $0x8] sm:$0xff]
      %v3620 = vld [vmem:[%s1127 + $0x10] sm:$0xff]
      %v3621 = vld [vmem:[%s1127 + $0x18] sm:$0xff]
      %v3622 = vld [vmem:[%s1127 + $0x20] sm:$0xff]
      %v3623 = vld [vmem:[%s1127 + $0x28] sm:$0xff]
      %v3624 = vld [vmem:[%s1127 + $0x30] sm:$0xff]
      %v3625 = vld [vmem:[%s1127 + $0x38] sm:$0xff]
      %3627 = vset.pattern.permute.xlu0 0
      %3628 = vperm.xlu0 %3627, %v3618
      %v3629 = vpop.permute.xlu0 %3628
      %3632 = vset.pattern.permute.xlu0 0
      %3633 = vperm.xlu0 %3632, %v3619
      %v3634 = vpop.permute.xlu0 %3633
      %3637 = vset.pattern.permute.xlu0 0
      %3638 = vperm.xlu0 %3637, %v3620
      %v3639 = vpop.permute.xlu0 %3638
      %3642 = vset.pattern.permute.xlu0 0
      %3643 = vperm.xlu0 %3642, %v3621
      %v3644 = vpop.permute.xlu0 %3643
      %3647 = vset.pattern.permute.xlu0 0
      %3648 = vperm.xlu0 %3647, %v3622
      %v3649 = vpop.permute.xlu0 %3648
      %3652 = vset.pattern.permute.xlu0 0
      %3653 = vperm.xlu0 %3652, %v3623
      %v3654 = vpop.permute.xlu0 %3653
      %3657 = vset.pattern.permute.xlu0 0
      %3658 = vperm.xlu0 %3657, %v3624
      %v3659 = vpop.permute.xlu0 %3658
      %3662 = vset.pattern.permute.xlu0 0
      %3663 = vperm.xlu0 %3662, %v3625
      %v3664 = vpop.permute.xlu0 %3663
      %v3666 = vmul.f32 %v3610, %v3629
      %v3667 = vmul.f32 %v3611, %v3634
      %v3668 = vmul.f32 %v3612, %v3639
      %v3669 = vmul.f32 %v3613, %v3644
      %v3670 = vmul.f32 %v3614, %v3649
      %v3671 = vmul.f32 %v3615, %v3654
      %v3672 = vmul.f32 %v3616, %v3659
      %v3673 = vmul.f32 %v3617, %v3664
      %v3674 = vld [vmem:[%s13 + $0xc0] sm:$0xff]
      %v3675 = vld [vmem:[%s13 + $0xc8] sm:$0xff]
      %v3676 = vld [vmem:[%s13 + $0xd0] sm:$0xff]
      %v3677 = vld [vmem:[%s13 + $0xd8] sm:$0xff]
      %v3678 = vld [vmem:[%s13 + $0xe0] sm:$0xff]
      %v3679 = vld [vmem:[%s13 + $0xe8] sm:$0xff]
      %v3680 = vld [vmem:[%s13 + $0xf0] sm:$0xff]
      %v3681 = vld [vmem:[%s13 + $0xf8] sm:$0xff]
      %v3683 = vsel %vm525, %v3666, 0
      %v3686 = vsel %vm525, %v3667, 0
      %v3689 = vsel %vm525, %v3668, 0
      %v3692 = vsel %vm525, %v3669, 0
      %v3695 = vsel %vm525, %v3670, 0
      %v3698 = vsel %vm525, %v3671, 0
      %v3701 = vsel %vm525, %v3672, 0
      %v3704 = vsel %vm525, %v3673, 0
      %3706 = vmatpush.msra.mxu0 0.0
      %3707 = vmatpush.msra.mxu0 0.0
      %3708 = vmatpush.msra.mxu0 0.0
      %3709 = vmatpush.msra.mxu0 0.0
      %3710 = vmatpush.msra.mxu0 0.0
      %3711 = vmatpush.msra.mxu0 0.0
      %3712 = vmatpush.msra.mxu0 0.0
      %3713 = vmatpush.msra.mxu0 0.0
      %3714 = vmatpush.msra.mxu0 %v3681
      %3715 = vmatpush.msra.mxu0 %v3680
      %3716 = vmatpush.msra.mxu0 %v3679
      %3717 = vmatpush.msra.mxu0 %v3678
      %3718 = vmatpush.msra.mxu0 %v3677
      %3719 = vmatpush.msra.mxu0 %v3676
      %3720 = vmatpush.msra.mxu0 %v3675
      %3721 = vmatpush.msra.mxu0 %v3674
      %3722 = vmatmul.f32.gmra.mxu0 %v3683
      %v3723 = vpop.f32.mrf.mxu0
      %v3724 = vadd.f32 0.0, %v3723
      %3725 = vmatmul.f32.gmra.mxu0 %v3686
      %v3726 = vpop.f32.mrf.mxu0
      %v3727 = vadd.f32 0.0, %v3726
      %3728 = vmatmul.f32.gmra.mxu0 %v3689
      %v3729 = vpop.f32.mrf.mxu0
      %v3730 = vadd.f32 0.0, %v3729
      %3731 = vmatmul.f32.gmra.mxu0 %v3692
      %v3732 = vpop.f32.mrf.mxu0
      %v3733 = vadd.f32 0.0, %v3732
      %3734 = vmatmul.f32.gmra.mxu0 %v3695
      %v3735 = vpop.f32.mrf.mxu0
      %v3736 = vadd.f32 0.0, %v3735
      %3737 = vmatmul.f32.gmra.mxu0 %v3698
      %v3738 = vpop.f32.mrf.mxu0
      %v3739 = vadd.f32 0.0, %v3738
      %3740 = vmatmul.f32.gmra.mxu0 %v3701
      %v3741 = vpop.f32.mrf.mxu0
      %v3742 = vadd.f32 0.0, %v3741
      %3743 = vmatmul.f32.gmra.mxu0 %v3704
      %v3744 = vpop.f32.mrf.mxu0
      %v3745 = vadd.f32 0.0, %v3744
      %3746 = vdwg.mxu0
      %v3747 = vadd.f32 %v3602, %v3724
      %v3748 = vadd.f32 %v3603, %v3727
      %v3749 = vadd.f32 %v3604, %v3730
      %v3750 = vadd.f32 %v3605, %v3733
      %v3751 = vadd.f32 %v3606, %v3736
      %v3752 = vadd.f32 %v3607, %v3739
      %v3753 = vadd.f32 %v3608, %v3742
      %v3754 = vadd.f32 %v3609, %v3745
      %v3755 = vld [vmem:[#allocation3 + $0x10] sm:$0xff]
      %v3756 = vld [vmem:[#allocation3 + $0x18] sm:$0xff]
      %v3757 = vld [vmem:[#allocation3 + $0x20] sm:$0xff]
      %v3758 = vld [vmem:[#allocation3 + $0x28] sm:$0xff]
      %v3759 = vld [vmem:[#allocation3 + $0x30] sm:$0xff]
      %v3760 = vld [vmem:[#allocation3 + $0x38] sm:$0xff]
      %v3761 = vld [vmem:[#allocation3 + $0x40] sm:$0xff]
      %v3762 = vld [vmem:[#allocation3 + $0x48] sm:$0xff]
      %v3763 = vld [vmem:[%s13 + $0x100] sm:$0xff]
      %v3764 = vld [vmem:[%s13 + $0x108] sm:$0xff]
      %v3765 = vld [vmem:[%s13 + $0x110] sm:$0xff]
      %v3766 = vld [vmem:[%s13 + $0x118] sm:$0xff]
      %v3767 = vld [vmem:[%s13 + $0x120] sm:$0xff]
      %v3768 = vld [vmem:[%s13 + $0x128] sm:$0xff]
      %v3769 = vld [vmem:[%s13 + $0x130] sm:$0xff]
      %v3770 = vld [vmem:[%s13 + $0x138] sm:$0xff]
      %v3772 = vsel %vm525, %v3755, 0
      %v3775 = vsel %vm525, %v3756, 0
      %v3778 = vsel %vm525, %v3757, 0
      %v3781 = vsel %vm525, %v3758, 0
      %v3784 = vsel %vm525, %v3759, 0
      %v3787 = vsel %vm525, %v3760, 0
      %v3790 = vsel %vm525, %v3761, 0
      %v3793 = vsel %vm525, %v3762, 0
      %3795 = vmatpush.msra.mxu0 0.0
      %3796 = vmatpush.msra.mxu0 0.0
      %3797 = vmatpush.msra.mxu0 0.0
      %3798 = vmatpush.msra.mxu0 0.0
      %3799 = vmatpush.msra.mxu0 0.0
      %3800 = vmatpush.msra.mxu0 0.0
      %3801 = vmatpush.msra.mxu0 0.0
      %3802 = vmatpush.msra.mxu0 0.0
      %3803 = vmatpush.msra.mxu0 %v3770
      %3804 = vmatpush.msra.mxu0 %v3769
      %3805 = vmatpush.msra.mxu0 %v3768
      %3806 = vmatpush.msra.mxu0 %v3767
      %3807 = vmatpush.msra.mxu0 %v3766
      %3808 = vmatpush.msra.mxu0 %v3765
      %3809 = vmatpush.msra.mxu0 %v3764
      %3810 = vmatpush.msra.mxu0 %v3763
      %3811 = vmatmul.f32.gmra.mxu0 %v3772
      %v3812 = vpop.f32.mrf.mxu0
      %v3813 = vadd.f32 0.0, %v3812
      %3814 = vmatmul.f32.gmra.mxu0 %v3775
      %v3815 = vpop.f32.mrf.mxu0
      %v3816 = vadd.f32 0.0, %v3815
      %3817 = vmatmul.f32.gmra.mxu0 %v3778
      %v3818 = vpop.f32.mrf.mxu0
      %v3819 = vadd.f32 0.0, %v3818
      %3820 = vmatmul.f32.gmra.mxu0 %v3781
      %v3821 = vpop.f32.mrf.mxu0
      %v3822 = vadd.f32 0.0, %v3821
      %3823 = vmatmul.f32.gmra.mxu0 %v3784
      %v3824 = vpop.f32.mrf.mxu0
      %v3825 = vadd.f32 0.0, %v3824
      %3826 = vmatmul.f32.gmra.mxu0 %v3787
      %v3827 = vpop.f32.mrf.mxu0
      %v3828 = vadd.f32 0.0, %v3827
      %3829 = vmatmul.f32.gmra.mxu0 %v3790
      %v3830 = vpop.f32.mrf.mxu0
      %v3831 = vadd.f32 0.0, %v3830
      %3832 = vmatmul.f32.gmra.mxu0 %v3793
      %v3833 = vpop.f32.mrf.mxu0
      %v3834 = vadd.f32 0.0, %v3833
      %3835 = vdwg.mxu0
      %v3836 = vadd.f32 %v3747, %v3813
      %v3837 = vadd.f32 %v3748, %v3816
      %v3838 = vadd.f32 %v3749, %v3819
      %v3839 = vadd.f32 %v3750, %v3822
      %v3840 = vadd.f32 %v3751, %v3825
      %v3841 = vadd.f32 %v3752, %v3828
      %v3842 = vadd.f32 %v3753, %v3831
      %v3843 = vadd.f32 %v3754, %v3834
      %v3844 = vld [vmem:[#allocation3 + $0x11] sm:$0xff]
      %v3845 = vld [vmem:[#allocation3 + $0x19] sm:$0xff]
      %v3846 = vld [vmem:[#allocation3 + $0x21] sm:$0xff]
      %v3847 = vld [vmem:[#allocation3 + $0x29] sm:$0xff]
      %v3848 = vld [vmem:[#allocation3 + $0x31] sm:$0xff]
      %v3849 = vld [vmem:[#allocation3 + $0x39] sm:$0xff]
      %v3850 = vld [vmem:[#allocation3 + $0x41] sm:$0xff]
      %v3851 = vld [vmem:[#allocation3 + $0x49] sm:$0xff]
      %v3852 = vld [vmem:[%s1354] sm:$0xff]
      %v3853 = vld [vmem:[%s1354 + $0x8] sm:$0xff]
      %v3854 = vld [vmem:[%s1354 + $0x10] sm:$0xff]
      %v3855 = vld [vmem:[%s1354 + $0x18] sm:$0xff]
      %v3856 = vld [vmem:[%s1354 + $0x20] sm:$0xff]
      %v3857 = vld [vmem:[%s1354 + $0x28] sm:$0xff]
      %v3858 = vld [vmem:[%s1354 + $0x30] sm:$0xff]
      %v3859 = vld [vmem:[%s1354 + $0x38] sm:$0xff]
      %3861 = vset.pattern.permute.xlu0 0
      %3862 = vperm.xlu0 %3861, %v3852
      %v3863 = vpop.permute.xlu0 %3862
      %3866 = vset.pattern.permute.xlu0 0
      %3867 = vperm.xlu0 %3866, %v3853
      %v3868 = vpop.permute.xlu0 %3867
      %3871 = vset.pattern.permute.xlu0 0
      %3872 = vperm.xlu0 %3871, %v3854
      %v3873 = vpop.permute.xlu0 %3872
      %3876 = vset.pattern.permute.xlu0 0
      %3877 = vperm.xlu0 %3876, %v3855
      %v3878 = vpop.permute.xlu0 %3877
      %3881 = vset.pattern.permute.xlu0 0
      %3882 = vperm.xlu0 %3881, %v3856
      %v3883 = vpop.permute.xlu0 %3882
      %3886 = vset.pattern.permute.xlu0 0
      %3887 = vperm.xlu0 %3886, %v3857
      %v3888 = vpop.permute.xlu0 %3887
      %3891 = vset.pattern.permute.xlu0 0
      %3892 = vperm.xlu0 %3891, %v3858
      %v3893 = vpop.permute.xlu0 %3892
      %3896 = vset.pattern.permute.xlu0 0
      %3897 = vperm.xlu0 %3896, %v3859
      %v3898 = vpop.permute.xlu0 %3897
      %v3900 = vmul.f32 %v3844, %v3863
      %v3901 = vmul.f32 %v3845, %v3868
      %v3902 = vmul.f32 %v3846, %v3873
      %v3903 = vmul.f32 %v3847, %v3878
      %v3904 = vmul.f32 %v3848, %v3883
      %v3905 = vmul.f32 %v3849, %v3888
      %v3906 = vmul.f32 %v3850, %v3893
      %v3907 = vmul.f32 %v3851, %v3898
      %v3908 = vld [vmem:[%s13 + $0x140] sm:$0xff]
      %v3909 = vld [vmem:[%s13 + $0x148] sm:$0xff]
      %v3910 = vld [vmem:[%s13 + $0x150] sm:$0xff]
      %v3911 = vld [vmem:[%s13 + $0x158] sm:$0xff]
      %v3912 = vld [vmem:[%s13 + $0x160] sm:$0xff]
      %v3913 = vld [vmem:[%s13 + $0x168] sm:$0xff]
      %v3914 = vld [vmem:[%s13 + $0x170] sm:$0xff]
      %v3915 = vld [vmem:[%s13 + $0x178] sm:$0xff]
      %v3917 = vsel %vm525, %v3900, 0
      %v3920 = vsel %vm525, %v3901, 0
      %v3923 = vsel %vm525, %v3902, 0
      %v3926 = vsel %vm525, %v3903, 0
      %v3929 = vsel %vm525, %v3904, 0
      %v3932 = vsel %vm525, %v3905, 0
      %v3935 = vsel %vm525, %v3906, 0
      %v3938 = vsel %vm525, %v3907, 0
      %3940 = vmatpush.msra.mxu0 0.0
      %3941 = vmatpush.msra.mxu0 0.0
      %3942 = vmatpush.msra.mxu0 0.0
      %3943 = vmatpush.msra.mxu0 0.0
      %3944 = vmatpush.msra.mxu0 0.0
      %3945 = vmatpush.msra.mxu0 0.0
      %3946 = vmatpush.msra.mxu0 0.0
      %3947 = vmatpush.msra.mxu0 0.0
      %3948 = vmatpush.msra.mxu0 %v3915
      %3949 = vmatpush.msra.mxu0 %v3914
      %3950 = vmatpush.msra.mxu0 %v3913
      %3951 = vmatpush.msra.mxu0 %v3912
      %3952 = vmatpush.msra.mxu0 %v3911
      %3953 = vmatpush.msra.mxu0 %v3910
      %3954 = vmatpush.msra.mxu0 %v3909
      %3955 = vmatpush.msra.mxu0 %v3908
      %3956 = vmatmul.f32.gmra.mxu0 %v3917
      %v3957 = vpop.f32.mrf.mxu0
      %v3958 = vadd.f32 0.0, %v3957
      %3959 = vmatmul.f32.gmra.mxu0 %v3920
      %v3960 = vpop.f32.mrf.mxu0
      %v3961 = vadd.f32 0.0, %v3960
      %3962 = vmatmul.f32.gmra.mxu0 %v3923
      %v3963 = vpop.f32.mrf.mxu0
      %v3964 = vadd.f32 0.0, %v3963
      %3965 = vmatmul.f32.gmra.mxu0 %v3926
      %v3966 = vpop.f32.mrf.mxu0
      %v3967 = vadd.f32 0.0, %v3966
      %3968 = vmatmul.f32.gmra.mxu0 %v3929
      %v3969 = vpop.f32.mrf.mxu0
      %v3970 = vadd.f32 0.0, %v3969
      %3971 = vmatmul.f32.gmra.mxu0 %v3932
      %v3972 = vpop.f32.mrf.mxu0
      %v3973 = vadd.f32 0.0, %v3972
      %3974 = vmatmul.f32.gmra.mxu0 %v3935
      %v3975 = vpop.f32.mrf.mxu0
      %v3976 = vadd.f32 0.0, %v3975
      %3977 = vmatmul.f32.gmra.mxu0 %v3938
      %v3978 = vpop.f32.mrf.mxu0
      %v3979 = vadd.f32 0.0, %v3978
      %3980 = vdwg.mxu0
      %v3981 = vadd.f32 %v3836, %v3958
      %v3982 = vadd.f32 %v3837, %v3961
      %v3983 = vadd.f32 %v3838, %v3964
      %v3984 = vadd.f32 %v3839, %v3967
      %v3985 = vadd.f32 %v3840, %v3970
      %v3986 = vadd.f32 %v3841, %v3973
      %v3987 = vadd.f32 %v3842, %v3976
      %v3988 = vadd.f32 %v3843, %v3979
      %v3989 = vld [vmem:[#allocation3 + $0x17] sm:$0xff]
      %v3990 = vld [vmem:[#allocation3 + $0x1f] sm:$0xff]
      %v3991 = vld [vmem:[#allocation3 + $0x27] sm:$0xff]
      %v3992 = vld [vmem:[#allocation3 + $0x2f] sm:$0xff]
      %v3993 = vld [vmem:[#allocation3 + $0x37] sm:$0xff]
      %v3994 = vld [vmem:[#allocation3 + $0x3f] sm:$0xff]
      %v3995 = vld [vmem:[#allocation3 + $0x47] sm:$0xff]
      %v3996 = vld [vmem:[#allocation3 + $0x4f] sm:$0xff]
      %v3997 = vld [vmem:[%s1496] sm:$0xff]
      %v3998 = vld [vmem:[%s1496 + $0x8] sm:$0xff]
      %v3999 = vld [vmem:[%s1496 + $0x10] sm:$0xff]
      %v4000 = vld [vmem:[%s1496 + $0x18] sm:$0xff]
      %v4001 = vld [vmem:[%s1496 + $0x20] sm:$0xff]
      %v4002 = vld [vmem:[%s1496 + $0x28] sm:$0xff]
      %v4003 = vld [vmem:[%s1496 + $0x30] sm:$0xff]
      %v4004 = vld [vmem:[%s1496 + $0x38] sm:$0xff]
      %4006 = vset.pattern.permute.xlu0 0
      %4007 = vperm.xlu0 %4006, %v3997
      %v4008 = vpop.permute.xlu0 %4007
      %4011 = vset.pattern.permute.xlu0 0
      %4012 = vperm.xlu0 %4011, %v3998
      %v4013 = vpop.permute.xlu0 %4012
      %4016 = vset.pattern.permute.xlu0 0
      %4017 = vperm.xlu0 %4016, %v3999
      %v4018 = vpop.permute.xlu0 %4017
      %4021 = vset.pattern.permute.xlu0 0
      %4022 = vperm.xlu0 %4021, %v4000
      %v4023 = vpop.permute.xlu0 %4022
      %4026 = vset.pattern.permute.xlu0 0
      %4027 = vperm.xlu0 %4026, %v4001
      %v4028 = vpop.permute.xlu0 %4027
      %4031 = vset.pattern.permute.xlu0 0
      %4032 = vperm.xlu0 %4031, %v4002
      %v4033 = vpop.permute.xlu0 %4032
      %4036 = vset.pattern.permute.xlu0 0
      %4037 = vperm.xlu0 %4036, %v4003
      %v4038 = vpop.permute.xlu0 %4037
      %4041 = vset.pattern.permute.xlu0 0
      %4042 = vperm.xlu0 %4041, %v4004
      %v4043 = vpop.permute.xlu0 %4042
      %v4045 = vmul.f32 %v3989, %v4008
      %v4046 = vmul.f32 %v3990, %v4013
      %v4047 = vmul.f32 %v3991, %v4018
      %v4048 = vmul.f32 %v3992, %v4023
      %v4049 = vmul.f32 %v3993, %v4028
      %v4050 = vmul.f32 %v3994, %v4033
      %v4051 = vmul.f32 %v3995, %v4038
      %v4052 = vmul.f32 %v3996, %v4043
      %v4053 = vld [vmem:[%s13 + $0x180] sm:$0xff]
      %v4054 = vld [vmem:[%s13 + $0x188] sm:$0xff]
      %v4055 = vld [vmem:[%s13 + $0x190] sm:$0xff]
      %v4056 = vld [vmem:[%s13 + $0x198] sm:$0xff]
      %v4057 = vld [vmem:[%s13 + $0x1a0] sm:$0xff]
      %v4058 = vld [vmem:[%s13 + $0x1a8] sm:$0xff]
      %v4059 = vld [vmem:[%s13 + $0x1b0] sm:$0xff]
      %v4060 = vld [vmem:[%s13 + $0x1b8] sm:$0xff]
      %v4062 = vsel %vm525, %v4045, 0
      %v4065 = vsel %vm525, %v4046, 0
      %v4068 = vsel %vm525, %v4047, 0
      %v4071 = vsel %vm525, %v4048, 0
      %v4074 = vsel %vm525, %v4049, 0
      %v4077 = vsel %vm525, %v4050, 0
      %v4080 = vsel %vm525, %v4051, 0
      %v4083 = vsel %vm525, %v4052, 0
      %4085 = vmatpush.msra.mxu0 0.0
      %4086 = vmatpush.msra.mxu0 0.0
      %4087 = vmatpush.msra.mxu0 0.0
      %4088 = vmatpush.msra.mxu0 0.0
      %4089 = vmatpush.msra.mxu0 0.0
      %4090 = vmatpush.msra.mxu0 0.0
      %4091 = vmatpush.msra.mxu0 0.0
      %4092 = vmatpush.msra.mxu0 0.0
      %4093 = vmatpush.msra.mxu0 %v4060
      %4094 = vmatpush.msra.mxu0 %v4059
      %4095 = vmatpush.msra.mxu0 %v4058
      %4096 = vmatpush.msra.mxu0 %v4057
      %4097 = vmatpush.msra.mxu0 %v4056
      %4098 = vmatpush.msra.mxu0 %v4055
      %4099 = vmatpush.msra.mxu0 %v4054
      %4100 = vmatpush.msra.mxu0 %v4053
      %4101 = vmatmul.f32.gmra.mxu0 %v4062
      %v4102 = vpop.f32.mrf.mxu0
      %v4103 = vadd.f32 0.0, %v4102
      %4104 = vmatmul.f32.gmra.mxu0 %v4065
      %v4105 = vpop.f32.mrf.mxu0
      %v4106 = vadd.f32 0.0, %v4105
      %4107 = vmatmul.f32.gmra.mxu0 %v4068
      %v4108 = vpop.f32.mrf.mxu0
      %v4109 = vadd.f32 0.0, %v4108
      %4110 = vmatmul.f32.gmra.mxu0 %v4071
      %v4111 = vpop.f32.mrf.mxu0
      %v4112 = vadd.f32 0.0, %v4111
      %4113 = vmatmul.f32.gmra.mxu0 %v4074
      %v4114 = vpop.f32.mrf.mxu0
      %v4115 = vadd.f32 0.0, %v4114
      %4116 = vmatmul.f32.gmra.mxu0 %v4077
      %v4117 = vpop.f32.mrf.mxu0
      %v4118 = vadd.f32 0.0, %v4117
      %4119 = vmatmul.f32.gmra.mxu0 %v4080
      %v4120 = vpop.f32.mrf.mxu0
      %v4121 = vadd.f32 0.0, %v4120
      %4122 = vmatmul.f32.gmra.mxu0 %v4083
      %v4123 = vpop.f32.mrf.mxu0
      %v4124 = vadd.f32 0.0, %v4123
      %4125 = vdwg.mxu0
      %v4126 = vadd.f32 %v3981, %v4103
      %v4127 = vadd.f32 %v3982, %v4106
      %v4128 = vadd.f32 %v3983, %v4109
      %v4129 = vadd.f32 %v3984, %v4112
      %v4130 = vadd.f32 %v3985, %v4115
      %v4131 = vadd.f32 %v3986, %v4118
      %v4132 = vadd.f32 %v3987, %v4121
      %v4133 = vadd.f32 %v3988, %v4124
      %v4134 = vld [vmem:[#allocation3 + $0x18] sm:$0xff]
      %v4135 = vld [vmem:[#allocation3 + $0x20] sm:$0xff]
      %v4136 = vld [vmem:[#allocation3 + $0x28] sm:$0xff]
      %v4137 = vld [vmem:[#allocation3 + $0x30] sm:$0xff]
      %v4138 = vld [vmem:[#allocation3 + $0x38] sm:$0xff]
      %v4139 = vld [vmem:[#allocation3 + $0x40] sm:$0xff]
      %v4140 = vld [vmem:[#allocation3 + $0x48] sm:$0xff]
      %v4141 = vld [vmem:[#allocation3 + $0x50] sm:$0xff]
      %v4142 = vld [vmem:[%s1638] sm:$0xff]
      %v4143 = vld [vmem:[%s1638 + $0x8] sm:$0xff]
      %v4144 = vld [vmem:[%s1638 + $0x10] sm:$0xff]
      %v4145 = vld [vmem:[%s1638 + $0x18] sm:$0xff]
      %v4146 = vld [vmem:[%s1638 + $0x20] sm:$0xff]
      %v4147 = vld [vmem:[%s1638 + $0x28] sm:$0xff]
      %v4148 = vld [vmem:[%s1638 + $0x30] sm:$0xff]
      %v4149 = vld [vmem:[%s1638 + $0x38] sm:$0xff]
      %4151 = vset.pattern.permute.xlu0 0
      %4152 = vperm.xlu0 %4151, %v4142
      %v4153 = vpop.permute.xlu0 %4152
      %4156 = vset.pattern.permute.xlu0 0
      %4157 = vperm.xlu0 %4156, %v4143
      %v4158 = vpop.permute.xlu0 %4157
      %4161 = vset.pattern.permute.xlu0 0
      %4162 = vperm.xlu0 %4161, %v4144
      %v4163 = vpop.permute.xlu0 %4162
      %4166 = vset.pattern.permute.xlu0 0
      %4167 = vperm.xlu0 %4166, %v4145
      %v4168 = vpop.permute.xlu0 %4167
      %4171 = vset.pattern.permute.xlu0 0
      %4172 = vperm.xlu0 %4171, %v4146
      %v4173 = vpop.permute.xlu0 %4172
      %4176 = vset.pattern.permute.xlu0 0
      %4177 = vperm.xlu0 %4176, %v4147
      %v4178 = vpop.permute.xlu0 %4177
      %4181 = vset.pattern.permute.xlu0 0
      %4182 = vperm.xlu0 %4181, %v4148
      %v4183 = vpop.permute.xlu0 %4182
      %4186 = vset.pattern.permute.xlu0 0
      %4187 = vperm.xlu0 %4186, %v4149
      %v4188 = vpop.permute.xlu0 %4187
      %v4190 = vmul.f32 %v4134, %v4153
      %v4191 = vmul.f32 %v4135, %v4158
      %v4192 = vmul.f32 %v4136, %v4163
      %v4193 = vmul.f32 %v4137, %v4168
      %v4194 = vmul.f32 %v4138, %v4173
      %v4195 = vmul.f32 %v4139, %v4178
      %v4196 = vmul.f32 %v4140, %v4183
      %v4197 = vmul.f32 %v4141, %v4188
      %v4198 = vld [vmem:[%s13 + $0x1c0] sm:$0xff]
      %v4199 = vld [vmem:[%s13 + $0x1c8] sm:$0xff]
      %v4200 = vld [vmem:[%s13 + $0x1d0] sm:$0xff]
      %v4201 = vld [vmem:[%s13 + $0x1d8] sm:$0xff]
      %v4202 = vld [vmem:[%s13 + $0x1e0] sm:$0xff]
      %v4203 = vld [vmem:[%s13 + $0x1e8] sm:$0xff]
      %v4204 = vld [vmem:[%s13 + $0x1f0] sm:$0xff]
      %v4205 = vld [vmem:[%s13 + $0x1f8] sm:$0xff]
      %v4207 = vsel %vm525, %v4190, 0
      %v4210 = vsel %vm525, %v4191, 0
      %v4213 = vsel %vm525, %v4192, 0
      %v4216 = vsel %vm525, %v4193, 0
      %v4219 = vsel %vm525, %v4194, 0
      %v4222 = vsel %vm525, %v4195, 0
      %v4225 = vsel %vm525, %v4196, 0
      %v4228 = vsel %vm525, %v4197, 0
      %4230 = vmatpush.msra.mxu0 0.0
      %4231 = vmatpush.msra.mxu0 0.0
      %4232 = vmatpush.msra.mxu0 0.0
      %4233 = vmatpush.msra.mxu0 0.0
      %4234 = vmatpush.msra.mxu0 0.0
      %4235 = vmatpush.msra.mxu0 0.0
      %4236 = vmatpush.msra.mxu0 0.0
      %4237 = vmatpush.msra.mxu0 0.0
      %4238 = vmatpush.msra.mxu0 %v4205
      %4239 = vmatpush.msra.mxu0 %v4204
      %4240 = vmatpush.msra.mxu0 %v4203
      %4241 = vmatpush.msra.mxu0 %v4202
      %4242 = vmatpush.msra.mxu0 %v4201
      %4243 = vmatpush.msra.mxu0 %v4200
      %4244 = vmatpush.msra.mxu0 %v4199
      %4245 = vmatpush.msra.mxu0 %v4198
      %4246 = vmatmul.f32.gmra.mxu0 %v4207
      %v4247 = vpop.f32.mrf.mxu0
      %v4248 = vadd.f32 0.0, %v4247
      %4249 = vmatmul.f32.gmra.mxu0 %v4210
      %v4250 = vpop.f32.mrf.mxu0
      %v4251 = vadd.f32 0.0, %v4250
      %4252 = vmatmul.f32.gmra.mxu0 %v4213
      %v4253 = vpop.f32.mrf.mxu0
      %v4254 = vadd.f32 0.0, %v4253
      %4255 = vmatmul.f32.gmra.mxu0 %v4216
      %v4256 = vpop.f32.mrf.mxu0
      %v4257 = vadd.f32 0.0, %v4256
      %4258 = vmatmul.f32.gmra.mxu0 %v4219
      %v4259 = vpop.f32.mrf.mxu0
      %v4260 = vadd.f32 0.0, %v4259
      %4261 = vmatmul.f32.gmra.mxu0 %v4222
      %v4262 = vpop.f32.mrf.mxu0
      %v4263 = vadd.f32 0.0, %v4262
      %4264 = vmatmul.f32.gmra.mxu0 %v4225
      %v4265 = vpop.f32.mrf.mxu0
      %v4266 = vadd.f32 0.0, %v4265
      %4267 = vmatmul.f32.gmra.mxu0 %v4228
      %v4268 = vpop.f32.mrf.mxu0
      %v4269 = vadd.f32 0.0, %v4268
      %4270 = vdwg.mxu0
      %v4271 = vadd.f32 %v4126, %v4248
      %v4272 = vadd.f32 %v4127, %v4251
      %v4273 = vadd.f32 %v4128, %v4254
      %v4274 = vadd.f32 %v4129, %v4257
      %v4275 = vadd.f32 %v4130, %v4260
      %v4276 = vadd.f32 %v4131, %v4263
      %v4277 = vadd.f32 %v4132, %v4266
      %v4278 = vadd.f32 %v4133, %v4269
      %v4279 = vld [vmem:[#allocation3 + $0x19] sm:$0xff]
      %v4280 = vld [vmem:[#allocation3 + $0x21] sm:$0xff]
      %v4281 = vld [vmem:[#allocation3 + $0x29] sm:$0xff]
      %v4282 = vld [vmem:[#allocation3 + $0x31] sm:$0xff]
      %v4283 = vld [vmem:[#allocation3 + $0x39] sm:$0xff]
      %v4284 = vld [vmem:[#allocation3 + $0x41] sm:$0xff]
      %v4285 = vld [vmem:[#allocation3 + $0x49] sm:$0xff]
      %v4286 = vld [vmem:[#allocation3 + $0x51] sm:$0xff]
      %v4287 = vld [vmem:[%s1780] sm:$0xff]
      %v4288 = vld [vmem:[%s1780 + $0x8] sm:$0xff]
      %v4289 = vld [vmem:[%s1780 + $0x10] sm:$0xff]
      %v4290 = vld [vmem:[%s1780 + $0x18] sm:$0xff]
      %v4291 = vld [vmem:[%s1780 + $0x20] sm:$0xff]
      %v4292 = vld [vmem:[%s1780 + $0x28] sm:$0xff]
      %v4293 = vld [vmem:[%s1780 + $0x30] sm:$0xff]
      %v4294 = vld [vmem:[%s1780 + $0x38] sm:$0xff]
      %4296 = vset.pattern.permute.xlu0 0
      %4297 = vperm.xlu0 %4296, %v4287
      %v4298 = vpop.permute.xlu0 %4297
      %4301 = vset.pattern.permute.xlu0 0
      %4302 = vperm.xlu0 %4301, %v4288
      %v4303 = vpop.permute.xlu0 %4302
      %4306 = vset.pattern.permute.xlu0 0
      %4307 = vperm.xlu0 %4306, %v4289
      %v4308 = vpop.permute.xlu0 %4307
      %4311 = vset.pattern.permute.xlu0 0
      %4312 = vperm.xlu0 %4311, %v4290
      %v4313 = vpop.permute.xlu0 %4312
      %4316 = vset.pattern.permute.xlu0 0
      %4317 = vperm.xlu0 %4316, %v4291
      %v4318 = vpop.permute.xlu0 %4317
      %4321 = vset.pattern.permute.xlu0 0
      %4322 = vperm.xlu0 %4321, %v4292
      %v4323 = vpop.permute.xlu0 %4322
      %4326 = vset.pattern.permute.xlu0 0
      %4327 = vperm.xlu0 %4326, %v4293
      %v4328 = vpop.permute.xlu0 %4327
      %4331 = vset.pattern.permute.xlu0 0
      %4332 = vperm.xlu0 %4331, %v4294
      %v4333 = vpop.permute.xlu0 %4332
      %v4335 = vmul.f32 %v4279, %v4298
      %v4336 = vmul.f32 %v4280, %v4303
      %v4337 = vmul.f32 %v4281, %v4308
      %v4338 = vmul.f32 %v4282, %v4313
      %v4339 = vmul.f32 %v4283, %v4318
      %v4340 = vmul.f32 %v4284, %v4323
      %v4341 = vmul.f32 %v4285, %v4328
      %v4342 = vmul.f32 %v4286, %v4333
      %v4343 = vld [vmem:[%s13 + $0x200] sm:$0xff]
      %v4344 = vld [vmem:[%s13 + $0x208] sm:$0xff]
      %v4345 = vld [vmem:[%s13 + $0x210] sm:$0xff]
      %v4346 = vld [vmem:[%s13 + $0x218] sm:$0xff]
      %v4347 = vld [vmem:[%s13 + $0x220] sm:$0xff]
      %v4348 = vld [vmem:[%s13 + $0x228] sm:$0xff]
      %v4349 = vld [vmem:[%s13 + $0x230] sm:$0xff]
      %v4350 = vld [vmem:[%s13 + $0x238] sm:$0xff]
      %v4352 = vsel %vm525, %v4335, 0
      %v4355 = vsel %vm525, %v4336, 0
      %v4358 = vsel %vm525, %v4337, 0
      %v4361 = vsel %vm525, %v4338, 0
      %v4364 = vsel %vm525, %v4339, 0
      %v4367 = vsel %vm525, %v4340, 0
      %v4370 = vsel %vm525, %v4341, 0
      %v4373 = vsel %vm525, %v4342, 0
      %4375 = vmatpush.msra.mxu0 0.0
      %4376 = vmatpush.msra.mxu0 0.0
      %4377 = vmatpush.msra.mxu0 0.0
      %4378 = vmatpush.msra.mxu0 0.0
      %4379 = vmatpush.msra.mxu0 0.0
      %4380 = vmatpush.msra.mxu0 0.0
      %4381 = vmatpush.msra.mxu0 0.0
      %4382 = vmatpush.msra.mxu0 0.0
      %4383 = vmatpush.msra.mxu0 %v4350
      %4384 = vmatpush.msra.mxu0 %v4349
      %4385 = vmatpush.msra.mxu0 %v4348
      %4386 = vmatpush.msra.mxu0 %v4347
      %4387 = vmatpush.msra.mxu0 %v4346
      %4388 = vmatpush.msra.mxu0 %v4345
      %4389 = vmatpush.msra.mxu0 %v4344
      %4390 = vmatpush.msra.mxu0 %v4343
      %4391 = vmatmul.f32.gmra.mxu0 %v4352
      %v4392 = vpop.f32.mrf.mxu0
      %v4393 = vadd.f32 0.0, %v4392
      %4394 = vmatmul.f32.gmra.mxu0 %v4355
      %v4395 = vpop.f32.mrf.mxu0
      %v4396 = vadd.f32 0.0, %v4395
      %4397 = vmatmul.f32.gmra.mxu0 %v4358
      %v4398 = vpop.f32.mrf.mxu0
      %v4399 = vadd.f32 0.0, %v4398
      %4400 = vmatmul.f32.gmra.mxu0 %v4361
      %v4401 = vpop.f32.mrf.mxu0
      %v4402 = vadd.f32 0.0, %v4401
      %4403 = vmatmul.f32.gmra.mxu0 %v4364
      %v4404 = vpop.f32.mrf.mxu0
      %v4405 = vadd.f32 0.0, %v4404
      %4406 = vmatmul.f32.gmra.mxu0 %v4367
      %v4407 = vpop.f32.mrf.mxu0
      %v4408 = vadd.f32 0.0, %v4407
      %4409 = vmatmul.f32.gmra.mxu0 %v4370
      %v4410 = vpop.f32.mrf.mxu0
      %v4411 = vadd.f32 0.0, %v4410
      %4412 = vmatmul.f32.gmra.mxu0 %v4373
      %v4413 = vpop.f32.mrf.mxu0
      %v4414 = vadd.f32 0.0, %v4413
      %4415 = vdwg.mxu0
      %v4416 = vadd.f32 %v4271, %v4393
      %v4417 = vadd.f32 %v4272, %v4396
      %v4418 = vadd.f32 %v4273, %v4399
      %v4419 = vadd.f32 %v4274, %v4402
      %v4420 = vadd.f32 %v4275, %v4405
      %v4421 = vadd.f32 %v4276, %v4408
      %v4422 = vadd.f32 %v4277, %v4411
      %v4423 = vadd.f32 %v4278, %v4414
      %v4424 = vld [vmem:[%s14] sm:$0x1]
      %v4426 = vperm.slane %v4424, 0
      %v4428 = vadd.f32 %v4416, %v4426
      %v4429 = vadd.f32 %v4417, %v4426
      %v4430 = vadd.f32 %v4418, %v4426
      %v4431 = vadd.f32 %v4419, %v4426
      %v4432 = vadd.f32 %v4420, %v4426
      %v4433 = vadd.f32 %v4421, %v4426
      %v4434 = vadd.f32 %v4422, %v4426
      %v4435 = vadd.f32 %v4423, %v4426
      %4436 = vst [vmem:[%s511] sm:$0xff] %v4428
      %4437 = vst [vmem:[%s511 + $0x8] sm:$0xff] %v4429
      %4438 = vst [vmem:[%s511 + $0x10] sm:$0xff] %v4430
      %4439 = vst [vmem:[%s511 + $0x18] sm:$0xff] %v4431
      %4440 = vst [vmem:[%s511 + $0x20] sm:$0xff] %v4432
      %4441 = vst [vmem:[%s511 + $0x28] sm:$0xff] %v4433
      %4442 = vst [vmem:[%s511 + $0x30] sm:$0xff] %v4434
      %4443 = vst [vmem:[%s511 + $0x38] sm:$0xff] %v4435
      %p4444 = scmp.lt.s32.totalorder %s26, 1
      %s4445 = scalar_select %p4444, %s26, 1
      %s4446 = smul.addr %s4445, 8
      %s4447 = smul.addr %s4446, 8
      %s4448 = scalar_lea.vmem %s15, %s4447
      // Predicated region
      $region81: #{depthwise_xcorr_forward.1} parent=79 // pred_check
        %p4449 = pneg %p369
      $region82: #{depthwise_xcorr_forward.1} parent=79 // pred_check_branch
        %4451 = sbr.rel (%p4449) target = $region84
      $region83: #{depthwise_xcorr_forward.1} parent=79 // pred_region
        _
      $region84: #{depthwise_xcorr_forward.1} parent=79 // pred_fallthru
        _
    $region80: #{depthwise_xcorr_forward.1} parent=5 // pred_fallthru
      _
    %p4452 = scmp.le.s32.totalorder 2, %s21
    // Predicated region
    $region85: #{depthwise_xcorr_forward.1} parent=5 // pred_check
      %p4453 = pneg %p4452
    $region86: #{depthwise_xcorr_forward.1} parent=5 // pred_check_branch
      %4455 = sbr.rel (%p4453) target = $region88
    $region87: #{depthwise_xcorr_forward.1} parent=5 // pred_region
      %s4456 = ssub.s32 %s21, 2
      // Predicated region
      $region89: #{depthwise_xcorr_forward.1} parent=87 // pred_check
        %p4457 = pneg %p375
      $region90: #{depthwise_xcorr_forward.1} parent=87 // pred_check_branch
        %4459 = sbr.rel (%p4457) target = $region92
      $region91: #{depthwise_xcorr_forward.1} parent=87 // pred_region
        %p4460 = scmp.lt.s32.totalorder %s27, 1
        %s4461 = scalar_select %p4460, %s27, 1
        %s4462 = smul.addr %s4461, 8
        %s4463 = smul.addr %s4462, 8
        %s4464 = scalar_lea.vmem %s15, %s4463
      $region92: #{depthwise_xcorr_forward.1} parent=87 // pred_fallthru
        _
    $region88: #{depthwise_xcorr_forward.1} parent=5 // pred_fallthru
      _
  $region6: #{depthwise_xcorr_forward.1} parent=0 // loop_footer
    %s25 = sadd.s32 1, %s21
  $region7: #{depthwise_xcorr_forward.1} parent=0 // loop_footer_branch
    %20 = sbr.rel target = $region3
  $region8: #{depthwise_xcorr_forward.1} parent=0 // loop_exit
    _

</llo_original>
